<compile_context>
chip_gen: v7x
topology: tpu7x:2x2x1
jax: 0.10.0
libtpu: 0.0.40
codegen_flags: <defaults>
</compile_context>

<pallas_src>
import jax
import jax.numpy as jnp
from jax import lax
from jax.experimental import pallas as pl
from jax.experimental.pallas import tpu as pltpu

N_FEATS = 64       # must be divisible by p=32 (Efficient_HetConv2d constraint)
P_GROUPS = 32
RES_SCALE = 1.0


# ----------------------------- Pallas kernel ------------------------------ #
def block_kernel(x_ref, dww_ref, hetw_ref, bias_ref, o_ref, pad_ref, col_ref):
    _, H, W, C = x_ref.shape
    x = x_ref[0]                                            # (H, W, C) f32

    # Zero only the 1-pixel border of the padded scratch.  The interior is
    # fully overwritten below (twice per step), so this is the only
    # (re)initialization needed; borders are never written otherwise.
    pad_ref[0:1, :, :] = jnp.zeros((1, W + 2, C), jnp.float32)
    pad_ref[H + 1:H + 2, :, :] = jnp.zeros((1, W + 2, C), jnp.float32)
    pad_ref[:, 0:1, :] = jnp.zeros((H + 2, 1, C), jnp.float32)
    pad_ref[:, W + 1:W + 2, :] = jnp.zeros((H + 2, 1, C), jnp.float32)

    # ---- stage 1: weight-normed depthwise 3x3 (padding=1, bias=False) + ReLU
    pad_ref[1:H + 1, 1:W + 1, :] = x
    acc = jnp.zeros((H, W, C), jnp.float32)
    for kh in range(3):
        for kw in range(3):
            win = pad_ref[kh:kh + H, kw:kw + W, :]          # (H, W, C)
            acc = acc + win * dww_ref[kh * 3 + kw][None, :, :]   # (1,1,C) bcast
    t = jnp.maximum(acc, 0.0)                               # nn.ReLU(True)

    # ---- stage 2: Efficient_HetConv2d as ONE bf16 im2col matmul (MXU) ------
    # conv3x3(grouped) + conv1x1 - conv1x1(grouped) already folded host-side
    # into a single (9*C, C) weight (res_scale folded in too).
    pad_ref[1:H + 1, 1:W + 1, :] = t                        # borders stay zero
    for kh in range(3):
        for kw in range(3):
            tap = kh * 3 + kw
            win = pad_ref[kh:kh + H, kw:kw + W, :].reshape(H * W, C)
            col_ref[:, tap * C:(tap + 1) * C] = win.astype(jnp.bfloat16)
    het = jnp.dot(col_ref[...], hetw_ref[...],
                  preferred_element_type=jnp.float32)       # (H*W, C) f32

    # ---- residual (res_scale already folded into hetw/bias) ----------------
    res = (het + bias_ref[...]).reshape(H, W, C)
    o_ref[0] = (res + x).astype(o_ref.dtype)


def block_forward_nhwc(x, dww, w_het, bias):
    n, h, w, c = x.shape
    return pl.pallas_call(
        block_kernel,
        out_shape=jax.ShapeDtypeStruct((n, h, w, c), jnp.float32),
        grid_spec=pltpu.PrefetchScalarGridSpec(
            num_scalar_prefetch=0,
            grid=(n,),
            in_specs=[
                pl.BlockSpec((1, h, w, c), lambda i: (i, 0, 0, 0)),   # x
                pl.BlockSpec((9, 1, c), lambda i: (0, 0, 0)),         # dw taps (f32)
                pl.BlockSpec((9 * c, c), lambda i: (0, 0)),           # het im2col w (bf16)
                pl.BlockSpec((1, c), lambda i: (0, 0)),               # bias (f32)
            ],
            out_specs=pl.BlockSpec((1, h, w, c), lambda i: (i, 0, 0, 0)),
            scratch_shapes=[
                pltpu.VMEM((h + 2, w + 2, c), jnp.float32),           # padded buf
                pltpu.VMEM((h * w, 9 * c), jnp.bfloat16),             # im2col buf
            ],
        ),
        compiler_params=pltpu.CompilerParams(
            dimension_semantics=("parallel",)),
    )(x, dww, w_het, bias)


# --------------------------- parameter plumbing ---------------------------- #
def init_params(key, c=N_FEATS, p=P_GROUPS):
    ks = jax.random.split(key, 8)
    cpg = c // p
    # wn(nn.Conv2d(c, c, 3, padding=1, groups=c, bias=False)):
    v = 0.1 * jax.random.normal(ks[0], (c, 1, 3, 3), jnp.float32)
    g = 1.0 + 0.1 * jax.random.normal(ks[1], (c, 1, 1, 1), jnp.float32)
    w_dw = g * v / jnp.sqrt(jnp.sum(v * v, axis=(1, 2, 3), keepdims=True))
    # Efficient_HetConv2d(c, p=32)
    w3 = 0.1 * jax.random.normal(ks[2], (c, cpg, 3, 3), jnp.float32)
    b3 = 0.1 * jax.random.normal(ks[3], (c,), jnp.float32)
    w1g = 0.1 * jax.random.normal(ks[4], (c, cpg, 1, 1), jnp.float32)
    b1g = 0.1 * jax.random.normal(ks[5], (c,), jnp.float32)
    w1 = 0.1 * jax.random.normal(ks[6], (c, c, 1, 1), jnp.float32)
    b1 = 0.1 * jax.random.normal(ks[7], (c,), jnp.float32)
    return dict(w_dw=w_dw, w3=w3, b3=b3, w1g=w1g, b1g=b1g, w1=w1, b1=b1)


def grouped_to_full(w, groups):
    """(C_out, C_in//groups, kh, kw) grouped weight -> block-diag full weight."""
    c_out, cpg, kh, kw = w.shape
    c_in = cpg * groups
    out_group = jnp.arange(c_out) // (c_out // groups)
    in_idx = out_group[:, None] * cpg + jnp.arange(cpg)[None, :]    # (C_out, cpg)
    onehot = jax.nn.one_hot(in_idx, c_in, dtype=w.dtype)            # (C_out, cpg, C_in)
    return jnp.einsum('oikl,oic->ockl', w, onehot)                  # (C_out, C_in, kh, kw)


def pack_kernel_params(p, groups=P_GROUPS, res_scale=RES_SCALE):
    c = p['w_dw'].shape[0]
    # depthwise weight (C,1,3,3) -> (9 taps, 1, C), kept in f32 for the VPU stage
    dww = jnp.transpose(p['w_dw'][:, 0], (1, 2, 0)).reshape(9, c)[:, None, :]
    # grouped 3x3 -> block diag, per-tap (C_in, C_out)
    w3_full = grouped_to_full(p['w3'], groups)                      # (O, I, 3, 3)
    het = jnp.transpose(w3_full, (2, 3, 1, 0)).reshape(9, c, c)     # (tap, I, O)
    # fold conv1x1 - conv1x1_ into the center tap
    w1_full = p['w1'][:, :, 0, 0]                                   # (O, I)
    w1g_full = grouped_to_full(p['w1g'], groups)[:, :, 0, 0]        # (O, I)
    het = het.at[4].add((w1_full - w1g_full).T)
    # single im2col weight (9*C, C); fold res_scale; cast to bf16 for the MXU
    w_het = (het.reshape(9 * c, c) * res_scale).astype(jnp.bfloat16)
    bias = ((p['b3'] + p['b1'] - p['b1g']) * res_scale)[None, :].astype(jnp.float32)
    return dww, w_het, bias


# ------------------------------ JAX reference ------------------------------ #
def reference_nchw(x, p, groups=P_GROUPS, res_scale=RES_SCALE):
    dn = ('NCHW', 'OIHW', 'NCHW')
    c = x.shape[1]
    y = lax.conv_general_dilated(x, p['w_dw'], (1, 1), [(1, 1), (1, 1)],
                                 dimension_numbers=dn, feature_group_count=c)
    y = jnp.maximum(y, 0.0)
    c3 = lax.conv_general_dilated(y, p['w3'], (1, 1), [(1, 1), (1, 1)],
                                  dimension_numbers=dn, feature_group_count=groups)
    c3 = c3 + p['b3'][None, :, None, None]
    c1 = lax.conv_general_dilated(y, p['w1'], (1, 1), [(0, 0), (0, 0)],
                                  dimension_numbers=dn)
    c1 = c1 + p['b1'][None, :, None, None]
    c1g = lax.conv_general_dilated(y, p['w1g'], (1, 1), [(0, 0), (0, 0)],
                                   dimension_numbers=dn, feature_group_count=groups)
    c1g = c1g + p['b1g'][None, :, None, None]
    return (c3 + c1 - c1g) * res_scale + x


# ----------------------------------- main ---------------------------------- #
if __name__ == "__main__":
    key = jax.random.PRNGKey(0)
    kx, kp = jax.random.split(key)
    N, C, H, W = 2, N_FEATS, 16, 16

    x_nchw = jax.random.normal(kx, (N, C, H, W), jnp.float32)
    params = init_params(kp)
    dww, w_het, bias = pack_kernel_params(params)

    x_nhwc = jnp.transpose(x_nchw, (0, 2, 3, 1))
    out_nhwc = block_forward_nhwc(x_nhwc, dww, w_het, bias)
    out = jnp.transpose(out_nhwc, (0, 3, 1, 2))     # back to NCHW for comparison
    jax.block_until_ready(out)

    ref = reference_nchw(x_nchw, params)
    err = float(jnp.max(jnp.abs(out - ref)))
    assert err < 5e-2, f"max abs error too large: {err}"
    print("KERNEL_OK")
</pallas_src>

<mosaic_0001>
module attributes {stable_mosaic.version = 11 : i64} {
  func.func @block_kernel(%arg0: i32, %arg1: memref<1x16x16x64xf32, #tpu.memory_space<vmem>>, %arg2: memref<9x1x64xf32, #tpu.memory_space<vmem>>, %arg3: memref<576x64xbf16, #tpu.memory_space<vmem>>, %arg4: memref<1x64xf32, #tpu.memory_space<vmem>>, %arg5: memref<1x16x16x64xf32, #tpu.memory_space<vmem>>, %arg6: memref<18x18x64xf32, #tpu.memory_space<vmem>>, %arg7: memref<256x576xbf16, #tpu.memory_space<vmem>>) attributes {dimension_semantics = [#tpu.dimension_semantics<parallel>], iteration_bounds = array<i64: 2>, scalar_prefetch = 0 : i64, scratch_operands = 2 : i64, tpu.core_type = #tpu.core_type<tc>, window_params = [{transform_indices = @transform_0, window_bounds = array<i64: 1, 16, 16, 64>}, {pipeline_mode = #tpu.pipeline_mode<synchronous>, transform_indices = @transform_1, window_bounds = array<i64: 9, 1, 64>}, {pipeline_mode = #tpu.pipeline_mode<synchronous>, transform_indices = @transform_2, window_bounds = array<i64: 576, 64>}, {pipeline_mode = #tpu.pipeline_mode<synchronous>, transform_indices = @transform_3, window_bounds = array<i64: 1, 64>}, {transform_indices = @transform_4, window_bounds = array<i64: 1, 16, 16, 64>}]} {
    %c0 = arith.constant 0 : index
    %c0_0 = arith.constant 0 : index
    %c0_1 = arith.constant 0 : index
    %c0_2 = arith.constant 0 : index
    %0 = vector.load %arg1[%c0, %c0_0, %c0_1, %c0_2] : memref<1x16x16x64xf32, #tpu.memory_space<vmem>>, vector<1x16x16x64xf32>
    %1 = vector.shape_cast %0 : vector<1x16x16x64xf32> to vector<16x16x64xf32>
    %cst = arith.constant 0.000000e+00 : f32
    %2 = vector.broadcast %cst : f32 to vector<1x18x64xf32>
    %c0_3 = arith.constant 0 : index
    %c0_4 = arith.constant 0 : index
    %c0_5 = arith.constant 0 : index
    %3 = vector.load %arg6[%c0_3, %c0_4, %c0_5] : memref<18x18x64xf32, #tpu.memory_space<vmem>>, vector<1x18x64xf32>
    tpu.vector_store %arg6[%c0_3, %c0_4, %c0_5], %2 {strides = array<i32>} : memref<18x18x64xf32, #tpu.memory_space<vmem>>, vector<1x18x64xf32>,
    %cst_6 = arith.constant 0.000000e+00 : f32
    %4 = vector.broadcast %cst_6 : f32 to vector<1x18x64xf32>
    %c17 = arith.constant 17 : index
    %c0_7 = arith.constant 0 : index
    %c0_8 = arith.constant 0 : index
    %5 = vector.load %arg6[%c17, %c0_7, %c0_8] : memref<18x18x64xf32, #tpu.memory_space<vmem>>, vector<1x18x64xf32>
    tpu.vector_store %arg6[%c17, %c0_7, %c0_8], %4 {strides = array<i32>} : memref<18x18x64xf32, #tpu.memory_space<vmem>>, vector<1x18x64xf32>,
    %cst_9 = arith.constant 0.000000e+00 : f32
    %6 = vector.broadcast %cst_9 : f32 to vector<18x1x64xf32>
    %c0_10 = arith.constant 0 : index
    %c0_11 = arith.constant 0 : index
    %c0_12 = arith.constant 0 : index
    %7 = vector.load %arg6[%c0_10, %c0_11, %c0_12] : memref<18x18x64xf32, #tpu.memory_space<vmem>>, vector<18x1x64xf32>
    tpu.vector_store %arg6[%c0_10, %c0_11, %c0_12], %6 {strides = array<i32>} : memref<18x18x64xf32, #tpu.memory_space<vmem>>, vector<18x1x64xf32>,
    %cst_13 = arith.constant 0.000000e+00 : f32
    %8 = vector.broadcast %cst_13 : f32 to vector<18x1x64xf32>
    %c0_14 = arith.constant 0 : index
    %c17_15 = arith.constant 17 : index
    %c0_16 = arith.constant 0 : index
    %9 = vector.load %arg6[%c0_14, %c17_15, %c0_16] : memref<18x18x64xf32, #tpu.memory_space<vmem>>, vector<18x1x64xf32>
    tpu.vector_store %arg6[%c0_14, %c17_15, %c0_16], %8 {strides = array<i32>} : memref<18x18x64xf32, #tpu.memory_space<vmem>>, vector<18x1x64xf32>,
    %c1 = arith.constant 1 : index
    %c1_17 = arith.constant 1 : index
    %c0_18 = arith.constant 0 : index
    %10 = vector.load %arg6[%c1, %c1_17, %c0_18] : memref<18x18x64xf32, #tpu.memory_space<vmem>>, vector<16x16x64xf32>
    tpu.vector_store %arg6[%c1, %c1_17, %c0_18], %1 {strides = array<i32>} : memref<18x18x64xf32, #tpu.memory_space<vmem>>, vector<16x16x64xf32>,
    %cst_19 = arith.constant 0.000000e+00 : f32
    %11 = vector.broadcast %cst_19 : f32 to vector<16x16x64xf32>
    %c0_20 = arith.constant 0 : index
    %c0_21 = arith.constant 0 : index
    %c0_22 = arith.constant 0 : index
    %12 = vector.load %arg6[%c0_20, %c0_21, %c0_22] : memref<18x18x64xf32, #tpu.memory_space<vmem>>, vector<16x16x64xf32>
    %c0_23 = arith.constant 0 : index
    %c0_24 = arith.constant 0 : index
    %c0_25 = arith.constant 0 : index
    %13 = vector.load %arg2[%c0_23, %c0_24, %c0_25] : memref<9x1x64xf32, #tpu.memory_space<vmem>>, vector<1x1x64xf32>
    %14 = vector.shape_cast %13 : vector<1x1x64xf32> to vector<1x64xf32>
    %15 = vector.shape_cast %14 : vector<1x64xf32> to vector<1x1x64xf32>
    %16 = vector.broadcast %15 : vector<1x1x64xf32> to vector<16x16x64xf32>
    %17 = arith.mulf %12, %16 : vector<16x16x64xf32>
    %18 = arith.addf %11, %17 : vector<16x16x64xf32>
    %c0_26 = arith.constant 0 : index
    %c1_27 = arith.constant 1 : index
    %c0_28 = arith.constant 0 : index
    %19 = vector.load %arg6[%c0_26, %c1_27, %c0_28] : memref<18x18x64xf32, #tpu.memory_space<vmem>>, vector<16x16x64xf32>
    %c1_29 = arith.constant 1 : index
    %c0_30 = arith.constant 0 : index
    %c0_31 = arith.constant 0 : index
    %20 = vector.load %arg2[%c1_29, %c0_30, %c0_31] : memref<9x1x64xf32, #tpu.memory_space<vmem>>, vector<1x1x64xf32>
    %21 = vector.shape_cast %20 : vector<1x1x64xf32> to vector<1x64xf32>
    %22 = vector.shape_cast %21 : vector<1x64xf32> to vector<1x1x64xf32>
    %23 = vector.broadcast %22 : vector<1x1x64xf32> to vector<16x16x64xf32>
    %24 = arith.mulf %19, %23 : vector<16x16x64xf32>
    %25 = arith.addf %18, %24 : vector<16x16x64xf32>
    %c0_32 = arith.constant 0 : index
    %c2 = arith.constant 2 : index
    %c0_33 = arith.constant 0 : index
    %26 = vector.load %arg6[%c0_32, %c2, %c0_33] : memref<18x18x64xf32, #tpu.memory_space<vmem>>, vector<16x16x64xf32>
    %c2_34 = arith.constant 2 : index
    %c0_35 = arith.constant 0 : index
    %c0_36 = arith.constant 0 : index
    %27 = vector.load %arg2[%c2_34, %c0_35, %c0_36] : memref<9x1x64xf32, #tpu.memory_space<vmem>>, vector<1x1x64xf32>
    %28 = vector.shape_cast %27 : vector<1x1x64xf32> to vector<1x64xf32>
    %29 = vector.shape_cast %28 : vector<1x64xf32> to vector<1x1x64xf32>
    %30 = vector.broadcast %29 : vector<1x1x64xf32> to vector<16x16x64xf32>
    %31 = arith.mulf %26, %30 : vector<16x16x64xf32>
    %32 = arith.addf %25, %31 : vector<16x16x64xf32>
    %c1_37 = arith.constant 1 : index
    %c0_38 = arith.constant 0 : index
    %c0_39 = arith.constant 0 : index
    %33 = vector.load %arg6[%c1_37, %c0_38, %c0_39] : memref<18x18x64xf32, #tpu.memory_space<vmem>>, vector<16x16x64xf32>
    %c3 = arith.constant 3 : index
    %c0_40 = arith.constant 0 : index
    %c0_41 = arith.constant 0 : index
    %34 = vector.load %arg2[%c3, %c0_40, %c0_41] : memref<9x1x64xf32, #tpu.memory_space<vmem>>, vector<1x1x64xf32>
    %35 = vector.shape_cast %34 : vector<1x1x64xf32> to vector<1x64xf32>
    %36 = vector.shape_cast %35 : vector<1x64xf32> to vector<1x1x64xf32>
    %37 = vector.broadcast %36 : vector<1x1x64xf32> to vector<16x16x64xf32>
    %38 = arith.mulf %33, %37 : vector<16x16x64xf32>
    %39 = arith.addf %32, %38 : vector<16x16x64xf32>
    %c1_42 = arith.constant 1 : index
    %c1_43 = arith.constant 1 : index
    %c0_44 = arith.constant 0 : index
    %40 = vector.load %arg6[%c1_42, %c1_43, %c0_44] : memref<18x18x64xf32, #tpu.memory_space<vmem>>, vector<16x16x64xf32>
    %c4 = arith.constant 4 : index
    %c0_45 = arith.constant 0 : index
    %c0_46 = arith.constant 0 : index
    %41 = vector.load %arg2[%c4, %c0_45, %c0_46] : memref<9x1x64xf32, #tpu.memory_space<vmem>>, vector<1x1x64xf32>
    %42 = vector.shape_cast %41 : vector<1x1x64xf32> to vector<1x64xf32>
    %43 = vector.shape_cast %42 : vector<1x64xf32> to vector<1x1x64xf32>
    %44 = vector.broadcast %43 : vector<1x1x64xf32> to vector<16x16x64xf32>
    %45 = arith.mulf %40, %44 : vector<16x16x64xf32>
    %46 = arith.addf %39, %45 : vector<16x16x64xf32>
    %c1_47 = arith.constant 1 : index
    %c2_48 = arith.constant 2 : index
    %c0_49 = arith.constant 0 : index
    %47 = vector.load %arg6[%c1_47, %c2_48, %c0_49] : memref<18x18x64xf32, #tpu.memory_space<vmem>>, vector<16x16x64xf32>
    %c5 = arith.constant 5 : index
    %c0_50 = arith.constant 0 : index
    %c0_51 = arith.constant 0 : index
    %48 = vector.load %arg2[%c5, %c0_50, %c0_51] : memref<9x1x64xf32, #tpu.memory_space<vmem>>, vector<1x1x64xf32>
    %49 = vector.shape_cast %48 : vector<1x1x64xf32> to vector<1x64xf32>
    %50 = vector.shape_cast %49 : vector<1x64xf32> to vector<1x1x64xf32>
    %51 = vector.broadcast %50 : vector<1x1x64xf32> to vector<16x16x64xf32>
    %52 = arith.mulf %47, %51 : vector<16x16x64xf32>
    %53 = arith.addf %46, %52 : vector<16x16x64xf32>
    %c2_52 = arith.constant 2 : index
    %c0_53 = arith.constant 0 : index
    %c0_54 = arith.constant 0 : index
    %54 = vector.load %arg6[%c2_52, %c0_53, %c0_54] : memref<18x18x64xf32, #tpu.memory_space<vmem>>, vector<16x16x64xf32>
    %c6 = arith.constant 6 : index
    %c0_55 = arith.constant 0 : index
    %c0_56 = arith.constant 0 : index
    %55 = vector.load %arg2[%c6, %c0_55, %c0_56] : memref<9x1x64xf32, #tpu.memory_space<vmem>>, vector<1x1x64xf32>
    %56 = vector.shape_cast %55 : vector<1x1x64xf32> to vector<1x64xf32>
    %57 = vector.shape_cast %56 : vector<1x64xf32> to vector<1x1x64xf32>
    %58 = vector.broadcast %57 : vector<1x1x64xf32> to vector<16x16x64xf32>
    %59 = arith.mulf %54, %58 : vector<16x16x64xf32>
    %60 = arith.addf %53, %59 : vector<16x16x64xf32>
    %c2_57 = arith.constant 2 : index
    %c1_58 = arith.constant 1 : index
    %c0_59 = arith.constant 0 : index
    %61 = vector.load %arg6[%c2_57, %c1_58, %c0_59] : memref<18x18x64xf32, #tpu.memory_space<vmem>>, vector<16x16x64xf32>
    %c7 = arith.constant 7 : index
    %c0_60 = arith.constant 0 : index
    %c0_61 = arith.constant 0 : index
    %62 = vector.load %arg2[%c7, %c0_60, %c0_61] : memref<9x1x64xf32, #tpu.memory_space<vmem>>, vector<1x1x64xf32>
    %63 = vector.shape_cast %62 : vector<1x1x64xf32> to vector<1x64xf32>
    %64 = vector.shape_cast %63 : vector<1x64xf32> to vector<1x1x64xf32>
    %65 = vector.broadcast %64 : vector<1x1x64xf32> to vector<16x16x64xf32>
    %66 = arith.mulf %61, %65 : vector<16x16x64xf32>
    %67 = arith.addf %60, %66 : vector<16x16x64xf32>
    %c2_62 = arith.constant 2 : index
    %c2_63 = arith.constant 2 : index
    %c0_64 = arith.constant 0 : index
    %68 = vector.load %arg6[%c2_62, %c2_63, %c0_64] : memref<18x18x64xf32, #tpu.memory_space<vmem>>, vector<16x16x64xf32>
    %c8 = arith.constant 8 : index
    %c0_65 = arith.constant 0 : index
    %c0_66 = arith.constant 0 : index
    %69 = vector.load %arg2[%c8, %c0_65, %c0_66] : memref<9x1x64xf32, #tpu.memory_space<vmem>>, vector<1x1x64xf32>
    %70 = vector.shape_cast %69 : vector<1x1x64xf32> to vector<1x64xf32>
    %71 = vector.shape_cast %70 : vector<1x64xf32> to vector<1x1x64xf32>
    %72 = vector.broadcast %71 : vector<1x1x64xf32> to vector<16x16x64xf32>
    %73 = arith.mulf %68, %72 : vector<16x16x64xf32>
    %74 = arith.addf %67, %73 : vector<16x16x64xf32>
    %cst_67 = arith.constant 0.000000e+00 : f32
    %75 = vector.broadcast %cst_67 : f32 to vector<16x16x64xf32>
    %76 = arith.maximumf %74, %75 : vector<16x16x64xf32>
    %c1_68 = arith.constant 1 : index
    %c1_69 = arith.constant 1 : index
    %c0_70 = arith.constant 0 : index
    %77 = vector.load %arg6[%c1_68, %c1_69, %c0_70] : memref<18x18x64xf32, #tpu.memory_space<vmem>>, vector<16x16x64xf32>
    tpu.vector_store %arg6[%c1_68, %c1_69, %c0_70], %76 {strides = array<i32>} : memref<18x18x64xf32, #tpu.memory_space<vmem>>, vector<16x16x64xf32>,
    %c0_71 = arith.constant 0 : index
    %c0_72 = arith.constant 0 : index
    %c0_73 = arith.constant 0 : index
    %78 = vector.load %arg6[%c0_71, %c0_72, %c0_73] : memref<18x18x64xf32, #tpu.memory_space<vmem>>, vector<16x16x64xf32>
    %79 = vector.shape_cast %78 : vector<16x16x64xf32> to vector<256x64xf32>
    %80 = arith.truncf %79 : vector<256x64xf32> to vector<256x64xbf16>
    %c0_74 = arith.constant 0 : index
    %c0_75 = arith.constant 0 : index
    %81 = vector.load %arg7[%c0_74, %c0_75] : memref<256x576xbf16, #tpu.memory_space<vmem>>, vector<256x64xbf16>
    tpu.vector_store %arg7[%c0_74, %c0_75], %80 {strides = array<i32>} : memref<256x576xbf16, #tpu.memory_space<vmem>>, vector<256x64xbf16>,
    %c0_76 = arith.constant 0 : index
    %c1_77 = arith.constant 1 : index
    %c0_78 = arith.constant 0 : index
    %82 = vector.load %arg6[%c0_76, %c1_77, %c0_78] : memref<18x18x64xf32, #tpu.memory_space<vmem>>, vector<16x16x64xf32>
    %83 = vector.shape_cast %82 : vector<16x16x64xf32> to vector<256x64xf32>
    %84 = arith.truncf %83 : vector<256x64xf32> to vector<256x64xbf16>
    %c0_79 = arith.constant 0 : index
    %c64 = arith.constant 64 : index
    %85 = vector.load %arg7[%c0_79, %c64] : memref<256x576xbf16, #tpu.memory_space<vmem>>, vector<256x64xbf16>
    tpu.vector_store %arg7[%c0_79, %c64], %84 {strides = array<i32>} : memref<256x576xbf16, #tpu.memory_space<vmem>>, vector<256x64xbf16>,
    %c0_80 = arith.constant 0 : index
    %c2_81 = arith.constant 2 : index
    %c0_82 = arith.constant 0 : index
    %86 = vector.load %arg6[%c0_80, %c2_81, %c0_82] : memref<18x18x64xf32, #tpu.memory_space<vmem>>, vector<16x16x64xf32>
    %87 = vector.shape_cast %86 : vector<16x16x64xf32> to vector<256x64xf32>
    %88 = arith.truncf %87 : vector<256x64xf32> to vector<256x64xbf16>
    %c0_83 = arith.constant 0 : index
    %c128 = arith.constant 128 : index
    %89 = vector.load %arg7[%c0_83, %c128] : memref<256x576xbf16, #tpu.memory_space<vmem>>, vector<256x64xbf16>
    tpu.vector_store %arg7[%c0_83, %c128], %88 {strides = array<i32>} : memref<256x576xbf16, #tpu.memory_space<vmem>>, vector<256x64xbf16>,
    %c1_84 = arith.constant 1 : index
    %c0_85 = arith.constant 0 : index
    %c0_86 = arith.constant 0 : index
    %90 = vector.load %arg6[%c1_84, %c0_85, %c0_86] : memref<18x18x64xf32, #tpu.memory_space<vmem>>, vector<16x16x64xf32>
    %91 = vector.shape_cast %90 : vector<16x16x64xf32> to vector<256x64xf32>
    %92 = arith.truncf %91 : vector<256x64xf32> to vector<256x64xbf16>
    %c0_87 = arith.constant 0 : index
    %c192 = arith.constant 192 : index
    %93 = vector.load %arg7[%c0_87, %c192] : memref<256x576xbf16, #tpu.memory_space<vmem>>, vector<256x64xbf16>
    tpu.vector_store %arg7[%c0_87, %c192], %92 {strides = array<i32>} : memref<256x576xbf16, #tpu.memory_space<vmem>>, vector<256x64xbf16>,
    %c1_88 = arith.constant 1 : index
    %c1_89 = arith.constant 1 : index
    %c0_90 = arith.constant 0 : index
    %94 = vector.load %arg6[%c1_88, %c1_89, %c0_90] : memref<18x18x64xf32, #tpu.memory_space<vmem>>, vector<16x16x64xf32>
    %95 = vector.shape_cast %94 : vector<16x16x64xf32> to vector<256x64xf32>
    %96 = arith.truncf %95 : vector<256x64xf32> to vector<256x64xbf16>
    %c0_91 = arith.constant 0 : index
    %c256 = arith.constant 256 : index
    %97 = vector.load %arg7[%c0_91, %c256] : memref<256x576xbf16, #tpu.memory_space<vmem>>, vector<256x64xbf16>
    tpu.vector_store %arg7[%c0_91, %c256], %96 {strides = array<i32>} : memref<256x576xbf16, #tpu.memory_space<vmem>>, vector<256x64xbf16>,
    %c1_92 = arith.constant 1 : index
    %c2_93 = arith.constant 2 : index
    %c0_94 = arith.constant 0 : index
    %98 = vector.load %arg6[%c1_92, %c2_93, %c0_94] : memref<18x18x64xf32, #tpu.memory_space<vmem>>, vector<16x16x64xf32>
    %99 = vector.shape_cast %98 : vector<16x16x64xf32> to vector<256x64xf32>
    %100 = arith.truncf %99 : vector<256x64xf32> to vector<256x64xbf16>
    %c0_95 = arith.constant 0 : index
    %c320 = arith.constant 320 : index
    %101 = vector.load %arg7[%c0_95, %c320] : memref<256x576xbf16, #tpu.memory_space<vmem>>, vector<256x64xbf16>
    tpu.vector_store %arg7[%c0_95, %c320], %100 {strides = array<i32>} : memref<256x576xbf16, #tpu.memory_space<vmem>>, vector<256x64xbf16>,
    %c2_96 = arith.constant 2 : index
    %c0_97 = arith.constant 0 : index
    %c0_98 = arith.constant 0 : index
    %102 = vector.load %arg6[%c2_96, %c0_97, %c0_98] : memref<18x18x64xf32, #tpu.memory_space<vmem>>, vector<16x16x64xf32>
    %103 = vector.shape_cast %102 : vector<16x16x64xf32> to vector<256x64xf32>
    %104 = arith.truncf %103 : vector<256x64xf32> to vector<256x64xbf16>
    %c0_99 = arith.constant 0 : index
    %c384 = arith.constant 384 : index
    %105 = vector.load %arg7[%c0_99, %c384] : memref<256x576xbf16, #tpu.memory_space<vmem>>, vector<256x64xbf16>
    tpu.vector_store %arg7[%c0_99, %c384], %104 {strides = array<i32>} : memref<256x576xbf16, #tpu.memory_space<vmem>>, vector<256x64xbf16>,
    %c2_100 = arith.constant 2 : index
    %c1_101 = arith.constant 1 : index
    %c0_102 = arith.constant 0 : index
    %106 = vector.load %arg6[%c2_100, %c1_101, %c0_102] : memref<18x18x64xf32, #tpu.memory_space<vmem>>, vector<16x16x64xf32>
    %107 = vector.shape_cast %106 : vector<16x16x64xf32> to vector<256x64xf32>
    %108 = arith.truncf %107 : vector<256x64xf32> to vector<256x64xbf16>
    %c0_103 = arith.constant 0 : index
    %c448 = arith.constant 448 : index
    %109 = vector.load %arg7[%c0_103, %c448] : memref<256x576xbf16, #tpu.memory_space<vmem>>, vector<256x64xbf16>
    tpu.vector_store %arg7[%c0_103, %c448], %108 {strides = array<i32>} : memref<256x576xbf16, #tpu.memory_space<vmem>>, vector<256x64xbf16>,
    %c2_104 = arith.constant 2 : index
    %c2_105 = arith.constant 2 : index
    %c0_106 = arith.constant 0 : index
    %110 = vector.load %arg6[%c2_104, %c2_105, %c0_106] : memref<18x18x64xf32, #tpu.memory_space<vmem>>, vector<16x16x64xf32>
    %111 = vector.shape_cast %110 : vector<16x16x64xf32> to vector<256x64xf32>
    %112 = arith.truncf %111 : vector<256x64xf32> to vector<256x64xbf16>
    %c0_107 = arith.constant 0 : index
    %c512 = arith.constant 512 : index
    %113 = vector.load %arg7[%c0_107, %c512] : memref<256x576xbf16, #tpu.memory_space<vmem>>, vector<256x64xbf16>
    tpu.vector_store %arg7[%c0_107, %c512], %112 {strides = array<i32>} : memref<256x576xbf16, #tpu.memory_space<vmem>>, vector<256x64xbf16>,
    %c0_108 = arith.constant 0 : index
    %c0_109 = arith.constant 0 : index
    %114 = vector.load %arg7[%c0_108, %c0_109] : memref<256x576xbf16, #tpu.memory_space<vmem>>, vector<256x576xbf16>
    %c0_110 = arith.constant 0 : index
    %c0_111 = arith.constant 0 : index
    %115 = vector.load %arg3[%c0_110, %c0_111] : memref<576x64xbf16, #tpu.memory_space<vmem>>, vector<576x64xbf16>
    %cst_112 = arith.constant dense<0.000000e+00> : vector<256x64xf32>
    %116 = tpu.matmul %114, %115, %cst_112 {dimension_numbers = #tpu.dot_dimension_numbers<[1], [0], [0], [1], [0, 0, 1, 1], [], []>} : vector<256x576xbf16>, vector<576x64xbf16>, vector<256x64xf32> -> vector<256x64xf32>
    %c0_113 = arith.constant 0 : index
    %c0_114 = arith.constant 0 : index
    %117 = vector.load %arg4[%c0_113, %c0_114] : memref<1x64xf32, #tpu.memory_space<vmem>>, vector<1x64xf32>
    %118 = vector.broadcast %117 : vector<1x64xf32> to vector<256x64xf32>
    %119 = arith.addf %116, %118 : vector<256x64xf32>
    %120 = vector.shape_cast %119 : vector<256x64xf32> to vector<16x16x64xf32>
    %121 = arith.addf %120, %1 : vector<16x16x64xf32>
    %c0_115 = arith.constant 0 : index
    %c0_116 = arith.constant 0 : index
    %c0_117 = arith.constant 0 : index
    %c0_118 = arith.constant 0 : index
    %122 = vector.load %arg5[%c0_115, %c0_116, %c0_117, %c0_118] : memref<1x16x16x64xf32, #tpu.memory_space<vmem>>, vector<1x16x16x64xf32>
    %123 = vector.shape_cast %122 : vector<1x16x16x64xf32> to vector<16x16x64xf32>
    %124 = vector.shape_cast %121 : vector<16x16x64xf32> to vector<1x16x16x64xf32>
    tpu.vector_store %arg5[%c0_115, %c0_116, %c0_117, %c0_118], %124 {strides = array<i32>} : memref<1x16x16x64xf32, #tpu.memory_space<vmem>>, vector<1x16x16x64xf32>,
    return
  }
  func.func @transform_0(%arg0: i32) -> (i32, i32, i32, i32) {
    %c0_i32 = arith.constant 0 : i32
    %c0_i32_0 = arith.constant 0 : i32
    %c0_i32_1 = arith.constant 0 : i32
    %c0_i32_2 = arith.constant 0 : i32
    return %arg0, %c0_i32, %c0_i32_0, %c0_i32_1 : i32, i32, i32, i32
  }
  func.func @transform_1(%arg0: i32) -> (i32, i32, i32) {
    %c0_i32 = arith.constant 0 : i32
    %c0_i32_0 = arith.constant 0 : i32
    %c0_i32_1 = arith.constant 0 : i32
    %c0_i32_2 = arith.constant 0 : i32
    return %c0_i32, %c0_i32_0, %c0_i32_1 : i32, i32, i32
  }
  func.func @transform_2(%arg0: i32) -> (i32, i32) {
    %c0_i32 = arith.constant 0 : i32
    %c0_i32_0 = arith.constant 0 : i32
    %c0_i32_1 = arith.constant 0 : i32
    return %c0_i32, %c0_i32_0 : i32, i32
  }
  func.func @transform_3(%arg0: i32) -> (i32, i32) {
    %c0_i32 = arith.constant 0 : i32
    %c0_i32_0 = arith.constant 0 : i32
    %c0_i32_1 = arith.constant 0 : i32
    return %c0_i32, %c0_i32_0 : i32, i32
  }
  func.func @transform_4(%arg0: i32) -> (i32, i32, i32, i32) {
    %c0_i32 = arith.constant 0 : i32
    %c0_i32_0 = arith.constant 0 : i32
    %c0_i32_1 = arith.constant 0 : i32
    %c0_i32_2 = arith.constant 0 : i32
    return %arg0, %c0_i32, %c0_i32_0, %c0_i32_1 : i32, i32, i32, i32
  }
}

</mosaic_0001>

<llo_original>
// kernel: tpu_custom_call.1
$region0: #{tpu_custom_call.1}
  #allocation0 [shape = 'u32[]', space=smem, size = 0x4, offset = 0x4, fixed_abs, tag = 'smem constant byte address 0x4 - core index']
  #allocation1 [shape = 'u32[144,128]{1,0:T(1,128)}', space=vmem, size = 0x12000, scoped, tag = 'internal scratch']
  #allocation2 [shape = 'f32[18,18,64]{2,1,0:T(8,128)}', space=vmem, size = 0x36000, scoped, tag = 'scratch operand']
  #allocation3 [shape = 'bf16[256,576]{1,0:T(16,128)(2,1)}', space=vmem, size = 0x50000, scoped, tag = 'scratch operand']
  %s0 = inlined_call_operand.hbm [shape: f32[2,16,16,64], index: 0, kind: input, shape index: {}]
  %s1 = inlined_call_operand.vmem [shape: f32[9,1,64], index: 1, kind: input, shape index: {}]
  %s2 = inlined_call_operand.vmem [shape: bf16[576,64], index: 2, kind: input, shape index: {}]
  %s3 = inlined_call_operand.vmem [shape: f32[1,64], index: 3, kind: input, shape index: {}]
  %s4 = inlined_call_operand.hbm [shape: f32[2,16,16,64], index: 4, kind: output, shape index: {}]
  %s5 = sld [smem:[#allocation0]]
  $region53: #{tpu_custom_call.1} parent=0
    _
  %s7 = ssub.s32 1, %s5
  %s8 = scalar_select 0, %s7, %s5
  $region1: #{tpu_custom_call.1} parent=0
    #allocation4 [shape = 'u8[262144]{0}', space=vmem, size = 0x40000, scoped, tag = 'input window, operand 0']
    #allocation5 [shape = 's32[2]{0}', space=sflag, size = 0x8, scoped, tag = 'scoped memory for tpu_custom_call.1']
    #allocation6 [shape = 's32[2]{0}', space=sflag, size = 0x8, scoped, tag = 'scoped memory for tpu_custom_call.1']
    #allocation7 [shape = 'u8[262144]{0}', space=vmem, size = 0x40000, scoped, tag = 'output window, operand 0']
    %9 = vsyncpa [#allocation5], 0
    %s10 = scalar_lea.sflag [#allocation5], 1
    %11 = vsyncpa %s10, 0
    %12 = vsyncpa [#allocation6], 0
    %s13 = scalar_lea.sflag [#allocation6], 1
    %14 = vsyncpa %s13, 0
    loop: start=0, step=1, limit=4
    $region2: #{tpu_custom_call.1} parent=1 // loop_pre_header
      _
    $region3: #{tpu_custom_call.1} parent=1 // loop_header
      %s16 = sphi 0, %s20
      %p17 = scmp.ge.s32.totalorder %s16, 4
      %s26 = sphi 0, %s28
      %s29 = sphi 0, %s26
      %s30 = sphi 0, %s29
      %s46 = sphi 0, %s30
      %s50 = sphi 0, %s50
      %s52 = sphi 0, %s50
      %s53 = sphi 0, %s52
      %s67 = sphi 0, %s53
      %s71 = sphi 0, %s71
      %s73 = sphi 0, %s71
      %s74 = sphi 0, %s73
      %s88 = sphi 0, %s74
      %s92 = sphi 0, %s92
      %s94 = sphi 0, %s92
      %s95 = sphi 0, %s94
      %s109 = sphi 0, %s95
      %s115 = sphi 0, %s117
      %s118 = sphi 0, %s115
      %s119 = sphi 0, %s118
      %s135 = sphi 0, %s119
    $region4: #{tpu_custom_call.1} parent=1 // loop_header_branch
      %19 = sbr.rel (%p17) target = $region8
    $region5: #{tpu_custom_call.1} parent=1 // loop_body
      %s21 = ssub.s32 %s16, 1
      %s22 = ssub.s32 %s16, 2
      %s23 = sadd.s32 %s16, 1
      %s24 = ssub.s32 %s16, %s23
      %p25 = scmp.eq.s32.totalorder %s24, 0
      %s27 = sadd.s32 %s26, 1
      %s28 = scalar_select %p25, %s26, %s27
      %p31 = pneg %p25
      %p32 = scmp.eq.s32.totalorder %s16, 1
      %p33 = por %p31, %p32
      %p34 = scmp.ne.s32.totalorder %s26, %s29
      %p35 = scmp.eq.s32.totalorder %s16, 0
      %p36 = por %p34, %p35
      %p37 = scmp.ne.s32.totalorder %s26, %s29
      %p38 = scmp.eq.s32.totalorder %s21, 1
      %p39 = por %p37, %p38
      %p40 = scmp.ne.s32.totalorder %s29, %s30
      %p41 = scmp.eq.s32.totalorder %s21, 0
      %p42 = por %p40, %p41
      %p43 = scmp.ne.s32.totalorder %s29, %s30
      %p44 = scmp.eq.s32.totalorder %s22, 1
      %p45 = por %p43, %p44
      %p47 = scmp.ne.s32.totalorder %s30, %s46
      %p48 = scmp.eq.s32.totalorder %s22, 0
      %p49 = por %p47, %p48
      %s51 = sadd.s32 %s50, 1
      %p54 = scmp.eq.s32.totalorder %s16, 1
      %p55 = scmp.ne.s32.totalorder %s50, %s52
      %p56 = scmp.eq.s32.totalorder %s16, 0
      %p57 = por %p55, %p56
      %p58 = scmp.ne.s32.totalorder %s50, %s52
      %p59 = scmp.eq.s32.totalorder %s21, 1
      %p60 = por %p58, %p59
      %p61 = scmp.ne.s32.totalorder %s52, %s53
      %p62 = scmp.eq.s32.totalorder %s21, 0
      %p63 = por %p61, %p62
      %p64 = scmp.ne.s32.totalorder %s52, %s53
      %p65 = scmp.eq.s32.totalorder %s22, 1
      %p66 = por %p64, %p65
      %p68 = scmp.ne.s32.totalorder %s53, %s67
      %p69 = scmp.eq.s32.totalorder %s22, 0
      %p70 = por %p68, %p69
      %s72 = sadd.s32 %s71, 1
      %p75 = scmp.eq.s32.totalorder %s16, 1
      %p76 = scmp.ne.s32.totalorder %s71, %s73
      %p77 = scmp.eq.s32.totalorder %s16, 0
      %p78 = por %p76, %p77
      %p79 = scmp.ne.s32.totalorder %s71, %s73
      %p80 = scmp.eq.s32.totalorder %s21, 1
      %p81 = por %p79, %p80
      %p82 = scmp.ne.s32.totalorder %s73, %s74
      %p83 = scmp.eq.s32.totalorder %s21, 0
      %p84 = por %p82, %p83
      %p85 = scmp.ne.s32.totalorder %s73, %s74
      %p86 = scmp.eq.s32.totalorder %s22, 1
      %p87 = por %p85, %p86
      %p89 = scmp.ne.s32.totalorder %s74, %s88
      %p90 = scmp.eq.s32.totalorder %s22, 0
      %p91 = por %p89, %p90
      %s93 = sadd.s32 %s92, 1
      %p96 = scmp.eq.s32.totalorder %s16, 1
      %p97 = scmp.ne.s32.totalorder %s92, %s94
      %p98 = scmp.eq.s32.totalorder %s16, 0
      %p99 = por %p97, %p98
      %p100 = scmp.ne.s32.totalorder %s92, %s94
      %p101 = scmp.eq.s32.totalorder %s21, 1
      %p102 = por %p100, %p101
      %p103 = scmp.ne.s32.totalorder %s94, %s95
      %p104 = scmp.eq.s32.totalorder %s21, 0
      %p105 = por %p103, %p104
      %p106 = scmp.ne.s32.totalorder %s94, %s95
      %p107 = scmp.eq.s32.totalorder %s22, 1
      %p108 = por %p106, %p107
      %p110 = scmp.ne.s32.totalorder %s95, %s109
      %p111 = scmp.eq.s32.totalorder %s22, 0
      %p112 = por %p110, %p111
      %s113 = ssub.s32 %s16, %s23
      %p114 = scmp.eq.s32.totalorder %s113, 0
      %s116 = sadd.s32 %s115, 1
      %s117 = scalar_select %p114, %s115, %s116
      %p120 = pneg %p114
      %p121 = scmp.eq.s32.totalorder %s16, 1
      %p122 = por %p120, %p121
      %p123 = scmp.ne.s32.totalorder %s115, %s118
      %p124 = scmp.eq.s32.totalorder %s16, 0
      %p125 = por %p123, %p124
      %p126 = scmp.ne.s32.totalorder %s115, %s118
      %p127 = scmp.eq.s32.totalorder %s21, 1
      %p128 = por %p126, %p127
      %p129 = scmp.ne.s32.totalorder %s118, %s119
      %p130 = scmp.eq.s32.totalorder %s21, 0
      %p131 = por %p129, %p130
      %p132 = scmp.ne.s32.totalorder %s118, %s119
      %p133 = scmp.eq.s32.totalorder %s22, 1
      %p134 = por %p132, %p133
      %p136 = scmp.ne.s32.totalorder %s119, %s135
      %p137 = scmp.eq.s32.totalorder %s22, 0
      %p138 = por %p136, %p137
      %p139 = scmp.le.s32.totalorder 1, %s16
      %p140 = scmp.lt.s32.totalorder %s16, 3
      %p141 = pnand %p139, %p140
      %p142 = pneg %p141
      // Predicated region
      $region9: #{tpu_custom_call.1} parent=5 // pred_check
        _
      $region10: #{tpu_custom_call.1} parent=5 // pred_check_branch
        %144 = sbr.rel (%p141) target = $region12
      $region11: #{tpu_custom_call.1} parent=5 // pred_region
        %s145 = ssub.s32 %s16, 1
        // Predicated region
        $region13: #{tpu_custom_call.1} parent=11 // pred_check
          %p146 = pneg %p63
        $region14: #{tpu_custom_call.1} parent=11 // pred_check_branch
          %148 = sbr.rel (%p146) target = $region16
        $region15: #{tpu_custom_call.1} parent=11 // pred_region
          _
        $region16: #{tpu_custom_call.1} parent=11 // pred_fallthru
          _
        // Predicated region
        $region17: #{tpu_custom_call.1} parent=11 // pred_check
          %p149 = pneg %p84
        $region18: #{tpu_custom_call.1} parent=11 // pred_check_branch
          %151 = sbr.rel (%p149) target = $region20
        $region19: #{tpu_custom_call.1} parent=11 // pred_region
          _
        $region20: #{tpu_custom_call.1} parent=11 // pred_fallthru
          _
        // Predicated region
        $region21: #{tpu_custom_call.1} parent=11 // pred_check
          %p152 = pneg %p105
        $region22: #{tpu_custom_call.1} parent=11 // pred_check_branch
          %154 = sbr.rel (%p152) target = $region24
        $region23: #{tpu_custom_call.1} parent=11 // pred_region
          _
        $region24: #{tpu_custom_call.1} parent=11 // pred_fallthru
          _
      $region12: #{tpu_custom_call.1} parent=5 // pred_fallthru
        _
      %p155 = scmp.lt.s32.totalorder %s16, 2
      // Predicated region
      $region25: #{tpu_custom_call.1} parent=5 // pred_check
        %p156 = pneg %p155
      $region26: #{tpu_custom_call.1} parent=5 // pred_check_branch
        %158 = sbr.rel (%p156) target = $region28
      $region27: #{tpu_custom_call.1} parent=5 // pred_region
        // Predicated region
        $region29: #{tpu_custom_call.1} parent=27 // pred_check
          %p159 = pneg %p36
        $region30: #{tpu_custom_call.1} parent=27 // pred_check_branch
          %161 = sbr.rel (%p159) target = $region32
        $region31: #{tpu_custom_call.1} parent=27 // pred_region
          %s162 = sand.u32 %s26, 1
          %s163 = scalar_lea.sflag [#allocation5], %s162
          %s164 = sand.u32 %s26, 1
          %s165 = smul.addr %s164, 256
          %s166 = scalar_lea.vmem [#allocation4], %s165
          %s168 = ssub.s32 4096, 4096
          %169 = vsyncadd %s163, %s168
          %s170 = smul.addr %s16, 32
          %s171 = smul.addr %s170, 128
          %s172 = scalar_lea.hbm %s0, %s171
          %s173 = sshll.u32 %s166, 4
          %s174 = int_to_ptr.vmem [resolvable:$true] %s173
          %179 = dma.hbm_to_vmem [thread:$0]  %s172, 4096, %s174, %s163, 128, 128, 8
        $region32: #{tpu_custom_call.1} parent=27 // pred_fallthru
          _
      $region28: #{tpu_custom_call.1} parent=5 // pred_fallthru
        _
      %p180 = scmp.le.s32.totalorder 1, %s16
      %p181 = scmp.lt.s32.totalorder %s16, 3
      %p182 = pnand %p180, %p181
      %p183 = pneg %p182
      // Predicated region
      $region33: #{tpu_custom_call.1} parent=5 // pred_check
        _
      $region34: #{tpu_custom_call.1} parent=5 // pred_check_branch
        %185 = sbr.rel (%p182) target = $region36
      $region35: #{tpu_custom_call.1} parent=5 // pred_region
        %s186 = ssub.s32 %s16, 1
        %s187 = sand.u32 %s29, 1
        %s188 = scalar_lea.sflag [#allocation5], %s187
        %s189 = sand.u32 %s29, 1
        %s190 = smul.addr %s189, 256
        %s191 = scalar_lea.vmem [#allocation4], %s190
        // Predicated region
        $region37: #{tpu_custom_call.1} parent=35 // pred_check
          %p192 = pneg %p42
        $region38: #{tpu_custom_call.1} parent=35 // pred_check_branch
          %194 = sbr.rel (%p192) target = $region40
        $region39: #{tpu_custom_call.1} parent=35 // pred_region
          %195 = dma.done %s188, 4096
        $region40: #{tpu_custom_call.1} parent=35 // pred_fallthru
          _
        %s196 = sand.u32 %s29, 1
        %s197 = scalar_lea.sflag [#allocation5], %s196
        %s198 = sand.u32 %s29, 1
        %s199 = smul.addr %s198, 256
        %s200 = scalar_lea.vmem [#allocation4], %s199
        %p201 = pneg %p42
        %p202 = pneg %p39
        %p203 = pneg %p63
        %p204 = pneg %p60
        %p205 = pneg %p84
        %p206 = pneg %p81
        %p207 = pneg %p105
        %p208 = pneg %p102
        %p209 = pneg %p131
        %p210 = pneg %p128
        %s211 = sand.u32 %s118, 1
        %s212 = scalar_lea.sflag [#allocation6], %s211
        %s213 = sand.u32 %s118, 1
        %s214 = smul.addr %s213, 256
        %s215 = scalar_lea.vmem [#allocation7], %s214
        %v217 = vld [vmem:[%s191] sm:$0xff]
        %v218 = vld [vmem:[%s191 + $0x8] sm:$0xff]
        %v219 = vld [vmem:[%s191 + $0x10] sm:$0xff]
        %v220 = vld [vmem:[%s191 + $0x18] sm:$0xff]
        %v221 = vld [vmem:[%s191 + $0x20] sm:$0xff]
        %v222 = vld [vmem:[%s191 + $0x28] sm:$0xff]
        %v223 = vld [vmem:[%s191 + $0x30] sm:$0xff]
        %v224 = vld [vmem:[%s191 + $0x38] sm:$0xff]
        %v225 = vld [vmem:[%s191 + $0x40] sm:$0xff]
        %v226 = vld [vmem:[%s191 + $0x48] sm:$0xff]
        %v227 = vld [vmem:[%s191 + $0x50] sm:$0xff]
        %v228 = vld [vmem:[%s191 + $0x58] sm:$0xff]
        %v229 = vld [vmem:[%s191 + $0x60] sm:$0xff]
        %v230 = vld [vmem:[%s191 + $0x68] sm:$0xff]
        %v231 = vld [vmem:[%s191 + $0x70] sm:$0xff]
        %v232 = vld [vmem:[%s191 + $0x78] sm:$0xff]
        %v233 = vld [vmem:[%s191 + $0x80] sm:$0xff]
        %v234 = vld [vmem:[%s191 + $0x88] sm:$0xff]
        %v235 = vld [vmem:[%s191 + $0x90] sm:$0xff]
        %v236 = vld [vmem:[%s191 + $0x98] sm:$0xff]
        %v237 = vld [vmem:[%s191 + $0xa0] sm:$0xff]
        %v238 = vld [vmem:[%s191 + $0xa8] sm:$0xff]
        %v239 = vld [vmem:[%s191 + $0xb0] sm:$0xff]
        %v240 = vld [vmem:[%s191 + $0xb8] sm:$0xff]
        %v241 = vld [vmem:[%s191 + $0xc0] sm:$0xff]
        %v242 = vld [vmem:[%s191 + $0xc8] sm:$0xff]
        %v243 = vld [vmem:[%s191 + $0xd0] sm:$0xff]
        %v244 = vld [vmem:[%s191 + $0xd8] sm:$0xff]
        %v245 = vld [vmem:[%s191 + $0xe0] sm:$0xff]
        %v246 = vld [vmem:[%s191 + $0xe8] sm:$0xff]
        %v247 = vld [vmem:[%s191 + $0xf0] sm:$0xff]
        %v248 = vld [vmem:[%s191 + $0xf8] sm:$0xff]
        %vm249 = vcmask 523264
        %250 = vst.msk [vmem:[#allocation2] sm:$0xff] %vm249, 0.0
        %251 = vst.msk [vmem:[#allocation2 + $0x8] sm:$0xff] %vm249, 0.0
        %vm252 = vcmask 517120
        %253 = vst.msk [vmem:[#allocation2 + $0x10] sm:$0x3] %vm252, 0.0
        %s254 = scalar_lea.vmem [#allocation2], 408
        %255 = vst.msk [vmem:[%s254] sm:$0xff] %vm249, 0.0
        %256 = vst.msk [vmem:[%s254 + $0x8] sm:$0xff] %vm249, 0.0
        %257 = vst.msk [vmem:[%s254 + $0x10] sm:$0x3] %vm252, 0.0
        %vm258 = vcmask 516096
        %259 = vst.msk [vmem:[#allocation2] sm:$0x1] %vm258, 0.0
        %260 = vst.msk [vmem:[#allocation2 + $0x18] sm:$0x1] %vm258, 0.0
        %261 = vst.msk [vmem:[#allocation2 + $0x30] sm:$0x1] %vm258, 0.0
        %262 = vst.msk [vmem:[#allocation2 + $0x48] sm:$0x1] %vm258, 0.0
        %263 = vst.msk [vmem:[#allocation2 + $0x60] sm:$0x1] %vm258, 0.0
        %264 = vst.msk [vmem:[#allocation2 + $0x78] sm:$0x1] %vm258, 0.0
        %265 = vst.msk [vmem:[#allocation2 + $0x90] sm:$0x1] %vm258, 0.0
        %266 = vst.msk [vmem:[#allocation2 + $0xa8] sm:$0x1] %vm258, 0.0
        %267 = vst.msk [vmem:[#allocation2 + $0xc0] sm:$0x1] %vm258, 0.0
        %268 = vst.msk [vmem:[#allocation2 + $0xd8] sm:$0x1] %vm258, 0.0
        %269 = vst.msk [vmem:[#allocation2 + $0xf0] sm:$0x1] %vm258, 0.0
        %270 = vst.msk [vmem:[#allocation2 + $0x108] sm:$0x1] %vm258, 0.0
        %271 = vst.msk [vmem:[#allocation2 + $0x120] sm:$0x1] %vm258, 0.0
        %272 = vst.msk [vmem:[#allocation2 + $0x138] sm:$0x1] %vm258, 0.0
        %273 = vst.msk [vmem:[#allocation2 + $0x150] sm:$0x1] %vm258, 0.0
        %274 = vst.msk [vmem:[#allocation2 + $0x168] sm:$0x1] %vm258, 0.0
        %275 = vst.msk [vmem:[#allocation2 + $0x180] sm:$0x1] %vm258, 0.0
        %276 = vst.msk [vmem:[#allocation2 + $0x198] sm:$0x1] %vm258, 0.0
        %277 = vst.msk [vmem:[#allocation2 + $0x11] sm:$0x1] %vm258, 0.0
        %278 = vst.msk [vmem:[#allocation2 + $0x29] sm:$0x1] %vm258, 0.0
        %279 = vst.msk [vmem:[#allocation2 + $0x41] sm:$0x1] %vm258, 0.0
        %280 = vst.msk [vmem:[#allocation2 + $0x59] sm:$0x1] %vm258, 0.0
        %281 = vst.msk [vmem:[#allocation2 + $0x71] sm:$0x1] %vm258, 0.0
        %282 = vst.msk [vmem:[#allocation2 + $0x89] sm:$0x1] %vm258, 0.0
        %283 = vst.msk [vmem:[#allocation2 + $0xa1] sm:$0x1] %vm258, 0.0
        %284 = vst.msk [vmem:[#allocation2 + $0xb9] sm:$0x1] %vm258, 0.0
        %285 = vst.msk [vmem:[#allocation2 + $0xd1] sm:$0x1] %vm258, 0.0
        %286 = vst.msk [vmem:[#allocation2 + $0xe9] sm:$0x1] %vm258, 0.0
        %287 = vst.msk [vmem:[#allocation2 + $0x101] sm:$0x1] %vm258, 0.0
        %288 = vst.msk [vmem:[#allocation2 + $0x119] sm:$0x1] %vm258, 0.0
        %289 = vst.msk [vmem:[#allocation2 + $0x131] sm:$0x1] %vm258, 0.0
        %290 = vst.msk [vmem:[#allocation2 + $0x149] sm:$0x1] %vm258, 0.0
        %291 = vst.msk [vmem:[#allocation2 + $0x161] sm:$0x1] %vm258, 0.0
        %292 = vst.msk [vmem:[#allocation2 + $0x179] sm:$0x1] %vm258, 0.0
        %293 = vst.msk [vmem:[#allocation2 + $0x191] sm:$0x1] %vm258, 0.0
        %294 = vst.msk [vmem:[#allocation2 + $0x1a9] sm:$0x1] %vm258, 0.0
        %s295 = scalar_lea.vmem [#allocation2], 24
        %296 = vst.msk [vmem:[%s295 + $0x1] sm:$0xff] %vm249, %v217
        %297 = vst.msk [vmem:[%s295 + $0x9] sm:$0xff] %vm249, %v218
        %298 = vst.msk [vmem:[%s295 + $0x19] sm:$0xff] %vm249, %v219
        %299 = vst.msk [vmem:[%s295 + $0x21] sm:$0xff] %vm249, %v220
        %300 = vst.msk [vmem:[%s295 + $0x31] sm:$0xff] %vm249, %v221
        %301 = vst.msk [vmem:[%s295 + $0x39] sm:$0xff] %vm249, %v222
        %302 = vst.msk [vmem:[%s295 + $0x49] sm:$0xff] %vm249, %v223
        %303 = vst.msk [vmem:[%s295 + $0x51] sm:$0xff] %vm249, %v224
        %304 = vst.msk [vmem:[%s295 + $0x61] sm:$0xff] %vm249, %v225
        %305 = vst.msk [vmem:[%s295 + $0x69] sm:$0xff] %vm249, %v226
        %306 = vst.msk [vmem:[%s295 + $0x79] sm:$0xff] %vm249, %v227
        %307 = vst.msk [vmem:[%s295 + $0x81] sm:$0xff] %vm249, %v228
        %308 = vst.msk [vmem:[%s295 + $0x91] sm:$0xff] %vm249, %v229
        %309 = vst.msk [vmem:[%s295 + $0x99] sm:$0xff] %vm249, %v230
        %310 = vst.msk [vmem:[%s295 + $0xa9] sm:$0xff] %vm249, %v231
        %311 = vst.msk [vmem:[%s295 + $0xb1] sm:$0xff] %vm249, %v232
        %312 = vst.msk [vmem:[%s295 + $0xc1] sm:$0xff] %vm249, %v233
        %313 = vst.msk [vmem:[%s295 + $0xc9] sm:$0xff] %vm249, %v234
        %314 = vst.msk [vmem:[%s295 + $0xd9] sm:$0xff] %vm249, %v235
        %315 = vst.msk [vmem:[%s295 + $0xe1] sm:$0xff] %vm249, %v236
        %316 = vst.msk [vmem:[%s295 + $0xf1] sm:$0xff] %vm249, %v237
        %317 = vst.msk [vmem:[%s295 + $0xf9] sm:$0xff] %vm249, %v238
        %318 = vst.msk [vmem:[%s295 + $0x109] sm:$0xff] %vm249, %v239
        %319 = vst.msk [vmem:[%s295 + $0x111] sm:$0xff] %vm249, %v240
        %320 = vst.msk [vmem:[%s295 + $0x121] sm:$0xff] %vm249, %v241
        %321 = vst.msk [vmem:[%s295 + $0x129] sm:$0xff] %vm249, %v242
        %322 = vst.msk [vmem:[%s295 + $0x139] sm:$0xff] %vm249, %v243
        %323 = vst.msk [vmem:[%s295 + $0x141] sm:$0xff] %vm249, %v244
        %324 = vst.msk [vmem:[%s295 + $0x151] sm:$0xff] %vm249, %v245
        %325 = vst.msk [vmem:[%s295 + $0x159] sm:$0xff] %vm249, %v246
        %326 = vst.msk [vmem:[%s295 + $0x169] sm:$0xff] %vm249, %v247
        %327 = vst.msk [vmem:[%s295 + $0x171] sm:$0xff] %vm249, %v248
        %v328 = vld [vmem:[#allocation2] sm:$0xff]
        %v329 = vld [vmem:[#allocation2 + $0x8] sm:$0xff]
        %v330 = vld [vmem:[#allocation2 + $0x18] sm:$0xff]
        %v331 = vld [vmem:[#allocation2 + $0x20] sm:$0xff]
        %v332 = vld [vmem:[#allocation2 + $0x30] sm:$0xff]
        %v333 = vld [vmem:[#allocation2 + $0x38] sm:$0xff]
        %v334 = vld [vmem:[#allocation2 + $0x48] sm:$0xff]
        %v335 = vld [vmem:[#allocation2 + $0x50] sm:$0xff]
        %v336 = vld [vmem:[#allocation2 + $0x60] sm:$0xff]
        %v337 = vld [vmem:[#allocation2 + $0x68] sm:$0xff]
        %v338 = vld [vmem:[#allocation2 + $0x78] sm:$0xff]
        %v339 = vld [vmem:[#allocation2 + $0x80] sm:$0xff]
        %v340 = vld [vmem:[#allocation2 + $0x90] sm:$0xff]
        %v341 = vld [vmem:[#allocation2 + $0x98] sm:$0xff]
        %v342 = vld [vmem:[#allocation2 + $0xa8] sm:$0xff]
        %v343 = vld [vmem:[#allocation2 + $0xb0] sm:$0xff]
        %v344 = vld [vmem:[#allocation2 + $0xc0] sm:$0xff]
        %v345 = vld [vmem:[#allocation2 + $0xc8] sm:$0xff]
        %v346 = vld [vmem:[#allocation2 + $0xd8] sm:$0xff]
        %v347 = vld [vmem:[#allocation2 + $0xe0] sm:$0xff]
        %v348 = vld [vmem:[#allocation2 + $0xf0] sm:$0xff]
        %v349 = vld [vmem:[#allocation2 + $0xf8] sm:$0xff]
        %v350 = vld [vmem:[#allocation2 + $0x108] sm:$0xff]
        %v351 = vld [vmem:[#allocation2 + $0x110] sm:$0xff]
        %v352 = vld [vmem:[#allocation2 + $0x120] sm:$0xff]
        %v353 = vld [vmem:[#allocation2 + $0x128] sm:$0xff]
        %v354 = vld [vmem:[#allocation2 + $0x138] sm:$0xff]
        %v355 = vld [vmem:[#allocation2 + $0x140] sm:$0xff]
        %v356 = vld [vmem:[#allocation2 + $0x150] sm:$0xff]
        %v357 = vld [vmem:[#allocation2 + $0x158] sm:$0xff]
        %v358 = vld [vmem:[#allocation2 + $0x168] sm:$0xff]
        %v359 = vld [vmem:[#allocation2 + $0x170] sm:$0xff]
        %v360 = vld [vmem:[%s1] sm:$0x1]
        %v362 = vlaneseq
        %v363 = vshrl.u32 %v362, 7
        %v364 = vsub.s32 0, %v363
        %v365 = vrot.slane %v360, %v364
        %v367 = vmul.f32 %v328, %v365
        %v368 = vmul.f32 %v329, %v365
        %v369 = vmul.f32 %v330, %v365
        %v370 = vmul.f32 %v331, %v365
        %v371 = vmul.f32 %v332, %v365
        %v372 = vmul.f32 %v333, %v365
        %v373 = vmul.f32 %v334, %v365
        %v374 = vmul.f32 %v335, %v365
        %v375 = vmul.f32 %v336, %v365
        %v376 = vmul.f32 %v337, %v365
        %v377 = vmul.f32 %v338, %v365
        %v378 = vmul.f32 %v339, %v365
        %v379 = vmul.f32 %v340, %v365
        %v380 = vmul.f32 %v341, %v365
        %v381 = vmul.f32 %v342, %v365
        %v382 = vmul.f32 %v343, %v365
        %v383 = vmul.f32 %v344, %v365
        %v384 = vmul.f32 %v345, %v365
        %v385 = vmul.f32 %v346, %v365
        %v386 = vmul.f32 %v347, %v365
        %v387 = vmul.f32 %v348, %v365
        %v388 = vmul.f32 %v349, %v365
        %v389 = vmul.f32 %v350, %v365
        %v390 = vmul.f32 %v351, %v365
        %v391 = vmul.f32 %v352, %v365
        %v392 = vmul.f32 %v353, %v365
        %v393 = vmul.f32 %v354, %v365
        %v394 = vmul.f32 %v355, %v365
        %v395 = vmul.f32 %v356, %v365
        %v396 = vmul.f32 %v357, %v365
        %v397 = vmul.f32 %v358, %v365
        %v398 = vmul.f32 %v359, %v365
        %v399 = vadd.f32 %v367, 0.0
        %v400 = vadd.f32 %v368, 0.0
        %v401 = vadd.f32 %v369, 0.0
        %v402 = vadd.f32 %v370, 0.0
        %v403 = vadd.f32 %v371, 0.0
        %v404 = vadd.f32 %v372, 0.0
        %v405 = vadd.f32 %v373, 0.0
        %v406 = vadd.f32 %v374, 0.0
        %v407 = vadd.f32 %v375, 0.0
        %v408 = vadd.f32 %v376, 0.0
        %v409 = vadd.f32 %v377, 0.0
        %v410 = vadd.f32 %v378, 0.0
        %v411 = vadd.f32 %v379, 0.0
        %v412 = vadd.f32 %v380, 0.0
        %v413 = vadd.f32 %v381, 0.0
        %v414 = vadd.f32 %v382, 0.0
        %v415 = vadd.f32 %v383, 0.0
        %v416 = vadd.f32 %v384, 0.0
        %v417 = vadd.f32 %v385, 0.0
        %v418 = vadd.f32 %v386, 0.0
        %v419 = vadd.f32 %v387, 0.0
        %v420 = vadd.f32 %v388, 0.0
        %v421 = vadd.f32 %v389, 0.0
        %v422 = vadd.f32 %v390, 0.0
        %v423 = vadd.f32 %v391, 0.0
        %v424 = vadd.f32 %v392, 0.0
        %v425 = vadd.f32 %v393, 0.0
        %v426 = vadd.f32 %v394, 0.0
        %v427 = vadd.f32 %v395, 0.0
        %v428 = vadd.f32 %v396, 0.0
        %v429 = vadd.f32 %v397, 0.0
        %v430 = vadd.f32 %v398, 0.0
        %v431 = vld [vmem:[#allocation2 + $0x1] sm:$0xff]
        %v432 = vld [vmem:[#allocation2 + $0x9] sm:$0xff]
        %v433 = vld [vmem:[#allocation2 + $0x19] sm:$0xff]
        %v434 = vld [vmem:[#allocation2 + $0x21] sm:$0xff]
        %v435 = vld [vmem:[#allocation2 + $0x31] sm:$0xff]
        %v436 = vld [vmem:[#allocation2 + $0x39] sm:$0xff]
        %v437 = vld [vmem:[#allocation2 + $0x49] sm:$0xff]
        %v438 = vld [vmem:[#allocation2 + $0x51] sm:$0xff]
        %v439 = vld [vmem:[#allocation2 + $0x61] sm:$0xff]
        %v440 = vld [vmem:[#allocation2 + $0x69] sm:$0xff]
        %v441 = vld [vmem:[#allocation2 + $0x79] sm:$0xff]
        %v442 = vld [vmem:[#allocation2 + $0x81] sm:$0xff]
        %v443 = vld [vmem:[#allocation2 + $0x91] sm:$0xff]
        %v444 = vld [vmem:[#allocation2 + $0x99] sm:$0xff]
        %v445 = vld [vmem:[#allocation2 + $0xa9] sm:$0xff]
        %v446 = vld [vmem:[#allocation2 + $0xb1] sm:$0xff]
        %v447 = vld [vmem:[#allocation2 + $0xc1] sm:$0xff]
        %v448 = vld [vmem:[#allocation2 + $0xc9] sm:$0xff]
        %v449 = vld [vmem:[#allocation2 + $0xd9] sm:$0xff]
        %v450 = vld [vmem:[#allocation2 + $0xe1] sm:$0xff]
        %v451 = vld [vmem:[#allocation2 + $0xf1] sm:$0xff]
        %v452 = vld [vmem:[#allocation2 + $0xf9] sm:$0xff]
        %v453 = vld [vmem:[#allocation2 + $0x109] sm:$0xff]
        %v454 = vld [vmem:[#allocation2 + $0x111] sm:$0xff]
        %v455 = vld [vmem:[#allocation2 + $0x121] sm:$0xff]
        %v456 = vld [vmem:[#allocation2 + $0x129] sm:$0xff]
        %v457 = vld [vmem:[#allocation2 + $0x139] sm:$0xff]
        %v458 = vld [vmem:[#allocation2 + $0x141] sm:$0xff]
        %v459 = vld [vmem:[#allocation2 + $0x151] sm:$0xff]
        %v460 = vld [vmem:[#allocation2 + $0x159] sm:$0xff]
        %v461 = vld [vmem:[#allocation2 + $0x169] sm:$0xff]
        %v462 = vld [vmem:[#allocation2 + $0x171] sm:$0xff]
        %s463 = scalar_lea.vmem %s1, 1
        %v464 = vld [vmem:[%s463] sm:$0x1]
        %v466 = vlaneseq
        %v467 = vshrl.u32 %v466, 7
        %v468 = vsub.s32 0, %v467
        %v469 = vrot.slane %v464, %v468
        %v471 = vmul.f32 %v431, %v469
        %v472 = vmul.f32 %v432, %v469
        %v473 = vmul.f32 %v433, %v469
        %v474 = vmul.f32 %v434, %v469
        %v475 = vmul.f32 %v435, %v469
        %v476 = vmul.f32 %v436, %v469
        %v477 = vmul.f32 %v437, %v469
        %v478 = vmul.f32 %v438, %v469
        %v479 = vmul.f32 %v439, %v469
        %v480 = vmul.f32 %v440, %v469
        %v481 = vmul.f32 %v441, %v469
        %v482 = vmul.f32 %v442, %v469
        %v483 = vmul.f32 %v443, %v469
        %v484 = vmul.f32 %v444, %v469
        %v485 = vmul.f32 %v445, %v469
        %v486 = vmul.f32 %v446, %v469
        %v487 = vmul.f32 %v447, %v469
        %v488 = vmul.f32 %v448, %v469
        %v489 = vmul.f32 %v449, %v469
        %v490 = vmul.f32 %v450, %v469
        %v491 = vmul.f32 %v451, %v469
        %v492 = vmul.f32 %v452, %v469
        %v493 = vmul.f32 %v453, %v469
        %v494 = vmul.f32 %v454, %v469
        %v495 = vmul.f32 %v455, %v469
        %v496 = vmul.f32 %v456, %v469
        %v497 = vmul.f32 %v457, %v469
        %v498 = vmul.f32 %v458, %v469
        %v499 = vmul.f32 %v459, %v469
        %v500 = vmul.f32 %v460, %v469
        %v501 = vmul.f32 %v461, %v469
        %v502 = vmul.f32 %v462, %v469
        %v503 = vadd.f32 %v399, %v471
        %v504 = vadd.f32 %v400, %v472
        %v505 = vadd.f32 %v401, %v473
        %v506 = vadd.f32 %v402, %v474
        %v507 = vadd.f32 %v403, %v475
        %v508 = vadd.f32 %v404, %v476
        %v509 = vadd.f32 %v405, %v477
        %v510 = vadd.f32 %v406, %v478
        %v511 = vadd.f32 %v407, %v479
        %v512 = vadd.f32 %v408, %v480
        %v513 = vadd.f32 %v409, %v481
        %v514 = vadd.f32 %v410, %v482
        %v515 = vadd.f32 %v411, %v483
        %v516 = vadd.f32 %v412, %v484
        %v517 = vadd.f32 %v413, %v485
        %v518 = vadd.f32 %v414, %v486
        %v519 = vadd.f32 %v415, %v487
        %v520 = vadd.f32 %v416, %v488
        %v521 = vadd.f32 %v417, %v489
        %v522 = vadd.f32 %v418, %v490
        %v523 = vadd.f32 %v419, %v491
        %v524 = vadd.f32 %v420, %v492
        %v525 = vadd.f32 %v421, %v493
        %v526 = vadd.f32 %v422, %v494
        %v527 = vadd.f32 %v423, %v495
        %v528 = vadd.f32 %v424, %v496
        %v529 = vadd.f32 %v425, %v497
        %v530 = vadd.f32 %v426, %v498
        %v531 = vadd.f32 %v427, %v499
        %v532 = vadd.f32 %v428, %v500
        %v533 = vadd.f32 %v429, %v501
        %v534 = vadd.f32 %v430, %v502
        %v535 = vld [vmem:[#allocation2 + $0x2] sm:$0xff]
        %v536 = vld [vmem:[#allocation2 + $0xa] sm:$0xff]
        %v537 = vld [vmem:[#allocation2 + $0x1a] sm:$0xff]
        %v538 = vld [vmem:[#allocation2 + $0x22] sm:$0xff]
        %v539 = vld [vmem:[#allocation2 + $0x32] sm:$0xff]
        %v540 = vld [vmem:[#allocation2 + $0x3a] sm:$0xff]
        %v541 = vld [vmem:[#allocation2 + $0x4a] sm:$0xff]
        %v542 = vld [vmem:[#allocation2 + $0x52] sm:$0xff]
        %v543 = vld [vmem:[#allocation2 + $0x62] sm:$0xff]
        %v544 = vld [vmem:[#allocation2 + $0x6a] sm:$0xff]
        %v545 = vld [vmem:[#allocation2 + $0x7a] sm:$0xff]
        %v546 = vld [vmem:[#allocation2 + $0x82] sm:$0xff]
        %v547 = vld [vmem:[#allocation2 + $0x92] sm:$0xff]
        %v548 = vld [vmem:[#allocation2 + $0x9a] sm:$0xff]
        %v549 = vld [vmem:[#allocation2 + $0xaa] sm:$0xff]
        %v550 = vld [vmem:[#allocation2 + $0xb2] sm:$0xff]
        %v551 = vld [vmem:[#allocation2 + $0xc2] sm:$0xff]
        %v552 = vld [vmem:[#allocation2 + $0xca] sm:$0xff]
        %v553 = vld [vmem:[#allocation2 + $0xda] sm:$0xff]
        %v554 = vld [vmem:[#allocation2 + $0xe2] sm:$0xff]
        %v555 = vld [vmem:[#allocation2 + $0xf2] sm:$0xff]
        %v556 = vld [vmem:[#allocation2 + $0xfa] sm:$0xff]
        %v557 = vld [vmem:[#allocation2 + $0x10a] sm:$0xff]
        %v558 = vld [vmem:[#allocation2 + $0x112] sm:$0xff]
        %v559 = vld [vmem:[#allocation2 + $0x122] sm:$0xff]
        %v560 = vld [vmem:[#allocation2 + $0x12a] sm:$0xff]
        %v561 = vld [vmem:[#allocation2 + $0x13a] sm:$0xff]
        %v562 = vld [vmem:[#allocation2 + $0x142] sm:$0xff]
        %v563 = vld [vmem:[#allocation2 + $0x152] sm:$0xff]
        %v564 = vld [vmem:[#allocation2 + $0x15a] sm:$0xff]
        %v565 = vld [vmem:[#allocation2 + $0x16a] sm:$0xff]
        %v566 = vld [vmem:[#allocation2 + $0x172] sm:$0xff]
        %s567 = scalar_lea.vmem %s1, 2
        %v568 = vld [vmem:[%s567] sm:$0x1]
        %v570 = vlaneseq
        %v571 = vshrl.u32 %v570, 7
        %v572 = vsub.s32 0, %v571
        %v573 = vrot.slane %v568, %v572
        %v575 = vmul.f32 %v535, %v573
        %v576 = vmul.f32 %v536, %v573
        %v577 = vmul.f32 %v537, %v573
        %v578 = vmul.f32 %v538, %v573
        %v579 = vmul.f32 %v539, %v573
        %v580 = vmul.f32 %v540, %v573
        %v581 = vmul.f32 %v541, %v573
        %v582 = vmul.f32 %v542, %v573
        %v583 = vmul.f32 %v543, %v573
        %v584 = vmul.f32 %v544, %v573
        %v585 = vmul.f32 %v545, %v573
        %v586 = vmul.f32 %v546, %v573
        %v587 = vmul.f32 %v547, %v573
        %v588 = vmul.f32 %v548, %v573
        %v589 = vmul.f32 %v549, %v573
        %v590 = vmul.f32 %v550, %v573
        %v591 = vmul.f32 %v551, %v573
        %v592 = vmul.f32 %v552, %v573
        %v593 = vmul.f32 %v553, %v573
        %v594 = vmul.f32 %v554, %v573
        %v595 = vmul.f32 %v555, %v573
        %v596 = vmul.f32 %v556, %v573
        %v597 = vmul.f32 %v557, %v573
        %v598 = vmul.f32 %v558, %v573
        %v599 = vmul.f32 %v559, %v573
        %v600 = vmul.f32 %v560, %v573
        %v601 = vmul.f32 %v561, %v573
        %v602 = vmul.f32 %v562, %v573
        %v603 = vmul.f32 %v563, %v573
        %v604 = vmul.f32 %v564, %v573
        %v605 = vmul.f32 %v565, %v573
        %v606 = vmul.f32 %v566, %v573
        %v607 = vadd.f32 %v503, %v575
        %v608 = vadd.f32 %v504, %v576
        %v609 = vadd.f32 %v505, %v577
        %v610 = vadd.f32 %v506, %v578
        %v611 = vadd.f32 %v507, %v579
        %v612 = vadd.f32 %v508, %v580
        %v613 = vadd.f32 %v509, %v581
        %v614 = vadd.f32 %v510, %v582
        %v615 = vadd.f32 %v511, %v583
        %v616 = vadd.f32 %v512, %v584
        %v617 = vadd.f32 %v513, %v585
        %v618 = vadd.f32 %v514, %v586
        %v619 = vadd.f32 %v515, %v587
        %v620 = vadd.f32 %v516, %v588
        %v621 = vadd.f32 %v517, %v589
        %v622 = vadd.f32 %v518, %v590
        %v623 = vadd.f32 %v519, %v591
        %v624 = vadd.f32 %v520, %v592
        %v625 = vadd.f32 %v521, %v593
        %v626 = vadd.f32 %v522, %v594
        %v627 = vadd.f32 %v523, %v595
        %v628 = vadd.f32 %v524, %v596
        %v629 = vadd.f32 %v525, %v597
        %v630 = vadd.f32 %v526, %v598
        %v631 = vadd.f32 %v527, %v599
        %v632 = vadd.f32 %v528, %v600
        %v633 = vadd.f32 %v529, %v601
        %v634 = vadd.f32 %v530, %v602
        %v635 = vadd.f32 %v531, %v603
        %v636 = vadd.f32 %v532, %v604
        %v637 = vadd.f32 %v533, %v605
        %v638 = vadd.f32 %v534, %v606
        %v639 = vld [vmem:[%s295] sm:$0xff]
        %v640 = vld [vmem:[%s295 + $0x8] sm:$0xff]
        %v641 = vld [vmem:[%s295 + $0x18] sm:$0xff]
        %v642 = vld [vmem:[%s295 + $0x20] sm:$0xff]
        %v643 = vld [vmem:[%s295 + $0x30] sm:$0xff]
        %v644 = vld [vmem:[%s295 + $0x38] sm:$0xff]
        %v645 = vld [vmem:[%s295 + $0x48] sm:$0xff]
        %v646 = vld [vmem:[%s295 + $0x50] sm:$0xff]
        %v647 = vld [vmem:[%s295 + $0x60] sm:$0xff]
        %v648 = vld [vmem:[%s295 + $0x68] sm:$0xff]
        %v649 = vld [vmem:[%s295 + $0x78] sm:$0xff]
        %v650 = vld [vmem:[%s295 + $0x80] sm:$0xff]
        %v651 = vld [vmem:[%s295 + $0x90] sm:$0xff]
        %v652 = vld [vmem:[%s295 + $0x98] sm:$0xff]
        %v653 = vld [vmem:[%s295 + $0xa8] sm:$0xff]
        %v654 = vld [vmem:[%s295 + $0xb0] sm:$0xff]
        %v655 = vld [vmem:[%s295 + $0xc0] sm:$0xff]
        %v656 = vld [vmem:[%s295 + $0xc8] sm:$0xff]
        %v657 = vld [vmem:[%s295 + $0xd8] sm:$0xff]
        %v658 = vld [vmem:[%s295 + $0xe0] sm:$0xff]
        %v659 = vld [vmem:[%s295 + $0xf0] sm:$0xff]
        %v660 = vld [vmem:[%s295 + $0xf8] sm:$0xff]
        %v661 = vld [vmem:[%s295 + $0x108] sm:$0xff]
        %v662 = vld [vmem:[%s295 + $0x110] sm:$0xff]
        %v663 = vld [vmem:[%s295 + $0x120] sm:$0xff]
        %v664 = vld [vmem:[%s295 + $0x128] sm:$0xff]
        %v665 = vld [vmem:[%s295 + $0x138] sm:$0xff]
        %v666 = vld [vmem:[%s295 + $0x140] sm:$0xff]
        %v667 = vld [vmem:[%s295 + $0x150] sm:$0xff]
        %v668 = vld [vmem:[%s295 + $0x158] sm:$0xff]
        %v669 = vld [vmem:[%s295 + $0x168] sm:$0xff]
        %v670 = vld [vmem:[%s295 + $0x170] sm:$0xff]
        %s671 = scalar_lea.vmem %s1, 3
        %v672 = vld [vmem:[%s671] sm:$0x1]
        %v674 = vlaneseq
        %v675 = vshrl.u32 %v674, 7
        %v676 = vsub.s32 0, %v675
        %v677 = vrot.slane %v672, %v676
        %v679 = vmul.f32 %v639, %v677
        %v680 = vmul.f32 %v640, %v677
        %v681 = vmul.f32 %v641, %v677
        %v682 = vmul.f32 %v642, %v677
        %v683 = vmul.f32 %v643, %v677
        %v684 = vmul.f32 %v644, %v677
        %v685 = vmul.f32 %v645, %v677
        %v686 = vmul.f32 %v646, %v677
        %v687 = vmul.f32 %v647, %v677
        %v688 = vmul.f32 %v648, %v677
        %v689 = vmul.f32 %v649, %v677
        %v690 = vmul.f32 %v650, %v677
        %v691 = vmul.f32 %v651, %v677
        %v692 = vmul.f32 %v652, %v677
        %v693 = vmul.f32 %v653, %v677
        %v694 = vmul.f32 %v654, %v677
        %v695 = vmul.f32 %v655, %v677
        %v696 = vmul.f32 %v656, %v677
        %v697 = vmul.f32 %v657, %v677
        %v698 = vmul.f32 %v658, %v677
        %v699 = vmul.f32 %v659, %v677
        %v700 = vmul.f32 %v660, %v677
        %v701 = vmul.f32 %v661, %v677
        %v702 = vmul.f32 %v662, %v677
        %v703 = vmul.f32 %v663, %v677
        %v704 = vmul.f32 %v664, %v677
        %v705 = vmul.f32 %v665, %v677
        %v706 = vmul.f32 %v666, %v677
        %v707 = vmul.f32 %v667, %v677
        %v708 = vmul.f32 %v668, %v677
        %v709 = vmul.f32 %v669, %v677
        %v710 = vmul.f32 %v670, %v677
        %v711 = vadd.f32 %v607, %v679
        %v712 = vadd.f32 %v608, %v680
        %v713 = vadd.f32 %v609, %v681
        %v714 = vadd.f32 %v610, %v682
        %v715 = vadd.f32 %v611, %v683
        %v716 = vadd.f32 %v612, %v684
        %v717 = vadd.f32 %v613, %v685
        %v718 = vadd.f32 %v614, %v686
        %v719 = vadd.f32 %v615, %v687
        %v720 = vadd.f32 %v616, %v688
        %v721 = vadd.f32 %v617, %v689
        %v722 = vadd.f32 %v618, %v690
        %v723 = vadd.f32 %v619, %v691
        %v724 = vadd.f32 %v620, %v692
        %v725 = vadd.f32 %v621, %v693
        %v726 = vadd.f32 %v622, %v694
        %v727 = vadd.f32 %v623, %v695
        %v728 = vadd.f32 %v624, %v696
        %v729 = vadd.f32 %v625, %v697
        %v730 = vadd.f32 %v626, %v698
        %v731 = vadd.f32 %v627, %v699
        %v732 = vadd.f32 %v628, %v700
        %v733 = vadd.f32 %v629, %v701
        %v734 = vadd.f32 %v630, %v702
        %v735 = vadd.f32 %v631, %v703
        %v736 = vadd.f32 %v632, %v704
        %v737 = vadd.f32 %v633, %v705
        %v738 = vadd.f32 %v634, %v706
        %v739 = vadd.f32 %v635, %v707
        %v740 = vadd.f32 %v636, %v708
        %v741 = vadd.f32 %v637, %v709
        %v742 = vadd.f32 %v638, %v710
        %v743 = vld [vmem:[%s295 + $0x1] sm:$0xff]
        %v744 = vld [vmem:[%s295 + $0x9] sm:$0xff]
        %v745 = vld [vmem:[%s295 + $0x19] sm:$0xff]
        %v746 = vld [vmem:[%s295 + $0x21] sm:$0xff]
        %v747 = vld [vmem:[%s295 + $0x31] sm:$0xff]
        %v748 = vld [vmem:[%s295 + $0x39] sm:$0xff]
        %v749 = vld [vmem:[%s295 + $0x49] sm:$0xff]
        %v750 = vld [vmem:[%s295 + $0x51] sm:$0xff]
        %v751 = vld [vmem:[%s295 + $0x61] sm:$0xff]
        %v752 = vld [vmem:[%s295 + $0x69] sm:$0xff]
        %v753 = vld [vmem:[%s295 + $0x79] sm:$0xff]
        %v754 = vld [vmem:[%s295 + $0x81] sm:$0xff]
        %v755 = vld [vmem:[%s295 + $0x91] sm:$0xff]
        %v756 = vld [vmem:[%s295 + $0x99] sm:$0xff]
        %v757 = vld [vmem:[%s295 + $0xa9] sm:$0xff]
        %v758 = vld [vmem:[%s295 + $0xb1] sm:$0xff]
        %v759 = vld [vmem:[%s295 + $0xc1] sm:$0xff]
        %v760 = vld [vmem:[%s295 + $0xc9] sm:$0xff]
        %v761 = vld [vmem:[%s295 + $0xd9] sm:$0xff]
        %v762 = vld [vmem:[%s295 + $0xe1] sm:$0xff]
        %v763 = vld [vmem:[%s295 + $0xf1] sm:$0xff]
        %v764 = vld [vmem:[%s295 + $0xf9] sm:$0xff]
        %v765 = vld [vmem:[%s295 + $0x109] sm:$0xff]
        %v766 = vld [vmem:[%s295 + $0x111] sm:$0xff]
        %v767 = vld [vmem:[%s295 + $0x121] sm:$0xff]
        %v768 = vld [vmem:[%s295 + $0x129] sm:$0xff]
        %v769 = vld [vmem:[%s295 + $0x139] sm:$0xff]
        %v770 = vld [vmem:[%s295 + $0x141] sm:$0xff]
        %v771 = vld [vmem:[%s295 + $0x151] sm:$0xff]
        %v772 = vld [vmem:[%s295 + $0x159] sm:$0xff]
        %v773 = vld [vmem:[%s295 + $0x169] sm:$0xff]
        %v774 = vld [vmem:[%s295 + $0x171] sm:$0xff]
        %s775 = scalar_lea.vmem %s1, 4
        %v776 = vld [vmem:[%s775] sm:$0x1]
        %v778 = vlaneseq
        %v779 = vshrl.u32 %v778, 7
        %v780 = vsub.s32 0, %v779
        %v781 = vrot.slane %v776, %v780
        %v783 = vmul.f32 %v743, %v781
        %v784 = vmul.f32 %v744, %v781
        %v785 = vmul.f32 %v745, %v781
        %v786 = vmul.f32 %v746, %v781
        %v787 = vmul.f32 %v747, %v781
        %v788 = vmul.f32 %v748, %v781
        %v789 = vmul.f32 %v749, %v781
        %v790 = vmul.f32 %v750, %v781
        %v791 = vmul.f32 %v751, %v781
        %v792 = vmul.f32 %v752, %v781
        %v793 = vmul.f32 %v753, %v781
        %v794 = vmul.f32 %v754, %v781
        %v795 = vmul.f32 %v755, %v781
        %v796 = vmul.f32 %v756, %v781
        %v797 = vmul.f32 %v757, %v781
        %v798 = vmul.f32 %v758, %v781
        %v799 = vmul.f32 %v759, %v781
        %v800 = vmul.f32 %v760, %v781
        %v801 = vmul.f32 %v761, %v781
        %v802 = vmul.f32 %v762, %v781
        %v803 = vmul.f32 %v763, %v781
        %v804 = vmul.f32 %v764, %v781
        %v805 = vmul.f32 %v765, %v781
        %v806 = vmul.f32 %v766, %v781
        %v807 = vmul.f32 %v767, %v781
        %v808 = vmul.f32 %v768, %v781
        %v809 = vmul.f32 %v769, %v781
        %v810 = vmul.f32 %v770, %v781
        %v811 = vmul.f32 %v771, %v781
        %v812 = vmul.f32 %v772, %v781
        %v813 = vmul.f32 %v773, %v781
        %v814 = vmul.f32 %v774, %v781
        %v815 = vadd.f32 %v711, %v783
        %v816 = vadd.f32 %v712, %v784
        %v817 = vadd.f32 %v713, %v785
        %v818 = vadd.f32 %v714, %v786
        %v819 = vadd.f32 %v715, %v787
        %v820 = vadd.f32 %v716, %v788
        %v821 = vadd.f32 %v717, %v789
        %v822 = vadd.f32 %v718, %v790
        %v823 = vadd.f32 %v719, %v791
        %v824 = vadd.f32 %v720, %v792
        %v825 = vadd.f32 %v721, %v793
        %v826 = vadd.f32 %v722, %v794
        %v827 = vadd.f32 %v723, %v795
        %v828 = vadd.f32 %v724, %v796
        %v829 = vadd.f32 %v725, %v797
        %v830 = vadd.f32 %v726, %v798
        %v831 = vadd.f32 %v727, %v799
        %v832 = vadd.f32 %v728, %v800
        %v833 = vadd.f32 %v729, %v801
        %v834 = vadd.f32 %v730, %v802
        %v835 = vadd.f32 %v731, %v803
        %v836 = vadd.f32 %v732, %v804
        %v837 = vadd.f32 %v733, %v805
        %v838 = vadd.f32 %v734, %v806
        %v839 = vadd.f32 %v735, %v807
        %v840 = vadd.f32 %v736, %v808
        %v841 = vadd.f32 %v737, %v809
        %v842 = vadd.f32 %v738, %v810
        %v843 = vadd.f32 %v739, %v811
        %v844 = vadd.f32 %v740, %v812
        %v845 = vadd.f32 %v741, %v813
        %v846 = vadd.f32 %v742, %v814
        %v847 = vld [vmem:[%s295 + $0x2] sm:$0xff]
        %v848 = vld [vmem:[%s295 + $0xa] sm:$0xff]
        %v849 = vld [vmem:[%s295 + $0x1a] sm:$0xff]
        %v850 = vld [vmem:[%s295 + $0x22] sm:$0xff]
        %v851 = vld [vmem:[%s295 + $0x32] sm:$0xff]
        %v852 = vld [vmem:[%s295 + $0x3a] sm:$0xff]
        %v853 = vld [vmem:[%s295 + $0x4a] sm:$0xff]
        %v854 = vld [vmem:[%s295 + $0x52] sm:$0xff]
        %v855 = vld [vmem:[%s295 + $0x62] sm:$0xff]
        %v856 = vld [vmem:[%s295 + $0x6a] sm:$0xff]
        %v857 = vld [vmem:[%s295 + $0x7a] sm:$0xff]
        %v858 = vld [vmem:[%s295 + $0x82] sm:$0xff]
        %v859 = vld [vmem:[%s295 + $0x92] sm:$0xff]
        %v860 = vld [vmem:[%s295 + $0x9a] sm:$0xff]
        %v861 = vld [vmem:[%s295 + $0xaa] sm:$0xff]
        %v862 = vld [vmem:[%s295 + $0xb2] sm:$0xff]
        %v863 = vld [vmem:[%s295 + $0xc2] sm:$0xff]
        %v864 = vld [vmem:[%s295 + $0xca] sm:$0xff]
        %v865 = vld [vmem:[%s295 + $0xda] sm:$0xff]
        %v866 = vld [vmem:[%s295 + $0xe2] sm:$0xff]
        %v867 = vld [vmem:[%s295 + $0xf2] sm:$0xff]
        %v868 = vld [vmem:[%s295 + $0xfa] sm:$0xff]
        %v869 = vld [vmem:[%s295 + $0x10a] sm:$0xff]
        %v870 = vld [vmem:[%s295 + $0x112] sm:$0xff]
        %v871 = vld [vmem:[%s295 + $0x122] sm:$0xff]
        %v872 = vld [vmem:[%s295 + $0x12a] sm:$0xff]
        %v873 = vld [vmem:[%s295 + $0x13a] sm:$0xff]
        %v874 = vld [vmem:[%s295 + $0x142] sm:$0xff]
        %v875 = vld [vmem:[%s295 + $0x152] sm:$0xff]
        %v876 = vld [vmem:[%s295 + $0x15a] sm:$0xff]
        %v877 = vld [vmem:[%s295 + $0x16a] sm:$0xff]
        %v878 = vld [vmem:[%s295 + $0x172] sm:$0xff]
        %s879 = scalar_lea.vmem %s1, 5
        %v880 = vld [vmem:[%s879] sm:$0x1]
        %v882 = vlaneseq
        %v883 = vshrl.u32 %v882, 7
        %v884 = vsub.s32 0, %v883
        %v885 = vrot.slane %v880, %v884
        %v887 = vmul.f32 %v847, %v885
        %v888 = vmul.f32 %v848, %v885
        %v889 = vmul.f32 %v849, %v885
        %v890 = vmul.f32 %v850, %v885
        %v891 = vmul.f32 %v851, %v885
        %v892 = vmul.f32 %v852, %v885
        %v893 = vmul.f32 %v853, %v885
        %v894 = vmul.f32 %v854, %v885
        %v895 = vmul.f32 %v855, %v885
        %v896 = vmul.f32 %v856, %v885
        %v897 = vmul.f32 %v857, %v885
        %v898 = vmul.f32 %v858, %v885
        %v899 = vmul.f32 %v859, %v885
        %v900 = vmul.f32 %v860, %v885
        %v901 = vmul.f32 %v861, %v885
        %v902 = vmul.f32 %v862, %v885
        %v903 = vmul.f32 %v863, %v885
        %v904 = vmul.f32 %v864, %v885
        %v905 = vmul.f32 %v865, %v885
        %v906 = vmul.f32 %v866, %v885
        %v907 = vmul.f32 %v867, %v885
        %v908 = vmul.f32 %v868, %v885
        %v909 = vmul.f32 %v869, %v885
        %v910 = vmul.f32 %v870, %v885
        %v911 = vmul.f32 %v871, %v885
        %v912 = vmul.f32 %v872, %v885
        %v913 = vmul.f32 %v873, %v885
        %v914 = vmul.f32 %v874, %v885
        %v915 = vmul.f32 %v875, %v885
        %v916 = vmul.f32 %v876, %v885
        %v917 = vmul.f32 %v877, %v885
        %v918 = vmul.f32 %v878, %v885
        %v919 = vadd.f32 %v815, %v887
        %v920 = vadd.f32 %v816, %v888
        %v921 = vadd.f32 %v817, %v889
        %v922 = vadd.f32 %v818, %v890
        %v923 = vadd.f32 %v819, %v891
        %v924 = vadd.f32 %v820, %v892
        %v925 = vadd.f32 %v821, %v893
        %v926 = vadd.f32 %v822, %v894
        %v927 = vadd.f32 %v823, %v895
        %v928 = vadd.f32 %v824, %v896
        %v929 = vadd.f32 %v825, %v897
        %v930 = vadd.f32 %v826, %v898
        %v931 = vadd.f32 %v827, %v899
        %v932 = vadd.f32 %v828, %v900
        %v933 = vadd.f32 %v829, %v901
        %v934 = vadd.f32 %v830, %v902
        %v935 = vadd.f32 %v831, %v903
        %v936 = vadd.f32 %v832, %v904
        %v937 = vadd.f32 %v833, %v905
        %v938 = vadd.f32 %v834, %v906
        %v939 = vadd.f32 %v835, %v907
        %v940 = vadd.f32 %v836, %v908
        %v941 = vadd.f32 %v837, %v909
        %v942 = vadd.f32 %v838, %v910
        %v943 = vadd.f32 %v839, %v911
        %v944 = vadd.f32 %v840, %v912
        %v945 = vadd.f32 %v841, %v913
        %v946 = vadd.f32 %v842, %v914
        %v947 = vadd.f32 %v843, %v915
        %v948 = vadd.f32 %v844, %v916
        %v949 = vadd.f32 %v845, %v917
        %v950 = vadd.f32 %v846, %v918
        %s951 = scalar_lea.vmem [#allocation2], 48
        %v952 = vld [vmem:[%s951] sm:$0xff]
        %v953 = vld [vmem:[%s951 + $0x8] sm:$0xff]
        %v954 = vld [vmem:[%s951 + $0x18] sm:$0xff]
        %v955 = vld [vmem:[%s951 + $0x20] sm:$0xff]
        %v956 = vld [vmem:[%s951 + $0x30] sm:$0xff]
        %v957 = vld [vmem:[%s951 + $0x38] sm:$0xff]
        %v958 = vld [vmem:[%s951 + $0x48] sm:$0xff]
        %v959 = vld [vmem:[%s951 + $0x50] sm:$0xff]
        %v960 = vld [vmem:[%s951 + $0x60] sm:$0xff]
        %v961 = vld [vmem:[%s951 + $0x68] sm:$0xff]
        %v962 = vld [vmem:[%s951 + $0x78] sm:$0xff]
        %v963 = vld [vmem:[%s951 + $0x80] sm:$0xff]
        %v964 = vld [vmem:[%s951 + $0x90] sm:$0xff]
        %v965 = vld [vmem:[%s951 + $0x98] sm:$0xff]
        %v966 = vld [vmem:[%s951 + $0xa8] sm:$0xff]
        %v967 = vld [vmem:[%s951 + $0xb0] sm:$0xff]
        %v968 = vld [vmem:[%s951 + $0xc0] sm:$0xff]
        %v969 = vld [vmem:[%s951 + $0xc8] sm:$0xff]
        %v970 = vld [vmem:[%s951 + $0xd8] sm:$0xff]
        %v971 = vld [vmem:[%s951 + $0xe0] sm:$0xff]
        %v972 = vld [vmem:[%s951 + $0xf0] sm:$0xff]
        %v973 = vld [vmem:[%s951 + $0xf8] sm:$0xff]
        %v974 = vld [vmem:[%s951 + $0x108] sm:$0xff]
        %v975 = vld [vmem:[%s951 + $0x110] sm:$0xff]
        %v976 = vld [vmem:[%s951 + $0x120] sm:$0xff]
        %v977 = vld [vmem:[%s951 + $0x128] sm:$0xff]
        %v978 = vld [vmem:[%s951 + $0x138] sm:$0xff]
        %v979 = vld [vmem:[%s951 + $0x140] sm:$0xff]
        %v980 = vld [vmem:[%s951 + $0x150] sm:$0xff]
        %v981 = vld [vmem:[%s951 + $0x158] sm:$0xff]
        %v982 = vld [vmem:[%s951 + $0x168] sm:$0xff]
        %v983 = vld [vmem:[%s951 + $0x170] sm:$0xff]
        %s984 = scalar_lea.vmem %s1, 6
        %v985 = vld [vmem:[%s984] sm:$0x1]
        %v987 = vlaneseq
        %v988 = vshrl.u32 %v987, 7
        %v989 = vsub.s32 0, %v988
        %v990 = vrot.slane %v985, %v989
        %v992 = vmul.f32 %v952, %v990
        %v993 = vmul.f32 %v953, %v990
        %v994 = vmul.f32 %v954, %v990
        %v995 = vmul.f32 %v955, %v990
        %v996 = vmul.f32 %v956, %v990
        %v997 = vmul.f32 %v957, %v990
        %v998 = vmul.f32 %v958, %v990
        %v999 = vmul.f32 %v959, %v990
        %v1000 = vmul.f32 %v960, %v990
        %v1001 = vmul.f32 %v961, %v990
        %v1002 = vmul.f32 %v962, %v990
        %v1003 = vmul.f32 %v963, %v990
        %v1004 = vmul.f32 %v964, %v990
        %v1005 = vmul.f32 %v965, %v990
        %v1006 = vmul.f32 %v966, %v990
        %v1007 = vmul.f32 %v967, %v990
        %v1008 = vmul.f32 %v968, %v990
        %v1009 = vmul.f32 %v969, %v990
        %v1010 = vmul.f32 %v970, %v990
        %v1011 = vmul.f32 %v971, %v990
        %v1012 = vmul.f32 %v972, %v990
        %v1013 = vmul.f32 %v973, %v990
        %v1014 = vmul.f32 %v974, %v990
        %v1015 = vmul.f32 %v975, %v990
        %v1016 = vmul.f32 %v976, %v990
        %v1017 = vmul.f32 %v977, %v990
        %v1018 = vmul.f32 %v978, %v990
        %v1019 = vmul.f32 %v979, %v990
        %v1020 = vmul.f32 %v980, %v990
        %v1021 = vmul.f32 %v981, %v990
        %v1022 = vmul.f32 %v982, %v990
        %v1023 = vmul.f32 %v983, %v990
        %v1024 = vadd.f32 %v919, %v992
        %v1025 = vadd.f32 %v920, %v993
        %v1026 = vadd.f32 %v921, %v994
        %v1027 = vadd.f32 %v922, %v995
        %v1028 = vadd.f32 %v923, %v996
        %v1029 = vadd.f32 %v924, %v997
        %v1030 = vadd.f32 %v925, %v998
        %v1031 = vadd.f32 %v926, %v999
        %v1032 = vadd.f32 %v927, %v1000
        %v1033 = vadd.f32 %v928, %v1001
        %v1034 = vadd.f32 %v929, %v1002
        %v1035 = vadd.f32 %v930, %v1003
        %v1036 = vadd.f32 %v931, %v1004
        %v1037 = vadd.f32 %v932, %v1005
        %v1038 = vadd.f32 %v933, %v1006
        %v1039 = vadd.f32 %v934, %v1007
        %v1040 = vadd.f32 %v935, %v1008
        %v1041 = vadd.f32 %v936, %v1009
        %v1042 = vadd.f32 %v937, %v1010
        %v1043 = vadd.f32 %v938, %v1011
        %v1044 = vadd.f32 %v939, %v1012
        %v1045 = vadd.f32 %v940, %v1013
        %v1046 = vadd.f32 %v941, %v1014
        %v1047 = vadd.f32 %v942, %v1015
        %v1048 = vadd.f32 %v943, %v1016
        %v1049 = vadd.f32 %v944, %v1017
        %v1050 = vadd.f32 %v945, %v1018
        %v1051 = vadd.f32 %v946, %v1019
        %v1052 = vadd.f32 %v947, %v1020
        %v1053 = vadd.f32 %v948, %v1021
        %v1054 = vadd.f32 %v949, %v1022
        %v1055 = vadd.f32 %v950, %v1023
        %v1056 = vld [vmem:[%s951 + $0x1] sm:$0xff]
        %v1057 = vld [vmem:[%s951 + $0x9] sm:$0xff]
        %v1058 = vld [vmem:[%s951 + $0x19] sm:$0xff]
        %v1059 = vld [vmem:[%s951 + $0x21] sm:$0xff]
        %v1060 = vld [vmem:[%s951 + $0x31] sm:$0xff]
        %v1061 = vld [vmem:[%s951 + $0x39] sm:$0xff]
        %v1062 = vld [vmem:[%s951 + $0x49] sm:$0xff]
        %v1063 = vld [vmem:[%s951 + $0x51] sm:$0xff]
        %v1064 = vld [vmem:[%s951 + $0x61] sm:$0xff]
        %v1065 = vld [vmem:[%s951 + $0x69] sm:$0xff]
        %v1066 = vld [vmem:[%s951 + $0x79] sm:$0xff]
        %v1067 = vld [vmem:[%s951 + $0x81] sm:$0xff]
        %v1068 = vld [vmem:[%s951 + $0x91] sm:$0xff]
        %v1069 = vld [vmem:[%s951 + $0x99] sm:$0xff]
        %v1070 = vld [vmem:[%s951 + $0xa9] sm:$0xff]
        %v1071 = vld [vmem:[%s951 + $0xb1] sm:$0xff]
        %v1072 = vld [vmem:[%s951 + $0xc1] sm:$0xff]
        %v1073 = vld [vmem:[%s951 + $0xc9] sm:$0xff]
        %v1074 = vld [vmem:[%s951 + $0xd9] sm:$0xff]
        %v1075 = vld [vmem:[%s951 + $0xe1] sm:$0xff]
        %v1076 = vld [vmem:[%s951 + $0xf1] sm:$0xff]
        %v1077 = vld [vmem:[%s951 + $0xf9] sm:$0xff]
        %v1078 = vld [vmem:[%s951 + $0x109] sm:$0xff]
        %v1079 = vld [vmem:[%s951 + $0x111] sm:$0xff]
        %v1080 = vld [vmem:[%s951 + $0x121] sm:$0xff]
        %v1081 = vld [vmem:[%s951 + $0x129] sm:$0xff]
        %v1082 = vld [vmem:[%s951 + $0x139] sm:$0xff]
        %v1083 = vld [vmem:[%s951 + $0x141] sm:$0xff]
        %v1084 = vld [vmem:[%s951 + $0x151] sm:$0xff]
        %v1085 = vld [vmem:[%s951 + $0x159] sm:$0xff]
        %v1086 = vld [vmem:[%s951 + $0x169] sm:$0xff]
        %v1087 = vld [vmem:[%s951 + $0x171] sm:$0xff]
        %s1088 = scalar_lea.vmem %s1, 7
        %v1089 = vld [vmem:[%s1088] sm:$0x1]
        %v1091 = vlaneseq
        %v1092 = vshrl.u32 %v1091, 7
        %v1093 = vsub.s32 0, %v1092
        %v1094 = vrot.slane %v1089, %v1093
        %v1096 = vmul.f32 %v1056, %v1094
        %v1097 = vmul.f32 %v1057, %v1094
        %v1098 = vmul.f32 %v1058, %v1094
        %v1099 = vmul.f32 %v1059, %v1094
        %v1100 = vmul.f32 %v1060, %v1094
        %v1101 = vmul.f32 %v1061, %v1094
        %v1102 = vmul.f32 %v1062, %v1094
        %v1103 = vmul.f32 %v1063, %v1094
        %v1104 = vmul.f32 %v1064, %v1094
        %v1105 = vmul.f32 %v1065, %v1094
        %v1106 = vmul.f32 %v1066, %v1094
        %v1107 = vmul.f32 %v1067, %v1094
        %v1108 = vmul.f32 %v1068, %v1094
        %v1109 = vmul.f32 %v1069, %v1094
        %v1110 = vmul.f32 %v1070, %v1094
        %v1111 = vmul.f32 %v1071, %v1094
        %v1112 = vmul.f32 %v1072, %v1094
        %v1113 = vmul.f32 %v1073, %v1094
        %v1114 = vmul.f32 %v1074, %v1094
        %v1115 = vmul.f32 %v1075, %v1094
        %v1116 = vmul.f32 %v1076, %v1094
        %v1117 = vmul.f32 %v1077, %v1094
        %v1118 = vmul.f32 %v1078, %v1094
        %v1119 = vmul.f32 %v1079, %v1094
        %v1120 = vmul.f32 %v1080, %v1094
        %v1121 = vmul.f32 %v1081, %v1094
        %v1122 = vmul.f32 %v1082, %v1094
        %v1123 = vmul.f32 %v1083, %v1094
        %v1124 = vmul.f32 %v1084, %v1094
        %v1125 = vmul.f32 %v1085, %v1094
        %v1126 = vmul.f32 %v1086, %v1094
        %v1127 = vmul.f32 %v1087, %v1094
        %v1128 = vadd.f32 %v1024, %v1096
        %v1129 = vadd.f32 %v1025, %v1097
        %v1130 = vadd.f32 %v1026, %v1098
        %v1131 = vadd.f32 %v1027, %v1099
        %v1132 = vadd.f32 %v1028, %v1100
        %v1133 = vadd.f32 %v1029, %v1101
        %v1134 = vadd.f32 %v1030, %v1102
        %v1135 = vadd.f32 %v1031, %v1103
        %v1136 = vadd.f32 %v1032, %v1104
        %v1137 = vadd.f32 %v1033, %v1105
        %v1138 = vadd.f32 %v1034, %v1106
        %v1139 = vadd.f32 %v1035, %v1107
        %v1140 = vadd.f32 %v1036, %v1108
        %v1141 = vadd.f32 %v1037, %v1109
        %v1142 = vadd.f32 %v1038, %v1110
        %v1143 = vadd.f32 %v1039, %v1111
        %v1144 = vadd.f32 %v1040, %v1112
        %v1145 = vadd.f32 %v1041, %v1113
        %v1146 = vadd.f32 %v1042, %v1114
        %v1147 = vadd.f32 %v1043, %v1115
        %v1148 = vadd.f32 %v1044, %v1116
        %v1149 = vadd.f32 %v1045, %v1117
        %v1150 = vadd.f32 %v1046, %v1118
        %v1151 = vadd.f32 %v1047, %v1119
        %v1152 = vadd.f32 %v1048, %v1120
        %v1153 = vadd.f32 %v1049, %v1121
        %v1154 = vadd.f32 %v1050, %v1122
        %v1155 = vadd.f32 %v1051, %v1123
        %v1156 = vadd.f32 %v1052, %v1124
        %v1157 = vadd.f32 %v1053, %v1125
        %v1158 = vadd.f32 %v1054, %v1126
        %v1159 = vadd.f32 %v1055, %v1127
        %v1160 = vld [vmem:[%s951 + $0x2] sm:$0xff]
        %v1161 = vld [vmem:[%s951 + $0xa] sm:$0xff]
        %v1162 = vld [vmem:[%s951 + $0x1a] sm:$0xff]
        %v1163 = vld [vmem:[%s951 + $0x22] sm:$0xff]
        %v1164 = vld [vmem:[%s951 + $0x32] sm:$0xff]
        %v1165 = vld [vmem:[%s951 + $0x3a] sm:$0xff]
        %v1166 = vld [vmem:[%s951 + $0x4a] sm:$0xff]
        %v1167 = vld [vmem:[%s951 + $0x52] sm:$0xff]
        %v1168 = vld [vmem:[%s951 + $0x62] sm:$0xff]
        %v1169 = vld [vmem:[%s951 + $0x6a] sm:$0xff]
        %v1170 = vld [vmem:[%s951 + $0x7a] sm:$0xff]
        %v1171 = vld [vmem:[%s951 + $0x82] sm:$0xff]
        %v1172 = vld [vmem:[%s951 + $0x92] sm:$0xff]
        %v1173 = vld [vmem:[%s951 + $0x9a] sm:$0xff]
        %v1174 = vld [vmem:[%s951 + $0xaa] sm:$0xff]
        %v1175 = vld [vmem:[%s951 + $0xb2] sm:$0xff]
        %v1176 = vld [vmem:[%s951 + $0xc2] sm:$0xff]
        %v1177 = vld [vmem:[%s951 + $0xca] sm:$0xff]
        %v1178 = vld [vmem:[%s951 + $0xda] sm:$0xff]
        %v1179 = vld [vmem:[%s951 + $0xe2] sm:$0xff]
        %v1180 = vld [vmem:[%s951 + $0xf2] sm:$0xff]
        %v1181 = vld [vmem:[%s951 + $0xfa] sm:$0xff]
        %v1182 = vld [vmem:[%s951 + $0x10a] sm:$0xff]
        %v1183 = vld [vmem:[%s951 + $0x112] sm:$0xff]
        %v1184 = vld [vmem:[%s951 + $0x122] sm:$0xff]
        %v1185 = vld [vmem:[%s951 + $0x12a] sm:$0xff]
        %v1186 = vld [vmem:[%s951 + $0x13a] sm:$0xff]
        %v1187 = vld [vmem:[%s951 + $0x142] sm:$0xff]
        %v1188 = vld [vmem:[%s951 + $0x152] sm:$0xff]
        %v1189 = vld [vmem:[%s951 + $0x15a] sm:$0xff]
        %v1190 = vld [vmem:[%s951 + $0x16a] sm:$0xff]
        %v1191 = vld [vmem:[%s951 + $0x172] sm:$0xff]
        %s1192 = scalar_lea.vmem %s1, 8
        %v1193 = vld [vmem:[%s1192] sm:$0x1]
        %v1195 = vlaneseq
        %v1196 = vshrl.u32 %v1195, 7
        %v1197 = vsub.s32 0, %v1196
        %v1198 = vrot.slane %v1193, %v1197
        %v1200 = vmul.f32 %v1160, %v1198
        %v1201 = vmul.f32 %v1161, %v1198
        %v1202 = vmul.f32 %v1162, %v1198
        %v1203 = vmul.f32 %v1163, %v1198
        %v1204 = vmul.f32 %v1164, %v1198
        %v1205 = vmul.f32 %v1165, %v1198
        %v1206 = vmul.f32 %v1166, %v1198
        %v1207 = vmul.f32 %v1167, %v1198
        %v1208 = vmul.f32 %v1168, %v1198
        %v1209 = vmul.f32 %v1169, %v1198
        %v1210 = vmul.f32 %v1170, %v1198
        %v1211 = vmul.f32 %v1171, %v1198
        %v1212 = vmul.f32 %v1172, %v1198
        %v1213 = vmul.f32 %v1173, %v1198
        %v1214 = vmul.f32 %v1174, %v1198
        %v1215 = vmul.f32 %v1175, %v1198
        %v1216 = vmul.f32 %v1176, %v1198
        %v1217 = vmul.f32 %v1177, %v1198
        %v1218 = vmul.f32 %v1178, %v1198
        %v1219 = vmul.f32 %v1179, %v1198
        %v1220 = vmul.f32 %v1180, %v1198
        %v1221 = vmul.f32 %v1181, %v1198
        %v1222 = vmul.f32 %v1182, %v1198
        %v1223 = vmul.f32 %v1183, %v1198
        %v1224 = vmul.f32 %v1184, %v1198
        %v1225 = vmul.f32 %v1185, %v1198
        %v1226 = vmul.f32 %v1186, %v1198
        %v1227 = vmul.f32 %v1187, %v1198
        %v1228 = vmul.f32 %v1188, %v1198
        %v1229 = vmul.f32 %v1189, %v1198
        %v1230 = vmul.f32 %v1190, %v1198
        %v1231 = vmul.f32 %v1191, %v1198
        %v1232 = vadd.f32 %v1128, %v1200
        %v1233 = vadd.f32 %v1129, %v1201
        %v1234 = vadd.f32 %v1130, %v1202
        %v1235 = vadd.f32 %v1131, %v1203
        %v1236 = vadd.f32 %v1132, %v1204
        %v1237 = vadd.f32 %v1133, %v1205
        %v1238 = vadd.f32 %v1134, %v1206
        %v1239 = vadd.f32 %v1135, %v1207
        %v1240 = vadd.f32 %v1136, %v1208
        %v1241 = vadd.f32 %v1137, %v1209
        %v1242 = vadd.f32 %v1138, %v1210
        %v1243 = vadd.f32 %v1139, %v1211
        %v1244 = vadd.f32 %v1140, %v1212
        %v1245 = vadd.f32 %v1141, %v1213
        %v1246 = vadd.f32 %v1142, %v1214
        %v1247 = vadd.f32 %v1143, %v1215
        %v1248 = vadd.f32 %v1144, %v1216
        %v1249 = vadd.f32 %v1145, %v1217
        %v1250 = vadd.f32 %v1146, %v1218
        %v1251 = vadd.f32 %v1147, %v1219
        %v1252 = vadd.f32 %v1148, %v1220
        %v1253 = vadd.f32 %v1149, %v1221
        %v1254 = vadd.f32 %v1150, %v1222
        %v1255 = vadd.f32 %v1151, %v1223
        %v1256 = vadd.f32 %v1152, %v1224
        %v1257 = vadd.f32 %v1153, %v1225
        %v1258 = vadd.f32 %v1154, %v1226
        %v1259 = vadd.f32 %v1155, %v1227
        %v1260 = vadd.f32 %v1156, %v1228
        %v1261 = vadd.f32 %v1157, %v1229
        %v1262 = vadd.f32 %v1158, %v1230
        %v1263 = vadd.f32 %v1159, %v1231
        %v1264 = vmax.f32 %v1232, 0.0
        %v1265 = vmax.f32 %v1233, 0.0
        %v1266 = vmax.f32 %v1234, 0.0
        %v1267 = vmax.f32 %v1235, 0.0
        %v1268 = vmax.f32 %v1236, 0.0
        %v1269 = vmax.f32 %v1237, 0.0
        %v1270 = vmax.f32 %v1238, 0.0
        %v1271 = vmax.f32 %v1239, 0.0
        %v1272 = vmax.f32 %v1240, 0.0
        %v1273 = vmax.f32 %v1241, 0.0
        %v1274 = vmax.f32 %v1242, 0.0
        %v1275 = vmax.f32 %v1243, 0.0
        %v1276 = vmax.f32 %v1244, 0.0
        %v1277 = vmax.f32 %v1245, 0.0
        %v1278 = vmax.f32 %v1246, 0.0
        %v1279 = vmax.f32 %v1247, 0.0
        %v1280 = vmax.f32 %v1248, 0.0
        %v1281 = vmax.f32 %v1249, 0.0
        %v1282 = vmax.f32 %v1250, 0.0
        %v1283 = vmax.f32 %v1251, 0.0
        %v1284 = vmax.f32 %v1252, 0.0
        %v1285 = vmax.f32 %v1253, 0.0
        %v1286 = vmax.f32 %v1254, 0.0
        %v1287 = vmax.f32 %v1255, 0.0
        %v1288 = vmax.f32 %v1256, 0.0
        %v1289 = vmax.f32 %v1257, 0.0
        %v1290 = vmax.f32 %v1258, 0.0
        %v1291 = vmax.f32 %v1259, 0.0
        %v1292 = vmax.f32 %v1260, 0.0
        %v1293 = vmax.f32 %v1261, 0.0
        %v1294 = vmax.f32 %v1262, 0.0
        %v1295 = vmax.f32 %v1263, 0.0
        %1296 = vst.msk [vmem:[%s295 + $0x1] sm:$0xff] %vm249, %v1264
        %1297 = vst.msk [vmem:[%s295 + $0x9] sm:$0xff] %vm249, %v1265
        %1298 = vst.msk [vmem:[%s295 + $0x19] sm:$0xff] %vm249, %v1266
        %1299 = vst.msk [vmem:[%s295 + $0x21] sm:$0xff] %vm249, %v1267
        %1300 = vst.msk [vmem:[%s295 + $0x31] sm:$0xff] %vm249, %v1268
        %1301 = vst.msk [vmem:[%s295 + $0x39] sm:$0xff] %vm249, %v1269
        %1302 = vst.msk [vmem:[%s295 + $0x49] sm:$0xff] %vm249, %v1270
        %1303 = vst.msk [vmem:[%s295 + $0x51] sm:$0xff] %vm249, %v1271
        %1304 = vst.msk [vmem:[%s295 + $0x61] sm:$0xff] %vm249, %v1272
        %1305 = vst.msk [vmem:[%s295 + $0x69] sm:$0xff] %vm249, %v1273
        %1306 = vst.msk [vmem:[%s295 + $0x79] sm:$0xff] %vm249, %v1274
        %1307 = vst.msk [vmem:[%s295 + $0x81] sm:$0xff] %vm249, %v1275
        %1308 = vst.msk [vmem:[%s295 + $0x91] sm:$0xff] %vm249, %v1276
        %1309 = vst.msk [vmem:[%s295 + $0x99] sm:$0xff] %vm249, %v1277
        %1310 = vst.msk [vmem:[%s295 + $0xa9] sm:$0xff] %vm249, %v1278
        %1311 = vst.msk [vmem:[%s295 + $0xb1] sm:$0xff] %vm249, %v1279
        %1312 = vst.msk [vmem:[%s295 + $0xc1] sm:$0xff] %vm249, %v1280
        %1313 = vst.msk [vmem:[%s295 + $0xc9] sm:$0xff] %vm249, %v1281
        %1314 = vst.msk [vmem:[%s295 + $0xd9] sm:$0xff] %vm249, %v1282
        %1315 = vst.msk [vmem:[%s295 + $0xe1] sm:$0xff] %vm249, %v1283
        %1316 = vst.msk [vmem:[%s295 + $0xf1] sm:$0xff] %vm249, %v1284
        %1317 = vst.msk [vmem:[%s295 + $0xf9] sm:$0xff] %vm249, %v1285
        %1318 = vst.msk [vmem:[%s295 + $0x109] sm:$0xff] %vm249, %v1286
        %1319 = vst.msk [vmem:[%s295 + $0x111] sm:$0xff] %vm249, %v1287
        %1320 = vst.msk [vmem:[%s295 + $0x121] sm:$0xff] %vm249, %v1288
        %1321 = vst.msk [vmem:[%s295 + $0x129] sm:$0xff] %vm249, %v1289
        %1322 = vst.msk [vmem:[%s295 + $0x139] sm:$0xff] %vm249, %v1290
        %1323 = vst.msk [vmem:[%s295 + $0x141] sm:$0xff] %vm249, %v1291
        %1324 = vst.msk [vmem:[%s295 + $0x151] sm:$0xff] %vm249, %v1292
        %1325 = vst.msk [vmem:[%s295 + $0x159] sm:$0xff] %vm249, %v1293
        %1326 = vst.msk [vmem:[%s295 + $0x169] sm:$0xff] %vm249, %v1294
        %1327 = vst.msk [vmem:[%s295 + $0x171] sm:$0xff] %vm249, %v1295
        %v1328 = vld [vmem:[#allocation2] sm:$0xff]
        %v1329 = vld [vmem:[#allocation2 + $0x8] sm:$0xff]
        %v1330 = vld [vmem:[#allocation2 + $0x18] sm:$0xff]
        %v1331 = vld [vmem:[#allocation2 + $0x20] sm:$0xff]
        %v1332 = vld [vmem:[#allocation2 + $0x30] sm:$0xff]
        %v1333 = vld [vmem:[#allocation2 + $0x38] sm:$0xff]
        %v1334 = vld [vmem:[#allocation2 + $0x48] sm:$0xff]
        %v1335 = vld [vmem:[#allocation2 + $0x50] sm:$0xff]
        %v1336 = vld [vmem:[#allocation2 + $0x60] sm:$0xff]
        %v1337 = vld [vmem:[#allocation2 + $0x68] sm:$0xff]
        %v1338 = vld [vmem:[#allocation2 + $0x78] sm:$0xff]
        %v1339 = vld [vmem:[#allocation2 + $0x80] sm:$0xff]
        %v1340 = vld [vmem:[#allocation2 + $0x90] sm:$0xff]
        %v1341 = vld [vmem:[#allocation2 + $0x98] sm:$0xff]
        %v1342 = vld [vmem:[#allocation2 + $0xa8] sm:$0xff]
        %v1343 = vld [vmem:[#allocation2 + $0xb0] sm:$0xff]
        %v1344 = vld [vmem:[#allocation2 + $0xc0] sm:$0xff]
        %v1345 = vld [vmem:[#allocation2 + $0xc8] sm:$0xff]
        %v1346 = vld [vmem:[#allocation2 + $0xd8] sm:$0xff]
        %v1347 = vld [vmem:[#allocation2 + $0xe0] sm:$0xff]
        %v1348 = vld [vmem:[#allocation2 + $0xf0] sm:$0xff]
        %v1349 = vld [vmem:[#allocation2 + $0xf8] sm:$0xff]
        %v1350 = vld [vmem:[#allocation2 + $0x108] sm:$0xff]
        %v1351 = vld [vmem:[#allocation2 + $0x110] sm:$0xff]
        %v1352 = vld [vmem:[#allocation2 + $0x120] sm:$0xff]
        %v1353 = vld [vmem:[#allocation2 + $0x128] sm:$0xff]
        %v1354 = vld [vmem:[#allocation2 + $0x138] sm:$0xff]
        %v1355 = vld [vmem:[#allocation2 + $0x140] sm:$0xff]
        %v1356 = vld [vmem:[#allocation2 + $0x150] sm:$0xff]
        %v1357 = vld [vmem:[#allocation2 + $0x158] sm:$0xff]
        %v1358 = vld [vmem:[#allocation2 + $0x168] sm:$0xff]
        %v1359 = vld [vmem:[#allocation2 + $0x170] sm:$0xff]
        %v1360 = vpack.c.bf16 %v1329, %v1328
        %v1361 = vpack.c.bf16 %v1331, %v1330
        %v1362 = vpack.c.bf16 %v1333, %v1332
        %v1363 = vpack.c.bf16 %v1335, %v1334
        %v1364 = vpack.c.bf16 %v1337, %v1336
        %v1365 = vpack.c.bf16 %v1339, %v1338
        %v1366 = vpack.c.bf16 %v1341, %v1340
        %v1367 = vpack.c.bf16 %v1343, %v1342
        %v1368 = vpack.c.bf16 %v1345, %v1344
        %v1369 = vpack.c.bf16 %v1347, %v1346
        %v1370 = vpack.c.bf16 %v1349, %v1348
        %v1371 = vpack.c.bf16 %v1351, %v1350
        %v1372 = vpack.c.bf16 %v1353, %v1352
        %v1373 = vpack.c.bf16 %v1355, %v1354
        %v1374 = vpack.c.bf16 %v1357, %v1356
        %v1375 = vpack.c.bf16 %v1359, %v1358
        %1376 = vst.msk [vmem:[#allocation3] sm:$0xff] %vm249, %v1360
        %1377 = vst.msk [vmem:[#allocation3 + $0x28] sm:$0xff] %vm249, %v1361
        %1378 = vst.msk [vmem:[#allocation3 + $0x50] sm:$0xff] %vm249, %v1362
        %1379 = vst.msk [vmem:[#allocation3 + $0x78] sm:$0xff] %vm249, %v1363
        %1380 = vst.msk [vmem:[#allocation3 + $0xa0] sm:$0xff] %vm249, %v1364
        %1381 = vst.msk [vmem:[#allocation3 + $0xc8] sm:$0xff] %vm249, %v1365
        %1382 = vst.msk [vmem:[#allocation3 + $0xf0] sm:$0xff] %vm249, %v1366
        %1383 = vst.msk [vmem:[#allocation3 + $0x118] sm:$0xff] %vm249, %v1367
        %1384 = vst.msk [vmem:[#allocation3 + $0x140] sm:$0xff] %vm249, %v1368
        %1385 = vst.msk [vmem:[#allocation3 + $0x168] sm:$0xff] %vm249, %v1369
        %1386 = vst.msk [vmem:[#allocation3 + $0x190] sm:$0xff] %vm249, %v1370
        %1387 = vst.msk [vmem:[#allocation3 + $0x1b8] sm:$0xff] %vm249, %v1371
        %1388 = vst.msk [vmem:[#allocation3 + $0x1e0] sm:$0xff] %vm249, %v1372
        %1389 = vst.msk [vmem:[#allocation3 + $0x208] sm:$0xff] %vm249, %v1373
        %1390 = vst.msk [vmem:[#allocation3 + $0x230] sm:$0xff] %vm249, %v1374
        %1391 = vst.msk [vmem:[#allocation3 + $0x258] sm:$0xff] %vm249, %v1375
        %v1392 = vld [vmem:[#allocation2 + $0x1] sm:$0xff]
        %v1393 = vld [vmem:[#allocation2 + $0x9] sm:$0xff]
        %v1394 = vld [vmem:[#allocation2 + $0x19] sm:$0xff]
        %v1395 = vld [vmem:[#allocation2 + $0x21] sm:$0xff]
        %v1396 = vld [vmem:[#allocation2 + $0x31] sm:$0xff]
        %v1397 = vld [vmem:[#allocation2 + $0x39] sm:$0xff]
        %v1398 = vld [vmem:[#allocation2 + $0x49] sm:$0xff]
        %v1399 = vld [vmem:[#allocation2 + $0x51] sm:$0xff]
        %v1400 = vld [vmem:[#allocation2 + $0x61] sm:$0xff]
        %v1401 = vld [vmem:[#allocation2 + $0x69] sm:$0xff]
        %v1402 = vld [vmem:[#allocation2 + $0x79] sm:$0xff]
        %v1403 = vld [vmem:[#allocation2 + $0x81] sm:$0xff]
        %v1404 = vld [vmem:[#allocation2 + $0x91] sm:$0xff]
        %v1405 = vld [vmem:[#allocation2 + $0x99] sm:$0xff]
        %v1406 = vld [vmem:[#allocation2 + $0xa9] sm:$0xff]
        %v1407 = vld [vmem:[#allocation2 + $0xb1] sm:$0xff]
        %v1408 = vld [vmem:[#allocation2 + $0xc1] sm:$0xff]
        %v1409 = vld [vmem:[#allocation2 + $0xc9] sm:$0xff]
        %v1410 = vld [vmem:[#allocation2 + $0xd9] sm:$0xff]
        %v1411 = vld [vmem:[#allocation2 + $0xe1] sm:$0xff]
        %v1412 = vld [vmem:[#allocation2 + $0xf1] sm:$0xff]
        %v1413 = vld [vmem:[#allocation2 + $0xf9] sm:$0xff]
        %v1414 = vld [vmem:[#allocation2 + $0x109] sm:$0xff]
        %v1415 = vld [vmem:[#allocation2 + $0x111] sm:$0xff]
        %v1416 = vld [vmem:[#allocation2 + $0x121] sm:$0xff]
        %v1417 = vld [vmem:[#allocation2 + $0x129] sm:$0xff]
        %v1418 = vld [vmem:[#allocation2 + $0x139] sm:$0xff]
        %v1419 = vld [vmem:[#allocation2 + $0x141] sm:$0xff]
        %v1420 = vld [vmem:[#allocation2 + $0x151] sm:$0xff]
        %v1421 = vld [vmem:[#allocation2 + $0x159] sm:$0xff]
        %v1422 = vld [vmem:[#allocation2 + $0x169] sm:$0xff]
        %v1423 = vld [vmem:[#allocation2 + $0x171] sm:$0xff]
        %v1424 = vpack.c.bf16 %v1393, %v1392
        %v1425 = vpack.c.bf16 %v1395, %v1394
        %v1426 = vpack.c.bf16 %v1397, %v1396
        %v1427 = vpack.c.bf16 %v1399, %v1398
        %v1428 = vpack.c.bf16 %v1401, %v1400
        %v1429 = vpack.c.bf16 %v1403, %v1402
        %v1430 = vpack.c.bf16 %v1405, %v1404
        %v1431 = vpack.c.bf16 %v1407, %v1406
        %v1432 = vpack.c.bf16 %v1409, %v1408
        %v1433 = vpack.c.bf16 %v1411, %v1410
        %v1434 = vpack.c.bf16 %v1413, %v1412
        %v1435 = vpack.c.bf16 %v1415, %v1414
        %v1436 = vpack.c.bf16 %v1417, %v1416
        %v1437 = vpack.c.bf16 %v1419, %v1418
        %v1438 = vpack.c.bf16 %v1421, %v1420
        %v1439 = vpack.c.bf16 %v1423, %v1422
        %1456 = vrot.lane.b32.xlu0 %v1424, 64
        %v1457 = vpop.permute.xlu0 %1456
        %1458 = vrot.lane.b32.xlu0 %v1425, 64
        %v1459 = vpop.permute.xlu0 %1458
        %1460 = vrot.lane.b32.xlu0 %v1426, 64
        %v1461 = vpop.permute.xlu0 %1460
        %1462 = vrot.lane.b32.xlu0 %v1427, 64
        %v1463 = vpop.permute.xlu0 %1462
        %1464 = vrot.lane.b32.xlu0 %v1428, 64
        %v1465 = vpop.permute.xlu0 %1464
        %1466 = vrot.lane.b32.xlu0 %v1429, 64
        %v1467 = vpop.permute.xlu0 %1466
        %1468 = vrot.lane.b32.xlu0 %v1430, 64
        %v1469 = vpop.permute.xlu0 %1468
        %1470 = vrot.lane.b32.xlu0 %v1431, 64
        %v1471 = vpop.permute.xlu0 %1470
        %1472 = vrot.lane.b32.xlu0 %v1432, 64
        %v1473 = vpop.permute.xlu0 %1472
        %1474 = vrot.lane.b32.xlu0 %v1433, 64
        %v1475 = vpop.permute.xlu0 %1474
        %1476 = vrot.lane.b32.xlu0 %v1434, 64
        %v1477 = vpop.permute.xlu0 %1476
        %1478 = vrot.lane.b32.xlu0 %v1435, 64
        %v1479 = vpop.permute.xlu0 %1478
        %1480 = vrot.lane.b32.xlu0 %v1436, 64
        %v1481 = vpop.permute.xlu0 %1480
        %1482 = vrot.lane.b32.xlu0 %v1437, 64
        %v1483 = vpop.permute.xlu0 %1482
        %1484 = vrot.lane.b32.xlu0 %v1438, 64
        %v1485 = vpop.permute.xlu0 %1484
        %1486 = vrot.lane.b32.xlu0 %v1439, 64
        %v1487 = vpop.permute.xlu0 %1486
        %vm1504 = vcmask 1048064
        %1505 = vst.msk [vmem:[#allocation3] sm:$0xff] %vm1504, %v1457
        %1506 = vst.msk [vmem:[#allocation3 + $0x28] sm:$0xff] %vm1504, %v1459
        %1507 = vst.msk [vmem:[#allocation3 + $0x50] sm:$0xff] %vm1504, %v1461
        %1508 = vst.msk [vmem:[#allocation3 + $0x78] sm:$0xff] %vm1504, %v1463
        %1509 = vst.msk [vmem:[#allocation3 + $0xa0] sm:$0xff] %vm1504, %v1465
        %1510 = vst.msk [vmem:[#allocation3 + $0xc8] sm:$0xff] %vm1504, %v1467
        %1511 = vst.msk [vmem:[#allocation3 + $0xf0] sm:$0xff] %vm1504, %v1469
        %1512 = vst.msk [vmem:[#allocation3 + $0x118] sm:$0xff] %vm1504, %v1471
        %1513 = vst.msk [vmem:[#allocation3 + $0x140] sm:$0xff] %vm1504, %v1473
        %1514 = vst.msk [vmem:[#allocation3 + $0x168] sm:$0xff] %vm1504, %v1475
        %1515 = vst.msk [vmem:[#allocation3 + $0x190] sm:$0xff] %vm1504, %v1477
        %1516 = vst.msk [vmem:[#allocation3 + $0x1b8] sm:$0xff] %vm1504, %v1479
        %1517 = vst.msk [vmem:[#allocation3 + $0x1e0] sm:$0xff] %vm1504, %v1481
        %1518 = vst.msk [vmem:[#allocation3 + $0x208] sm:$0xff] %vm1504, %v1483
        %1519 = vst.msk [vmem:[#allocation3 + $0x230] sm:$0xff] %vm1504, %v1485
        %1520 = vst.msk [vmem:[#allocation3 + $0x258] sm:$0xff] %vm1504, %v1487
        %v1521 = vld [vmem:[#allocation2 + $0x2] sm:$0xff]
        %v1522 = vld [vmem:[#allocation2 + $0xa] sm:$0xff]
        %v1523 = vld [vmem:[#allocation2 + $0x1a] sm:$0xff]
        %v1524 = vld [vmem:[#allocation2 + $0x22] sm:$0xff]
        %v1525 = vld [vmem:[#allocation2 + $0x32] sm:$0xff]
        %v1526 = vld [vmem:[#allocation2 + $0x3a] sm:$0xff]
        %v1527 = vld [vmem:[#allocation2 + $0x4a] sm:$0xff]
        %v1528 = vld [vmem:[#allocation2 + $0x52] sm:$0xff]
        %v1529 = vld [vmem:[#allocation2 + $0x62] sm:$0xff]
        %v1530 = vld [vmem:[#allocation2 + $0x6a] sm:$0xff]
        %v1531 = vld [vmem:[#allocation2 + $0x7a] sm:$0xff]
        %v1532 = vld [vmem:[#allocation2 + $0x82] sm:$0xff]
        %v1533 = vld [vmem:[#allocation2 + $0x92] sm:$0xff]
        %v1534 = vld [vmem:[#allocation2 + $0x9a] sm:$0xff]
        %v1535 = vld [vmem:[#allocation2 + $0xaa] sm:$0xff]
        %v1536 = vld [vmem:[#allocation2 + $0xb2] sm:$0xff]
        %v1537 = vld [vmem:[#allocation2 + $0xc2] sm:$0xff]
        %v1538 = vld [vmem:[#allocation2 + $0xca] sm:$0xff]
        %v1539 = vld [vmem:[#allocation2 + $0xda] sm:$0xff]
        %v1540 = vld [vmem:[#allocation2 + $0xe2] sm:$0xff]
        %v1541 = vld [vmem:[#allocation2 + $0xf2] sm:$0xff]
        %v1542 = vld [vmem:[#allocation2 + $0xfa] sm:$0xff]
        %v1543 = vld [vmem:[#allocation2 + $0x10a] sm:$0xff]
        %v1544 = vld [vmem:[#allocation2 + $0x112] sm:$0xff]
        %v1545 = vld [vmem:[#allocation2 + $0x122] sm:$0xff]
        %v1546 = vld [vmem:[#allocation2 + $0x12a] sm:$0xff]
        %v1547 = vld [vmem:[#allocation2 + $0x13a] sm:$0xff]
        %v1548 = vld [vmem:[#allocation2 + $0x142] sm:$0xff]
        %v1549 = vld [vmem:[#allocation2 + $0x152] sm:$0xff]
        %v1550 = vld [vmem:[#allocation2 + $0x15a] sm:$0xff]
        %v1551 = vld [vmem:[#allocation2 + $0x16a] sm:$0xff]
        %v1552 = vld [vmem:[#allocation2 + $0x172] sm:$0xff]
        %v1553 = vpack.c.bf16 %v1522, %v1521
        %v1554 = vpack.c.bf16 %v1524, %v1523
        %v1555 = vpack.c.bf16 %v1526, %v1525
        %v1556 = vpack.c.bf16 %v1528, %v1527
        %v1557 = vpack.c.bf16 %v1530, %v1529
        %v1558 = vpack.c.bf16 %v1532, %v1531
        %v1559 = vpack.c.bf16 %v1534, %v1533
        %v1560 = vpack.c.bf16 %v1536, %v1535
        %v1561 = vpack.c.bf16 %v1538, %v1537
        %v1562 = vpack.c.bf16 %v1540, %v1539
        %v1563 = vpack.c.bf16 %v1542, %v1541
        %v1564 = vpack.c.bf16 %v1544, %v1543
        %v1565 = vpack.c.bf16 %v1546, %v1545
        %v1566 = vpack.c.bf16 %v1548, %v1547
        %v1567 = vpack.c.bf16 %v1550, %v1549
        %v1568 = vpack.c.bf16 %v1552, %v1551
        %1569 = vst.msk [vmem:[#allocation3 + $0x8] sm:$0xff] %vm249, %v1553
        %1570 = vst.msk [vmem:[#allocation3 + $0x30] sm:$0xff] %vm249, %v1554
        %1571 = vst.msk [vmem:[#allocation3 + $0x58] sm:$0xff] %vm249, %v1555
        %1572 = vst.msk [vmem:[#allocation3 + $0x80] sm:$0xff] %vm249, %v1556
        %1573 = vst.msk [vmem:[#allocation3 + $0xa8] sm:$0xff] %vm249, %v1557
        %1574 = vst.msk [vmem:[#allocation3 + $0xd0] sm:$0xff] %vm249, %v1558
        %1575 = vst.msk [vmem:[#allocation3 + $0xf8] sm:$0xff] %vm249, %v1559
        %1576 = vst.msk [vmem:[#allocation3 + $0x120] sm:$0xff] %vm249, %v1560
        %1577 = vst.msk [vmem:[#allocation3 + $0x148] sm:$0xff] %vm249, %v1561
        %1578 = vst.msk [vmem:[#allocation3 + $0x170] sm:$0xff] %vm249, %v1562
        %1579 = vst.msk [vmem:[#allocation3 + $0x198] sm:$0xff] %vm249, %v1563
        %1580 = vst.msk [vmem:[#allocation3 + $0x1c0] sm:$0xff] %vm249, %v1564
        %1581 = vst.msk [vmem:[#allocation3 + $0x1e8] sm:$0xff] %vm249, %v1565
        %1582 = vst.msk [vmem:[#allocation3 + $0x210] sm:$0xff] %vm249, %v1566
        %1583 = vst.msk [vmem:[#allocation3 + $0x238] sm:$0xff] %vm249, %v1567
        %1584 = vst.msk [vmem:[#allocation3 + $0x260] sm:$0xff] %vm249, %v1568
        %v1585 = vld [vmem:[%s295] sm:$0xff]
        %v1586 = vld [vmem:[%s295 + $0x8] sm:$0xff]
        %v1587 = vld [vmem:[%s295 + $0x18] sm:$0xff]
        %v1588 = vld [vmem:[%s295 + $0x20] sm:$0xff]
        %v1589 = vld [vmem:[%s295 + $0x30] sm:$0xff]
        %v1590 = vld [vmem:[%s295 + $0x38] sm:$0xff]
        %v1591 = vld [vmem:[%s295 + $0x48] sm:$0xff]
        %v1592 = vld [vmem:[%s295 + $0x50] sm:$0xff]
        %v1593 = vld [vmem:[%s295 + $0x60] sm:$0xff]
        %v1594 = vld [vmem:[%s295 + $0x68] sm:$0xff]
        %v1595 = vld [vmem:[%s295 + $0x78] sm:$0xff]
        %v1596 = vld [vmem:[%s295 + $0x80] sm:$0xff]
        %v1597 = vld [vmem:[%s295 + $0x90] sm:$0xff]
        %v1598 = vld [vmem:[%s295 + $0x98] sm:$0xff]
        %v1599 = vld [vmem:[%s295 + $0xa8] sm:$0xff]
        %v1600 = vld [vmem:[%s295 + $0xb0] sm:$0xff]
        %v1601 = vld [vmem:[%s295 + $0xc0] sm:$0xff]
        %v1602 = vld [vmem:[%s295 + $0xc8] sm:$0xff]
        %v1603 = vld [vmem:[%s295 + $0xd8] sm:$0xff]
        %v1604 = vld [vmem:[%s295 + $0xe0] sm:$0xff]
        %v1605 = vld [vmem:[%s295 + $0xf0] sm:$0xff]
        %v1606 = vld [vmem:[%s295 + $0xf8] sm:$0xff]
        %v1607 = vld [vmem:[%s295 + $0x108] sm:$0xff]
        %v1608 = vld [vmem:[%s295 + $0x110] sm:$0xff]
        %v1609 = vld [vmem:[%s295 + $0x120] sm:$0xff]
        %v1610 = vld [vmem:[%s295 + $0x128] sm:$0xff]
        %v1611 = vld [vmem:[%s295 + $0x138] sm:$0xff]
        %v1612 = vld [vmem:[%s295 + $0x140] sm:$0xff]
        %v1613 = vld [vmem:[%s295 + $0x150] sm:$0xff]
        %v1614 = vld [vmem:[%s295 + $0x158] sm:$0xff]
        %v1615 = vld [vmem:[%s295 + $0x168] sm:$0xff]
        %v1616 = vld [vmem:[%s295 + $0x170] sm:$0xff]
        %v1617 = vpack.c.bf16 %v1586, %v1585
        %v1618 = vpack.c.bf16 %v1588, %v1587
        %v1619 = vpack.c.bf16 %v1590, %v1589
        %v1620 = vpack.c.bf16 %v1592, %v1591
        %v1621 = vpack.c.bf16 %v1594, %v1593
        %v1622 = vpack.c.bf16 %v1596, %v1595
        %v1623 = vpack.c.bf16 %v1598, %v1597
        %v1624 = vpack.c.bf16 %v1600, %v1599
        %v1625 = vpack.c.bf16 %v1602, %v1601
        %v1626 = vpack.c.bf16 %v1604, %v1603
        %v1627 = vpack.c.bf16 %v1606, %v1605
        %v1628 = vpack.c.bf16 %v1608, %v1607
        %v1629 = vpack.c.bf16 %v1610, %v1609
        %v1630 = vpack.c.bf16 %v1612, %v1611
        %v1631 = vpack.c.bf16 %v1614, %v1613
        %v1632 = vpack.c.bf16 %v1616, %v1615
        %1649 = vrot.lane.b32.xlu0 %v1617, 64
        %v1650 = vpop.permute.xlu0 %1649
        %1651 = vrot.lane.b32.xlu0 %v1618, 64
        %v1652 = vpop.permute.xlu0 %1651
        %1653 = vrot.lane.b32.xlu0 %v1619, 64
        %v1654 = vpop.permute.xlu0 %1653
        %1655 = vrot.lane.b32.xlu0 %v1620, 64
        %v1656 = vpop.permute.xlu0 %1655
        %1657 = vrot.lane.b32.xlu0 %v1621, 64
        %v1658 = vpop.permute.xlu0 %1657
        %1659 = vrot.lane.b32.xlu0 %v1622, 64
        %v1660 = vpop.permute.xlu0 %1659
        %1661 = vrot.lane.b32.xlu0 %v1623, 64
        %v1662 = vpop.permute.xlu0 %1661
        %1663 = vrot.lane.b32.xlu0 %v1624, 64
        %v1664 = vpop.permute.xlu0 %1663
        %1665 = vrot.lane.b32.xlu0 %v1625, 64
        %v1666 = vpop.permute.xlu0 %1665
        %1667 = vrot.lane.b32.xlu0 %v1626, 64
        %v1668 = vpop.permute.xlu0 %1667
        %1669 = vrot.lane.b32.xlu0 %v1627, 64
        %v1670 = vpop.permute.xlu0 %1669
        %1671 = vrot.lane.b32.xlu0 %v1628, 64
        %v1672 = vpop.permute.xlu0 %1671
        %1673 = vrot.lane.b32.xlu0 %v1629, 64
        %v1674 = vpop.permute.xlu0 %1673
        %1675 = vrot.lane.b32.xlu0 %v1630, 64
        %v1676 = vpop.permute.xlu0 %1675
        %1677 = vrot.lane.b32.xlu0 %v1631, 64
        %v1678 = vpop.permute.xlu0 %1677
        %1679 = vrot.lane.b32.xlu0 %v1632, 64
        %v1680 = vpop.permute.xlu0 %1679
        %1697 = vst.msk [vmem:[#allocation3 + $0x8] sm:$0xff] %vm1504, %v1650
        %1698 = vst.msk [vmem:[#allocation3 + $0x30] sm:$0xff] %vm1504, %v1652
        %1699 = vst.msk [vmem:[#allocation3 + $0x58] sm:$0xff] %vm1504, %v1654
        %1700 = vst.msk [vmem:[#allocation3 + $0x80] sm:$0xff] %vm1504, %v1656
        %1701 = vst.msk [vmem:[#allocation3 + $0xa8] sm:$0xff] %vm1504, %v1658
        %1702 = vst.msk [vmem:[#allocation3 + $0xd0] sm:$0xff] %vm1504, %v1660
        %1703 = vst.msk [vmem:[#allocation3 + $0xf8] sm:$0xff] %vm1504, %v1662
        %1704 = vst.msk [vmem:[#allocation3 + $0x120] sm:$0xff] %vm1504, %v1664
        %1705 = vst.msk [vmem:[#allocation3 + $0x148] sm:$0xff] %vm1504, %v1666
        %1706 = vst.msk [vmem:[#allocation3 + $0x170] sm:$0xff] %vm1504, %v1668
        %1707 = vst.msk [vmem:[#allocation3 + $0x198] sm:$0xff] %vm1504, %v1670
        %1708 = vst.msk [vmem:[#allocation3 + $0x1c0] sm:$0xff] %vm1504, %v1672
        %1709 = vst.msk [vmem:[#allocation3 + $0x1e8] sm:$0xff] %vm1504, %v1674
        %1710 = vst.msk [vmem:[#allocation3 + $0x210] sm:$0xff] %vm1504, %v1676
        %1711 = vst.msk [vmem:[#allocation3 + $0x238] sm:$0xff] %vm1504, %v1678
        %1712 = vst.msk [vmem:[#allocation3 + $0x260] sm:$0xff] %vm1504, %v1680
        %v1713 = vld [vmem:[%s295 + $0x1] sm:$0xff]
        %v1714 = vld [vmem:[%s295 + $0x9] sm:$0xff]
        %v1715 = vld [vmem:[%s295 + $0x19] sm:$0xff]
        %v1716 = vld [vmem:[%s295 + $0x21] sm:$0xff]
        %v1717 = vld [vmem:[%s295 + $0x31] sm:$0xff]
        %v1718 = vld [vmem:[%s295 + $0x39] sm:$0xff]
        %v1719 = vld [vmem:[%s295 + $0x49] sm:$0xff]
        %v1720 = vld [vmem:[%s295 + $0x51] sm:$0xff]
        %v1721 = vld [vmem:[%s295 + $0x61] sm:$0xff]
        %v1722 = vld [vmem:[%s295 + $0x69] sm:$0xff]
        %v1723 = vld [vmem:[%s295 + $0x79] sm:$0xff]
        %v1724 = vld [vmem:[%s295 + $0x81] sm:$0xff]
        %v1725 = vld [vmem:[%s295 + $0x91] sm:$0xff]
        %v1726 = vld [vmem:[%s295 + $0x99] sm:$0xff]
        %v1727 = vld [vmem:[%s295 + $0xa9] sm:$0xff]
        %v1728 = vld [vmem:[%s295 + $0xb1] sm:$0xff]
        %v1729 = vld [vmem:[%s295 + $0xc1] sm:$0xff]
        %v1730 = vld [vmem:[%s295 + $0xc9] sm:$0xff]
        %v1731 = vld [vmem:[%s295 + $0xd9] sm:$0xff]
        %v1732 = vld [vmem:[%s295 + $0xe1] sm:$0xff]
        %v1733 = vld [vmem:[%s295 + $0xf1] sm:$0xff]
        %v1734 = vld [vmem:[%s295 + $0xf9] sm:$0xff]
        %v1735 = vld [vmem:[%s295 + $0x109] sm:$0xff]
        %v1736 = vld [vmem:[%s295 + $0x111] sm:$0xff]
        %v1737 = vld [vmem:[%s295 + $0x121] sm:$0xff]
        %v1738 = vld [vmem:[%s295 + $0x129] sm:$0xff]
        %v1739 = vld [vmem:[%s295 + $0x139] sm:$0xff]
        %v1740 = vld [vmem:[%s295 + $0x141] sm:$0xff]
        %v1741 = vld [vmem:[%s295 + $0x151] sm:$0xff]
        %v1742 = vld [vmem:[%s295 + $0x159] sm:$0xff]
        %v1743 = vld [vmem:[%s295 + $0x169] sm:$0xff]
        %v1744 = vld [vmem:[%s295 + $0x171] sm:$0xff]
        %v1745 = vpack.c.bf16 %v1714, %v1713
        %v1746 = vpack.c.bf16 %v1716, %v1715
        %v1747 = vpack.c.bf16 %v1718, %v1717
        %v1748 = vpack.c.bf16 %v1720, %v1719
        %v1749 = vpack.c.bf16 %v1722, %v1721
        %v1750 = vpack.c.bf16 %v1724, %v1723
        %v1751 = vpack.c.bf16 %v1726, %v1725
        %v1752 = vpack.c.bf16 %v1728, %v1727
        %v1753 = vpack.c.bf16 %v1730, %v1729
        %v1754 = vpack.c.bf16 %v1732, %v1731
        %v1755 = vpack.c.bf16 %v1734, %v1733
        %v1756 = vpack.c.bf16 %v1736, %v1735
        %v1757 = vpack.c.bf16 %v1738, %v1737
        %v1758 = vpack.c.bf16 %v1740, %v1739
        %v1759 = vpack.c.bf16 %v1742, %v1741
        %v1760 = vpack.c.bf16 %v1744, %v1743
        %1761 = vst.msk [vmem:[#allocation3 + $0x10] sm:$0xff] %vm249, %v1745
        %1762 = vst.msk [vmem:[#allocation3 + $0x38] sm:$0xff] %vm249, %v1746
        %1763 = vst.msk [vmem:[#allocation3 + $0x60] sm:$0xff] %vm249, %v1747
        %1764 = vst.msk [vmem:[#allocation3 + $0x88] sm:$0xff] %vm249, %v1748
        %1765 = vst.msk [vmem:[#allocation3 + $0xb0] sm:$0xff] %vm249, %v1749
        %1766 = vst.msk [vmem:[#allocation3 + $0xd8] sm:$0xff] %vm249, %v1750
        %1767 = vst.msk [vmem:[#allocation3 + $0x100] sm:$0xff] %vm249, %v1751
        %1768 = vst.msk [vmem:[#allocation3 + $0x128] sm:$0xff] %vm249, %v1752
        %1769 = vst.msk [vmem:[#allocation3 + $0x150] sm:$0xff] %vm249, %v1753
        %1770 = vst.msk [vmem:[#allocation3 + $0x178] sm:$0xff] %vm249, %v1754
        %1771 = vst.msk [vmem:[#allocation3 + $0x1a0] sm:$0xff] %vm249, %v1755
        %1772 = vst.msk [vmem:[#allocation3 + $0x1c8] sm:$0xff] %vm249, %v1756
        %1773 = vst.msk [vmem:[#allocation3 + $0x1f0] sm:$0xff] %vm249, %v1757
        %1774 = vst.msk [vmem:[#allocation3 + $0x218] sm:$0xff] %vm249, %v1758
        %1775 = vst.msk [vmem:[#allocation3 + $0x240] sm:$0xff] %vm249, %v1759
        %1776 = vst.msk [vmem:[#allocation3 + $0x268] sm:$0xff] %vm249, %v1760
        %v1777 = vld [vmem:[%s295 + $0x2] sm:$0xff]
        %v1778 = vld [vmem:[%s295 + $0xa] sm:$0xff]
        %v1779 = vld [vmem:[%s295 + $0x1a] sm:$0xff]
        %v1780 = vld [vmem:[%s295 + $0x22] sm:$0xff]
        %v1781 = vld [vmem:[%s295 + $0x32] sm:$0xff]
        %v1782 = vld [vmem:[%s295 + $0x3a] sm:$0xff]
        %v1783 = vld [vmem:[%s295 + $0x4a] sm:$0xff]
        %v1784 = vld [vmem:[%s295 + $0x52] sm:$0xff]
        %v1785 = vld [vmem:[%s295 + $0x62] sm:$0xff]
        %v1786 = vld [vmem:[%s295 + $0x6a] sm:$0xff]
        %v1787 = vld [vmem:[%s295 + $0x7a] sm:$0xff]
        %v1788 = vld [vmem:[%s295 + $0x82] sm:$0xff]
        %v1789 = vld [vmem:[%s295 + $0x92] sm:$0xff]
        %v1790 = vld [vmem:[%s295 + $0x9a] sm:$0xff]
        %v1791 = vld [vmem:[%s295 + $0xaa] sm:$0xff]
        %v1792 = vld [vmem:[%s295 + $0xb2] sm:$0xff]
        %v1793 = vld [vmem:[%s295 + $0xc2] sm:$0xff]
        %v1794 = vld [vmem:[%s295 + $0xca] sm:$0xff]
        %v1795 = vld [vmem:[%s295 + $0xda] sm:$0xff]
        %v1796 = vld [vmem:[%s295 + $0xe2] sm:$0xff]
        %v1797 = vld [vmem:[%s295 + $0xf2] sm:$0xff]
        %v1798 = vld [vmem:[%s295 + $0xfa] sm:$0xff]
        %v1799 = vld [vmem:[%s295 + $0x10a] sm:$0xff]
        %v1800 = vld [vmem:[%s295 + $0x112] sm:$0xff]
        %v1801 = vld [vmem:[%s295 + $0x122] sm:$0xff]
        %v1802 = vld [vmem:[%s295 + $0x12a] sm:$0xff]
        %v1803 = vld [vmem:[%s295 + $0x13a] sm:$0xff]
        %v1804 = vld [vmem:[%s295 + $0x142] sm:$0xff]
        %v1805 = vld [vmem:[%s295 + $0x152] sm:$0xff]
        %v1806 = vld [vmem:[%s295 + $0x15a] sm:$0xff]
        %v1807 = vld [vmem:[%s295 + $0x16a] sm:$0xff]
        %v1808 = vld [vmem:[%s295 + $0x172] sm:$0xff]
        %v1809 = vpack.c.bf16 %v1778, %v1777
        %v1810 = vpack.c.bf16 %v1780, %v1779
        %v1811 = vpack.c.bf16 %v1782, %v1781
        %v1812 = vpack.c.bf16 %v1784, %v1783
        %v1813 = vpack.c.bf16 %v1786, %v1785
        %v1814 = vpack.c.bf16 %v1788, %v1787
        %v1815 = vpack.c.bf16 %v1790, %v1789
        %v1816 = vpack.c.bf16 %v1792, %v1791
        %v1817 = vpack.c.bf16 %v1794, %v1793
        %v1818 = vpack.c.bf16 %v1796, %v1795
        %v1819 = vpack.c.bf16 %v1798, %v1797
        %v1820 = vpack.c.bf16 %v1800, %v1799
        %v1821 = vpack.c.bf16 %v1802, %v1801
        %v1822 = vpack.c.bf16 %v1804, %v1803
        %v1823 = vpack.c.bf16 %v1806, %v1805
        %v1824 = vpack.c.bf16 %v1808, %v1807
        %1841 = vrot.lane.b32.xlu0 %v1809, 64
        %v1842 = vpop.permute.xlu0 %1841
        %1843 = vrot.lane.b32.xlu0 %v1810, 64
        %v1844 = vpop.permute.xlu0 %1843
        %1845 = vrot.lane.b32.xlu0 %v1811, 64
        %v1846 = vpop.permute.xlu0 %1845
        %1847 = vrot.lane.b32.xlu0 %v1812, 64
        %v1848 = vpop.permute.xlu0 %1847
        %1849 = vrot.lane.b32.xlu0 %v1813, 64
        %v1850 = vpop.permute.xlu0 %1849
        %1851 = vrot.lane.b32.xlu0 %v1814, 64
        %v1852 = vpop.permute.xlu0 %1851
        %1853 = vrot.lane.b32.xlu0 %v1815, 64
        %v1854 = vpop.permute.xlu0 %1853
        %1855 = vrot.lane.b32.xlu0 %v1816, 64
        %v1856 = vpop.permute.xlu0 %1855
        %1857 = vrot.lane.b32.xlu0 %v1817, 64
        %v1858 = vpop.permute.xlu0 %1857
        %1859 = vrot.lane.b32.xlu0 %v1818, 64
        %v1860 = vpop.permute.xlu0 %1859
        %1861 = vrot.lane.b32.xlu0 %v1819, 64
        %v1862 = vpop.permute.xlu0 %1861
        %1863 = vrot.lane.b32.xlu0 %v1820, 64
        %v1864 = vpop.permute.xlu0 %1863
        %1865 = vrot.lane.b32.xlu0 %v1821, 64
        %v1866 = vpop.permute.xlu0 %1865
        %1867 = vrot.lane.b32.xlu0 %v1822, 64
        %v1868 = vpop.permute.xlu0 %1867
        %1869 = vrot.lane.b32.xlu0 %v1823, 64
        %v1870 = vpop.permute.xlu0 %1869
        %1871 = vrot.lane.b32.xlu0 %v1824, 64
        %v1872 = vpop.permute.xlu0 %1871
        %1889 = vst.msk [vmem:[#allocation3 + $0x10] sm:$0xff] %vm1504, %v1842
        %1890 = vst.msk [vmem:[#allocation3 + $0x38] sm:$0xff] %vm1504, %v1844
        %1891 = vst.msk [vmem:[#allocation3 + $0x60] sm:$0xff] %vm1504, %v1846
        %1892 = vst.msk [vmem:[#allocation3 + $0x88] sm:$0xff] %vm1504, %v1848
        %1893 = vst.msk [vmem:[#allocation3 + $0xb0] sm:$0xff] %vm1504, %v1850
        %1894 = vst.msk [vmem:[#allocation3 + $0xd8] sm:$0xff] %vm1504, %v1852
        %1895 = vst.msk [vmem:[#allocation3 + $0x100] sm:$0xff] %vm1504, %v1854
        %1896 = vst.msk [vmem:[#allocation3 + $0x128] sm:$0xff] %vm1504, %v1856
        %1897 = vst.msk [vmem:[#allocation3 + $0x150] sm:$0xff] %vm1504, %v1858
        %1898 = vst.msk [vmem:[#allocation3 + $0x178] sm:$0xff] %vm1504, %v1860
        %1899 = vst.msk [vmem:[#allocation3 + $0x1a0] sm:$0xff] %vm1504, %v1862
        %1900 = vst.msk [vmem:[#allocation3 + $0x1c8] sm:$0xff] %vm1504, %v1864
        %1901 = vst.msk [vmem:[#allocation3 + $0x1f0] sm:$0xff] %vm1504, %v1866
        %1902 = vst.msk [vmem:[#allocation3 + $0x218] sm:$0xff] %vm1504, %v1868
        %1903 = vst.msk [vmem:[#allocation3 + $0x240] sm:$0xff] %vm1504, %v1870
        %1904 = vst.msk [vmem:[#allocation3 + $0x268] sm:$0xff] %vm1504, %v1872
        %v1905 = vld [vmem:[%s951] sm:$0xff]
        %v1906 = vld [vmem:[%s951 + $0x8] sm:$0xff]
        %v1907 = vld [vmem:[%s951 + $0x18] sm:$0xff]
        %v1908 = vld [vmem:[%s951 + $0x20] sm:$0xff]
        %v1909 = vld [vmem:[%s951 + $0x30] sm:$0xff]
        %v1910 = vld [vmem:[%s951 + $0x38] sm:$0xff]
        %v1911 = vld [vmem:[%s951 + $0x48] sm:$0xff]
        %v1912 = vld [vmem:[%s951 + $0x50] sm:$0xff]
        %v1913 = vld [vmem:[%s951 + $0x60] sm:$0xff]
        %v1914 = vld [vmem:[%s951 + $0x68] sm:$0xff]
        %v1915 = vld [vmem:[%s951 + $0x78] sm:$0xff]
        %v1916 = vld [vmem:[%s951 + $0x80] sm:$0xff]
        %v1917 = vld [vmem:[%s951 + $0x90] sm:$0xff]
        %v1918 = vld [vmem:[%s951 + $0x98] sm:$0xff]
        %v1919 = vld [vmem:[%s951 + $0xa8] sm:$0xff]
        %v1920 = vld [vmem:[%s951 + $0xb0] sm:$0xff]
        %v1921 = vld [vmem:[%s951 + $0xc0] sm:$0xff]
        %v1922 = vld [vmem:[%s951 + $0xc8] sm:$0xff]
        %v1923 = vld [vmem:[%s951 + $0xd8] sm:$0xff]
        %v1924 = vld [vmem:[%s951 + $0xe0] sm:$0xff]
        %v1925 = vld [vmem:[%s951 + $0xf0] sm:$0xff]
        %v1926 = vld [vmem:[%s951 + $0xf8] sm:$0xff]
        %v1927 = vld [vmem:[%s951 + $0x108] sm:$0xff]
        %v1928 = vld [vmem:[%s951 + $0x110] sm:$0xff]
        %v1929 = vld [vmem:[%s951 + $0x120] sm:$0xff]
        %v1930 = vld [vmem:[%s951 + $0x128] sm:$0xff]
        %v1931 = vld [vmem:[%s951 + $0x138] sm:$0xff]
        %v1932 = vld [vmem:[%s951 + $0x140] sm:$0xff]
        %v1933 = vld [vmem:[%s951 + $0x150] sm:$0xff]
        %v1934 = vld [vmem:[%s951 + $0x158] sm:$0xff]
        %v1935 = vld [vmem:[%s951 + $0x168] sm:$0xff]
        %v1936 = vld [vmem:[%s951 + $0x170] sm:$0xff]
        %v1937 = vpack.c.bf16 %v1906, %v1905
        %v1938 = vpack.c.bf16 %v1908, %v1907
        %v1939 = vpack.c.bf16 %v1910, %v1909
        %v1940 = vpack.c.bf16 %v1912, %v1911
        %v1941 = vpack.c.bf16 %v1914, %v1913
        %v1942 = vpack.c.bf16 %v1916, %v1915
        %v1943 = vpack.c.bf16 %v1918, %v1917
        %v1944 = vpack.c.bf16 %v1920, %v1919
        %v1945 = vpack.c.bf16 %v1922, %v1921
        %v1946 = vpack.c.bf16 %v1924, %v1923
        %v1947 = vpack.c.bf16 %v1926, %v1925
        %v1948 = vpack.c.bf16 %v1928, %v1927
        %v1949 = vpack.c.bf16 %v1930, %v1929
        %v1950 = vpack.c.bf16 %v1932, %v1931
        %v1951 = vpack.c.bf16 %v1934, %v1933
        %v1952 = vpack.c.bf16 %v1936, %v1935
        %1953 = vst.msk [vmem:[#allocation3 + $0x18] sm:$0xff] %vm249, %v1937
        %1954 = vst.msk [vmem:[#allocation3 + $0x40] sm:$0xff] %vm249, %v1938
        %1955 = vst.msk [vmem:[#allocation3 + $0x68] sm:$0xff] %vm249, %v1939
        %1956 = vst.msk [vmem:[#allocation3 + $0x90] sm:$0xff] %vm249, %v1940
        %1957 = vst.msk [vmem:[#allocation3 + $0xb8] sm:$0xff] %vm249, %v1941
        %1958 = vst.msk [vmem:[#allocation3 + $0xe0] sm:$0xff] %vm249, %v1942
        %1959 = vst.msk [vmem:[#allocation3 + $0x108] sm:$0xff] %vm249, %v1943
        %1960 = vst.msk [vmem:[#allocation3 + $0x130] sm:$0xff] %vm249, %v1944
        %1961 = vst.msk [vmem:[#allocation3 + $0x158] sm:$0xff] %vm249, %v1945
        %1962 = vst.msk [vmem:[#allocation3 + $0x180] sm:$0xff] %vm249, %v1946
        %1963 = vst.msk [vmem:[#allocation3 + $0x1a8] sm:$0xff] %vm249, %v1947
        %1964 = vst.msk [vmem:[#allocation3 + $0x1d0] sm:$0xff] %vm249, %v1948
        %1965 = vst.msk [vmem:[#allocation3 + $0x1f8] sm:$0xff] %vm249, %v1949
        %1966 = vst.msk [vmem:[#allocation3 + $0x220] sm:$0xff] %vm249, %v1950
        %1967 = vst.msk [vmem:[#allocation3 + $0x248] sm:$0xff] %vm249, %v1951
        %1968 = vst.msk [vmem:[#allocation3 + $0x270] sm:$0xff] %vm249, %v1952
        %v1969 = vld [vmem:[%s951 + $0x1] sm:$0xff]
        %v1970 = vld [vmem:[%s951 + $0x9] sm:$0xff]
        %v1971 = vld [vmem:[%s951 + $0x19] sm:$0xff]
        %v1972 = vld [vmem:[%s951 + $0x21] sm:$0xff]
        %v1973 = vld [vmem:[%s951 + $0x31] sm:$0xff]
        %v1974 = vld [vmem:[%s951 + $0x39] sm:$0xff]
        %v1975 = vld [vmem:[%s951 + $0x49] sm:$0xff]
        %v1976 = vld [vmem:[%s951 + $0x51] sm:$0xff]
        %v1977 = vld [vmem:[%s951 + $0x61] sm:$0xff]
        %v1978 = vld [vmem:[%s951 + $0x69] sm:$0xff]
        %v1979 = vld [vmem:[%s951 + $0x79] sm:$0xff]
        %v1980 = vld [vmem:[%s951 + $0x81] sm:$0xff]
        %v1981 = vld [vmem:[%s951 + $0x91] sm:$0xff]
        %v1982 = vld [vmem:[%s951 + $0x99] sm:$0xff]
        %v1983 = vld [vmem:[%s951 + $0xa9] sm:$0xff]
        %v1984 = vld [vmem:[%s951 + $0xb1] sm:$0xff]
        %v1985 = vld [vmem:[%s951 + $0xc1] sm:$0xff]
        %v1986 = vld [vmem:[%s951 + $0xc9] sm:$0xff]
        %v1987 = vld [vmem:[%s951 + $0xd9] sm:$0xff]
        %v1988 = vld [vmem:[%s951 + $0xe1] sm:$0xff]
        %v1989 = vld [vmem:[%s951 + $0xf1] sm:$0xff]
        %v1990 = vld [vmem:[%s951 + $0xf9] sm:$0xff]
        %v1991 = vld [vmem:[%s951 + $0x109] sm:$0xff]
        %v1992 = vld [vmem:[%s951 + $0x111] sm:$0xff]
        %v1993 = vld [vmem:[%s951 + $0x121] sm:$0xff]
        %v1994 = vld [vmem:[%s951 + $0x129] sm:$0xff]
        %v1995 = vld [vmem:[%s951 + $0x139] sm:$0xff]
        %v1996 = vld [vmem:[%s951 + $0x141] sm:$0xff]
        %v1997 = vld [vmem:[%s951 + $0x151] sm:$0xff]
        %v1998 = vld [vmem:[%s951 + $0x159] sm:$0xff]
        %v1999 = vld [vmem:[%s951 + $0x169] sm:$0xff]
        %v2000 = vld [vmem:[%s951 + $0x171] sm:$0xff]
        %v2001 = vpack.c.bf16 %v1970, %v1969
        %v2002 = vpack.c.bf16 %v1972, %v1971
        %v2003 = vpack.c.bf16 %v1974, %v1973
        %v2004 = vpack.c.bf16 %v1976, %v1975
        %v2005 = vpack.c.bf16 %v1978, %v1977
        %v2006 = vpack.c.bf16 %v1980, %v1979
        %v2007 = vpack.c.bf16 %v1982, %v1981
        %v2008 = vpack.c.bf16 %v1984, %v1983
        %v2009 = vpack.c.bf16 %v1986, %v1985
        %v2010 = vpack.c.bf16 %v1988, %v1987
        %v2011 = vpack.c.bf16 %v1990, %v1989
        %v2012 = vpack.c.bf16 %v1992, %v1991
        %v2013 = vpack.c.bf16 %v1994, %v1993
        %v2014 = vpack.c.bf16 %v1996, %v1995
        %v2015 = vpack.c.bf16 %v1998, %v1997
        %v2016 = vpack.c.bf16 %v2000, %v1999
        %2033 = vrot.lane.b32.xlu0 %v2001, 64
        %v2034 = vpop.permute.xlu0 %2033
        %2035 = vrot.lane.b32.xlu0 %v2002, 64
        %v2036 = vpop.permute.xlu0 %2035
        %2037 = vrot.lane.b32.xlu0 %v2003, 64
        %v2038 = vpop.permute.xlu0 %2037
        %2039 = vrot.lane.b32.xlu0 %v2004, 64
        %v2040 = vpop.permute.xlu0 %2039
        %2041 = vrot.lane.b32.xlu0 %v2005, 64
        %v2042 = vpop.permute.xlu0 %2041
        %2043 = vrot.lane.b32.xlu0 %v2006, 64
        %v2044 = vpop.permute.xlu0 %2043
        %2045 = vrot.lane.b32.xlu0 %v2007, 64
        %v2046 = vpop.permute.xlu0 %2045
        %2047 = vrot.lane.b32.xlu0 %v2008, 64
        %v2048 = vpop.permute.xlu0 %2047
        %2049 = vrot.lane.b32.xlu0 %v2009, 64
        %v2050 = vpop.permute.xlu0 %2049
        %2051 = vrot.lane.b32.xlu0 %v2010, 64
        %v2052 = vpop.permute.xlu0 %2051
        %2053 = vrot.lane.b32.xlu0 %v2011, 64
        %v2054 = vpop.permute.xlu0 %2053
        %2055 = vrot.lane.b32.xlu0 %v2012, 64
        %v2056 = vpop.permute.xlu0 %2055
        %2057 = vrot.lane.b32.xlu0 %v2013, 64
        %v2058 = vpop.permute.xlu0 %2057
        %2059 = vrot.lane.b32.xlu0 %v2014, 64
        %v2060 = vpop.permute.xlu0 %2059
        %2061 = vrot.lane.b32.xlu0 %v2015, 64
        %v2062 = vpop.permute.xlu0 %2061
        %2063 = vrot.lane.b32.xlu0 %v2016, 64
        %v2064 = vpop.permute.xlu0 %2063
        %2081 = vst.msk [vmem:[#allocation3 + $0x18] sm:$0xff] %vm1504, %v2034
        %2082 = vst.msk [vmem:[#allocation3 + $0x40] sm:$0xff] %vm1504, %v2036
        %2083 = vst.msk [vmem:[#allocation3 + $0x68] sm:$0xff] %vm1504, %v2038
        %2084 = vst.msk [vmem:[#allocation3 + $0x90] sm:$0xff] %vm1504, %v2040
        %2085 = vst.msk [vmem:[#allocation3 + $0xb8] sm:$0xff] %vm1504, %v2042
        %2086 = vst.msk [vmem:[#allocation3 + $0xe0] sm:$0xff] %vm1504, %v2044
        %2087 = vst.msk [vmem:[#allocation3 + $0x108] sm:$0xff] %vm1504, %v2046
        %2088 = vst.msk [vmem:[#allocation3 + $0x130] sm:$0xff] %vm1504, %v2048
        %2089 = vst.msk [vmem:[#allocation3 + $0x158] sm:$0xff] %vm1504, %v2050
        %2090 = vst.msk [vmem:[#allocation3 + $0x180] sm:$0xff] %vm1504, %v2052
        %2091 = vst.msk [vmem:[#allocation3 + $0x1a8] sm:$0xff] %vm1504, %v2054
        %2092 = vst.msk [vmem:[#allocation3 + $0x1d0] sm:$0xff] %vm1504, %v2056
        %2093 = vst.msk [vmem:[#allocation3 + $0x1f8] sm:$0xff] %vm1504, %v2058
        %2094 = vst.msk [vmem:[#allocation3 + $0x220] sm:$0xff] %vm1504, %v2060
        %2095 = vst.msk [vmem:[#allocation3 + $0x248] sm:$0xff] %vm1504, %v2062
        %2096 = vst.msk [vmem:[#allocation3 + $0x270] sm:$0xff] %vm1504, %v2064
        %v2097 = vld [vmem:[%s951 + $0x2] sm:$0xff]
        %v2098 = vld [vmem:[%s951 + $0xa] sm:$0xff]
        %v2099 = vld [vmem:[%s951 + $0x1a] sm:$0xff]
        %v2100 = vld [vmem:[%s951 + $0x22] sm:$0xff]
        %v2101 = vld [vmem:[%s951 + $0x32] sm:$0xff]
        %v2102 = vld [vmem:[%s951 + $0x3a] sm:$0xff]
        %v2103 = vld [vmem:[%s951 + $0x4a] sm:$0xff]
        %v2104 = vld [vmem:[%s951 + $0x52] sm:$0xff]
        %v2105 = vld [vmem:[%s951 + $0x62] sm:$0xff]
        %v2106 = vld [vmem:[%s951 + $0x6a] sm:$0xff]
        %v2107 = vld [vmem:[%s951 + $0x7a] sm:$0xff]
        %v2108 = vld [vmem:[%s951 + $0x82] sm:$0xff]
        %v2109 = vld [vmem:[%s951 + $0x92] sm:$0xff]
        %v2110 = vld [vmem:[%s951 + $0x9a] sm:$0xff]
        %v2111 = vld [vmem:[%s951 + $0xaa] sm:$0xff]
        %v2112 = vld [vmem:[%s951 + $0xb2] sm:$0xff]
        %v2113 = vld [vmem:[%s951 + $0xc2] sm:$0xff]
        %v2114 = vld [vmem:[%s951 + $0xca] sm:$0xff]
        %v2115 = vld [vmem:[%s951 + $0xda] sm:$0xff]
        %v2116 = vld [vmem:[%s951 + $0xe2] sm:$0xff]
        %v2117 = vld [vmem:[%s951 + $0xf2] sm:$0xff]
        %v2118 = vld [vmem:[%s951 + $0xfa] sm:$0xff]
        %v2119 = vld [vmem:[%s951 + $0x10a] sm:$0xff]
        %v2120 = vld [vmem:[%s951 + $0x112] sm:$0xff]
        %v2121 = vld [vmem:[%s951 + $0x122] sm:$0xff]
        %v2122 = vld [vmem:[%s951 + $0x12a] sm:$0xff]
        %v2123 = vld [vmem:[%s951 + $0x13a] sm:$0xff]
        %v2124 = vld [vmem:[%s951 + $0x142] sm:$0xff]
        %v2125 = vld [vmem:[%s951 + $0x152] sm:$0xff]
        %v2126 = vld [vmem:[%s951 + $0x15a] sm:$0xff]
        %v2127 = vld [vmem:[%s951 + $0x16a] sm:$0xff]
        %v2128 = vld [vmem:[%s951 + $0x172] sm:$0xff]
        %v2129 = vpack.c.bf16 %v2098, %v2097
        %v2130 = vpack.c.bf16 %v2100, %v2099
        %v2131 = vpack.c.bf16 %v2102, %v2101
        %v2132 = vpack.c.bf16 %v2104, %v2103
        %v2133 = vpack.c.bf16 %v2106, %v2105
        %v2134 = vpack.c.bf16 %v2108, %v2107
        %v2135 = vpack.c.bf16 %v2110, %v2109
        %v2136 = vpack.c.bf16 %v2112, %v2111
        %v2137 = vpack.c.bf16 %v2114, %v2113
        %v2138 = vpack.c.bf16 %v2116, %v2115
        %v2139 = vpack.c.bf16 %v2118, %v2117
        %v2140 = vpack.c.bf16 %v2120, %v2119
        %v2141 = vpack.c.bf16 %v2122, %v2121
        %v2142 = vpack.c.bf16 %v2124, %v2123
        %v2143 = vpack.c.bf16 %v2126, %v2125
        %v2144 = vpack.c.bf16 %v2128, %v2127
        %2145 = vst.msk [vmem:[#allocation3 + $0x20] sm:$0xff] %vm249, %v2129
        %2146 = vst.msk [vmem:[#allocation3 + $0x48] sm:$0xff] %vm249, %v2130
        %2147 = vst.msk [vmem:[#allocation3 + $0x70] sm:$0xff] %vm249, %v2131
        %2148 = vst.msk [vmem:[#allocation3 + $0x98] sm:$0xff] %vm249, %v2132
        %2149 = vst.msk [vmem:[#allocation3 + $0xc0] sm:$0xff] %vm249, %v2133
        %2150 = vst.msk [vmem:[#allocation3 + $0xe8] sm:$0xff] %vm249, %v2134
        %2151 = vst.msk [vmem:[#allocation3 + $0x110] sm:$0xff] %vm249, %v2135
        %2152 = vst.msk [vmem:[#allocation3 + $0x138] sm:$0xff] %vm249, %v2136
        %2153 = vst.msk [vmem:[#allocation3 + $0x160] sm:$0xff] %vm249, %v2137
        %2154 = vst.msk [vmem:[#allocation3 + $0x188] sm:$0xff] %vm249, %v2138
        %2155 = vst.msk [vmem:[#allocation3 + $0x1b0] sm:$0xff] %vm249, %v2139
        %2156 = vst.msk [vmem:[#allocation3 + $0x1d8] sm:$0xff] %vm249, %v2140
        %2157 = vst.msk [vmem:[#allocation3 + $0x200] sm:$0xff] %vm249, %v2141
        %2158 = vst.msk [vmem:[#allocation3 + $0x228] sm:$0xff] %vm249, %v2142
        %2159 = vst.msk [vmem:[#allocation3 + $0x250] sm:$0xff] %vm249, %v2143
        %2160 = vst.msk [vmem:[#allocation3 + $0x278] sm:$0xff] %vm249, %v2144
        %v2161 = vld [vmem:[#allocation3] sm:$0xff]
        %v2162 = vld [vmem:[#allocation3 + $0x8] sm:$0xff]
        %v2163 = vld [vmem:[#allocation3 + $0x10] sm:$0xff]
        %v2164 = vld [vmem:[#allocation3 + $0x18] sm:$0xff]
        %v2165 = vld [vmem:[#allocation3 + $0x20] sm:$0xff]
        %v2166 = vld [vmem:[#allocation3 + $0x28] sm:$0xff]
        %v2167 = vld [vmem:[#allocation3 + $0x30] sm:$0xff]
        %v2168 = vld [vmem:[#allocation3 + $0x38] sm:$0xff]
        %v2169 = vld [vmem:[#allocation3 + $0x40] sm:$0xff]
        %v2170 = vld [vmem:[#allocation3 + $0x48] sm:$0xff]
        %v2171 = vld [vmem:[#allocation3 + $0x50] sm:$0xff]
        %v2172 = vld [vmem:[#allocation3 + $0x58] sm:$0xff]
        %v2173 = vld [vmem:[#allocation3 + $0x60] sm:$0xff]
        %v2174 = vld [vmem:[#allocation3 + $0x68] sm:$0xff]
        %v2175 = vld [vmem:[#allocation3 + $0x70] sm:$0xff]
        %v2176 = vld [vmem:[#allocation3 + $0x78] sm:$0xff]
        %v2177 = vld [vmem:[#allocation3 + $0x80] sm:$0xff]
        %v2178 = vld [vmem:[#allocation3 + $0x88] sm:$0xff]
        %v2179 = vld [vmem:[#allocation3 + $0x90] sm:$0xff]
        %v2180 = vld [vmem:[#allocation3 + $0x98] sm:$0xff]
        %v2181 = vld [vmem:[#allocation3 + $0xa0] sm:$0xff]
        %v2182 = vld [vmem:[#allocation3 + $0xa8] sm:$0xff]
        %v2183 = vld [vmem:[#allocation3 + $0xb0] sm:$0xff]
        %v2184 = vld [vmem:[#allocation3 + $0xb8] sm:$0xff]
        %v2185 = vld [vmem:[#allocation3 + $0xc0] sm:$0xff]
        %v2186 = vld [vmem:[#allocation3 + $0xc8] sm:$0xff]
        %v2187 = vld [vmem:[#allocation3 + $0xd0] sm:$0xff]
        %v2188 = vld [vmem:[#allocation3 + $0xd8] sm:$0xff]
        %v2189 = vld [vmem:[#allocation3 + $0xe0] sm:$0xff]
        %v2190 = vld [vmem:[#allocation3 + $0xe8] sm:$0xff]
        %v2191 = vld [vmem:[#allocation3 + $0xf0] sm:$0xff]
        %v2192 = vld [vmem:[#allocation3 + $0xf8] sm:$0xff]
        %v2193 = vld [vmem:[#allocation3 + $0x100] sm:$0xff]
        %v2194 = vld [vmem:[#allocation3 + $0x108] sm:$0xff]
        %v2195 = vld [vmem:[#allocation3 + $0x110] sm:$0xff]
        %v2196 = vld [vmem:[#allocation3 + $0x118] sm:$0xff]
        %v2197 = vld [vmem:[#allocation3 + $0x120] sm:$0xff]
        %v2198 = vld [vmem:[#allocation3 + $0x128] sm:$0xff]
        %v2199 = vld [vmem:[#allocation3 + $0x130] sm:$0xff]
        %v2200 = vld [vmem:[#allocation3 + $0x138] sm:$0xff]
        %v2201 = vld [vmem:[#allocation3 + $0x140] sm:$0xff]
        %v2202 = vld [vmem:[#allocation3 + $0x148] sm:$0xff]
        %v2203 = vld [vmem:[#allocation3 + $0x150] sm:$0xff]
        %v2204 = vld [vmem:[#allocation3 + $0x158] sm:$0xff]
        %v2205 = vld [vmem:[#allocation3 + $0x160] sm:$0xff]
        %v2206 = vld [vmem:[#allocation3 + $0x168] sm:$0xff]
        %v2207 = vld [vmem:[#allocation3 + $0x170] sm:$0xff]
        %v2208 = vld [vmem:[#allocation3 + $0x178] sm:$0xff]
        %v2209 = vld [vmem:[#allocation3 + $0x180] sm:$0xff]
        %v2210 = vld [vmem:[#allocation3 + $0x188] sm:$0xff]
        %v2211 = vld [vmem:[#allocation3 + $0x190] sm:$0xff]
        %v2212 = vld [vmem:[#allocation3 + $0x198] sm:$0xff]
        %v2213 = vld [vmem:[#allocation3 + $0x1a0] sm:$0xff]
        %v2214 = vld [vmem:[#allocation3 + $0x1a8] sm:$0xff]
        %v2215 = vld [vmem:[#allocation3 + $0x1b0] sm:$0xff]
        %v2216 = vld [vmem:[#allocation3 + $0x1b8] sm:$0xff]
        %v2217 = vld [vmem:[#allocation3 + $0x1c0] sm:$0xff]
        %v2218 = vld [vmem:[#allocation3 + $0x1c8] sm:$0xff]
        %v2219 = vld [vmem:[#allocation3 + $0x1d0] sm:$0xff]
        %v2220 = vld [vmem:[#allocation3 + $0x1d8] sm:$0xff]
        %v2221 = vld [vmem:[#allocation3 + $0x1e0] sm:$0xff]
        %v2222 = vld [vmem:[#allocation3 + $0x1e8] sm:$0xff]
        %v2223 = vld [vmem:[#allocation3 + $0x1f0] sm:$0xff]
        %v2224 = vld [vmem:[#allocation3 + $0x1f8] sm:$0xff]
        %v2225 = vld [vmem:[#allocation3 + $0x200] sm:$0xff]
        %v2226 = vld [vmem:[#allocation3 + $0x208] sm:$0xff]
        %v2227 = vld [vmem:[#allocation3 + $0x210] sm:$0xff]
        %v2228 = vld [vmem:[#allocation3 + $0x218] sm:$0xff]
        %v2229 = vld [vmem:[#allocation3 + $0x220] sm:$0xff]
        %v2230 = vld [vmem:[#allocation3 + $0x228] sm:$0xff]
        %v2231 = vld [vmem:[#allocation3 + $0x230] sm:$0xff]
        %v2232 = vld [vmem:[#allocation3 + $0x238] sm:$0xff]
        %v2233 = vld [vmem:[#allocation3 + $0x240] sm:$0xff]
        %v2234 = vld [vmem:[#allocation3 + $0x248] sm:$0xff]
        %v2235 = vld [vmem:[#allocation3 + $0x250] sm:$0xff]
        %v2236 = vld [vmem:[#allocation3 + $0x258] sm:$0xff]
        %v2237 = vld [vmem:[#allocation3 + $0x260] sm:$0xff]
        %v2238 = vld [vmem:[#allocation3 + $0x268] sm:$0xff]
        %v2239 = vld [vmem:[#allocation3 + $0x270] sm:$0xff]
        %v2240 = vld [vmem:[#allocation3 + $0x278] sm:$0xff]
        %v2241 = vld [vmem:[%s2] sm:$0xf]
        %v2242 = vld [vmem:[%s2 + $0x4] sm:$0xf]
        %v2243 = vld [vmem:[%s2 + $0x8] sm:$0xf]
        %v2244 = vld [vmem:[%s2 + $0xc] sm:$0xf]
        %v2245 = vld [vmem:[%s2 + $0x10] sm:$0xf]
        %v2246 = vld [vmem:[%s2 + $0x14] sm:$0xf]
        %v2247 = vld [vmem:[%s2 + $0x18] sm:$0xf]
        %v2248 = vld [vmem:[%s2 + $0x1c] sm:$0xf]
        %v2249 = vld [vmem:[%s2 + $0x20] sm:$0xf]
        %v2250 = vld [vmem:[%s2 + $0x24] sm:$0xf]
        %v2251 = vld [vmem:[%s2 + $0x28] sm:$0xf]
        %v2252 = vld [vmem:[%s2 + $0x2c] sm:$0xf]
        %v2253 = vld [vmem:[%s2 + $0x30] sm:$0xf]
        %v2254 = vld [vmem:[%s2 + $0x34] sm:$0xf]
        %v2255 = vld [vmem:[%s2 + $0x38] sm:$0xf]
        %v2256 = vld [vmem:[%s2 + $0x3c] sm:$0xf]
        %v2257 = vld [vmem:[%s2 + $0x40] sm:$0xf]
        %v2258 = vld [vmem:[%s2 + $0x44] sm:$0xf]
        %v2259 = vld [vmem:[%s2 + $0x48] sm:$0xf]
        %v2260 = vld [vmem:[%s2 + $0x4c] sm:$0xf]
        %v2261 = vld [vmem:[%s2 + $0x50] sm:$0xf]
        %v2262 = vld [vmem:[%s2 + $0x54] sm:$0xf]
        %v2263 = vld [vmem:[%s2 + $0x58] sm:$0xf]
        %v2264 = vld [vmem:[%s2 + $0x5c] sm:$0xf]
        %v2265 = vld [vmem:[%s2 + $0x60] sm:$0xf]
        %v2266 = vld [vmem:[%s2 + $0x64] sm:$0xf]
        %v2267 = vld [vmem:[%s2 + $0x68] sm:$0xf]
        %v2268 = vld [vmem:[%s2 + $0x6c] sm:$0xf]
        %v2269 = vld [vmem:[%s2 + $0x70] sm:$0xf]
        %v2270 = vld [vmem:[%s2 + $0x74] sm:$0xf]
        %v2271 = vld [vmem:[%s2 + $0x78] sm:$0xf]
        %v2272 = vld [vmem:[%s2 + $0x7c] sm:$0xf]
        %v2273 = vld [vmem:[%s2 + $0x80] sm:$0xf]
        %v2274 = vld [vmem:[%s2 + $0x84] sm:$0xf]
        %v2275 = vld [vmem:[%s2 + $0x88] sm:$0xf]
        %v2276 = vld [vmem:[%s2 + $0x8c] sm:$0xf]
        %v2277 = vld [vmem:[%s2 + $0x90] sm:$0xf]
        %v2278 = vld [vmem:[%s2 + $0x94] sm:$0xf]
        %v2279 = vld [vmem:[%s2 + $0x98] sm:$0xf]
        %v2280 = vld [vmem:[%s2 + $0x9c] sm:$0xf]
        %v2281 = vld [vmem:[%s2 + $0xa0] sm:$0xf]
        %v2282 = vld [vmem:[%s2 + $0xa4] sm:$0xf]
        %v2283 = vld [vmem:[%s2 + $0xa8] sm:$0xf]
        %v2284 = vld [vmem:[%s2 + $0xac] sm:$0xf]
        %v2285 = vld [vmem:[%s2 + $0xb0] sm:$0xf]
        %v2286 = vld [vmem:[%s2 + $0xb4] sm:$0xf]
        %v2287 = vld [vmem:[%s2 + $0xb8] sm:$0xf]
        %v2288 = vld [vmem:[%s2 + $0xbc] sm:$0xf]
        %v2289 = vld [vmem:[%s2 + $0xc0] sm:$0xf]
        %v2290 = vld [vmem:[%s2 + $0xc4] sm:$0xf]
        %v2291 = vld [vmem:[%s2 + $0xc8] sm:$0xf]
        %v2292 = vld [vmem:[%s2 + $0xcc] sm:$0xf]
        %v2293 = vld [vmem:[%s2 + $0xd0] sm:$0xf]
        %v2294 = vld [vmem:[%s2 + $0xd4] sm:$0xf]
        %v2295 = vld [vmem:[%s2 + $0xd8] sm:$0xf]
        %v2296 = vld [vmem:[%s2 + $0xdc] sm:$0xf]
        %v2297 = vld [vmem:[%s2 + $0xe0] sm:$0xf]
        %v2298 = vld [vmem:[%s2 + $0xe4] sm:$0xf]
        %v2299 = vld [vmem:[%s2 + $0xe8] sm:$0xf]
        %v2300 = vld [vmem:[%s2 + $0xec] sm:$0xf]
        %v2301 = vld [vmem:[%s2 + $0xf0] sm:$0xf]
        %v2302 = vld [vmem:[%s2 + $0xf4] sm:$0xf]
        %v2303 = vld [vmem:[%s2 + $0xf8] sm:$0xf]
        %v2304 = vld [vmem:[%s2 + $0xfc] sm:$0xf]
        %v2305 = vld [vmem:[%s2 + $0x100] sm:$0xf]
        %v2306 = vld [vmem:[%s2 + $0x104] sm:$0xf]
        %v2307 = vld [vmem:[%s2 + $0x108] sm:$0xf]
        %v2308 = vld [vmem:[%s2 + $0x10c] sm:$0xf]
        %v2309 = vld [vmem:[%s2 + $0x110] sm:$0xf]
        %v2310 = vld [vmem:[%s2 + $0x114] sm:$0xf]
        %v2311 = vld [vmem:[%s2 + $0x118] sm:$0xf]
        %v2312 = vld [vmem:[%s2 + $0x11c] sm:$0xf]
        %v2313 = vld [vmem:[%s3] sm:$0x1]
        %v2315 = vlaneseq
        %v2316 = vshrl.u32 %v2315, 7
        %v2317 = vsub.s32 0, %v2316
        %v2318 = vrot.slane %v2313, %v2317
        %v2392 = vunpack.c.l.b16 %v2241
        %v2393 = vunpack.c.l.b16 %v2242
        %v2394 = vunpack.c.l.b16 %v2243
        %v2395 = vunpack.c.l.b16 %v2244
        %v2396 = vunpack.c.l.b16 %v2245
        %v2397 = vunpack.c.l.b16 %v2246
        %v2398 = vunpack.c.l.b16 %v2247
        %v2399 = vunpack.c.l.b16 %v2248
        %v2400 = vunpack.c.l.b16 %v2249
        %v2401 = vunpack.c.l.b16 %v2250
        %v2402 = vunpack.c.l.b16 %v2251
        %v2403 = vunpack.c.l.b16 %v2252
        %v2404 = vunpack.c.l.b16 %v2253
        %v2405 = vunpack.c.l.b16 %v2254
        %v2406 = vunpack.c.l.b16 %v2255
        %v2407 = vunpack.c.l.b16 %v2256
        %v2408 = vunpack.c.l.b16 %v2257
        %v2409 = vunpack.c.l.b16 %v2258
        %v2410 = vunpack.c.l.b16 %v2259
        %v2411 = vunpack.c.l.b16 %v2260
        %v2412 = vunpack.c.l.b16 %v2261
        %v2413 = vunpack.c.l.b16 %v2262
        %v2414 = vunpack.c.l.b16 %v2263
        %v2415 = vunpack.c.l.b16 %v2264
        %v2416 = vunpack.c.l.b16 %v2265
        %v2417 = vunpack.c.l.b16 %v2266
        %v2418 = vunpack.c.l.b16 %v2267
        %v2419 = vunpack.c.l.b16 %v2268
        %v2420 = vunpack.c.l.b16 %v2269
        %v2421 = vunpack.c.l.b16 %v2270
        %v2422 = vunpack.c.l.b16 %v2271
        %v2423 = vunpack.c.l.b16 %v2272
        %v2424 = vunpack.c.l.b16 %v2273
        %v2425 = vunpack.c.l.b16 %v2274
        %v2426 = vunpack.c.l.b16 %v2275
        %v2427 = vunpack.c.l.b16 %v2276
        %v2428 = vunpack.c.l.b16 %v2277
        %v2429 = vunpack.c.l.b16 %v2278
        %v2430 = vunpack.c.l.b16 %v2279
        %v2431 = vunpack.c.l.b16 %v2280
        %v2432 = vunpack.c.l.b16 %v2281
        %v2433 = vunpack.c.l.b16 %v2282
        %v2434 = vunpack.c.l.b16 %v2283
        %v2435 = vunpack.c.l.b16 %v2284
        %v2436 = vunpack.c.l.b16 %v2285
        %v2437 = vunpack.c.l.b16 %v2286
        %v2438 = vunpack.c.l.b16 %v2287
        %v2439 = vunpack.c.l.b16 %v2288
        %v2440 = vunpack.c.l.b16 %v2289
        %v2441 = vunpack.c.l.b16 %v2290
        %v2442 = vunpack.c.l.b16 %v2291
        %v2443 = vunpack.c.l.b16 %v2292
        %v2444 = vunpack.c.l.b16 %v2293
        %v2445 = vunpack.c.l.b16 %v2294
        %v2446 = vunpack.c.l.b16 %v2295
        %v2447 = vunpack.c.l.b16 %v2296
        %v2448 = vunpack.c.l.b16 %v2297
        %v2449 = vunpack.c.l.b16 %v2298
        %v2450 = vunpack.c.l.b16 %v2299
        %v2451 = vunpack.c.l.b16 %v2300
        %v2452 = vunpack.c.l.b16 %v2301
        %v2453 = vunpack.c.l.b16 %v2302
        %v2454 = vunpack.c.l.b16 %v2303
        %v2455 = vunpack.c.l.b16 %v2304
        %v2456 = vunpack.c.l.b16 %v2305
        %v2457 = vunpack.c.l.b16 %v2306
        %v2458 = vunpack.c.l.b16 %v2307
        %v2459 = vunpack.c.l.b16 %v2308
        %v2460 = vunpack.c.l.b16 %v2309
        %v2461 = vunpack.c.l.b16 %v2310
        %v2462 = vunpack.c.l.b16 %v2311
        %v2463 = vunpack.c.l.b16 %v2312
        %v2464 = vpack.c.b16 %v2393, %v2392
        %v2465 = vpack.c.b16 %v2395, %v2394
        %v2466 = vpack.c.b16 %v2397, %v2396
        %v2467 = vpack.c.b16 %v2399, %v2398
        %v2468 = vpack.c.b16 %v2401, %v2400
        %v2469 = vpack.c.b16 %v2403, %v2402
        %v2470 = vpack.c.b16 %v2405, %v2404
        %v2471 = vpack.c.b16 %v2407, %v2406
        %v2472 = vpack.c.b16 %v2409, %v2408
        %v2473 = vpack.c.b16 %v2411, %v2410
        %v2474 = vpack.c.b16 %v2413, %v2412
        %v2475 = vpack.c.b16 %v2415, %v2414
        %v2476 = vpack.c.b16 %v2417, %v2416
        %v2477 = vpack.c.b16 %v2419, %v2418
        %v2478 = vpack.c.b16 %v2421, %v2420
        %v2479 = vpack.c.b16 %v2423, %v2422
        %v2480 = vpack.c.b16 %v2425, %v2424
        %v2481 = vpack.c.b16 %v2427, %v2426
        %v2482 = vpack.c.b16 %v2429, %v2428
        %v2483 = vpack.c.b16 %v2431, %v2430
        %v2484 = vpack.c.b16 %v2433, %v2432
        %v2485 = vpack.c.b16 %v2435, %v2434
        %v2486 = vpack.c.b16 %v2437, %v2436
        %v2487 = vpack.c.b16 %v2439, %v2438
        %v2488 = vpack.c.b16 %v2441, %v2440
        %v2489 = vpack.c.b16 %v2443, %v2442
        %v2490 = vpack.c.b16 %v2445, %v2444
        %v2491 = vpack.c.b16 %v2447, %v2446
        %v2492 = vpack.c.b16 %v2449, %v2448
        %v2493 = vpack.c.b16 %v2451, %v2450
        %v2494 = vpack.c.b16 %v2453, %v2452
        %v2495 = vpack.c.b16 %v2455, %v2454
        %v2496 = vpack.c.b16 %v2457, %v2456
        %v2497 = vpack.c.b16 %v2459, %v2458
        %v2498 = vpack.c.b16 %v2461, %v2460
        %v2499 = vpack.c.b16 %v2463, %v2462
        %v2537 = vsel %vm249, %v2165, 0
        %v2540 = vsel %vm249, %v2170, 0
        %v2543 = vsel %vm249, %v2175, 0
        %v2546 = vsel %vm249, %v2180, 0
        %v2549 = vsel %vm249, %v2185, 0
        %v2552 = vsel %vm249, %v2190, 0
        %v2555 = vsel %vm249, %v2195, 0
        %v2558 = vsel %vm249, %v2200, 0
        %v2561 = vsel %vm249, %v2205, 0
        %v2564 = vsel %vm249, %v2210, 0
        %v2567 = vsel %vm249, %v2215, 0
        %v2570 = vsel %vm249, %v2220, 0
        %v2573 = vsel %vm249, %v2225, 0
        %v2576 = vsel %vm249, %v2230, 0
        %v2579 = vsel %vm249, %v2235, 0
        %v2582 = vsel %vm249, %v2240, 0
        %2584 = vmatprep.subr.bf16.mxu0 0
        %2585 = vmatpush1.bf16.msra.mxu0 %v2464
        %2586 = vmatprep.subr.bf16.mxu0 0
        %2587 = vmatpush1.bf16.msra.mxu0 %v2465
        %2588 = vmatprep.subr.bf16.mxu0 0
        %2589 = vmatpush1.bf16.msra.mxu0 %v2466
        %2590 = vmatprep.subr.bf16.mxu0 0
        %2591 = vmatpush1.bf16.msra.mxu0 %v2467
        %2592 = vmatprep.subr.bf16.mxu0 0
        %2593 = vmatpush1.bf16.msra.mxu0 %v2468
        %2594 = vmatprep.subr.bf16.mxu0 0
        %2595 = vmatpush1.bf16.msra.mxu0 %v2469
        %2596 = vmatprep.subr.bf16.mxu0 0
        %2597 = vmatpush1.bf16.msra.mxu0 %v2470
        %2598 = vmatprep.subr.bf16.mxu0 0
        %2599 = vmatpush1.bf16.msra.mxu0 %v2471
        %2600 = vmatprep.subr.bf16.mxu0 0
        %2601 = vmatpush1.bf16.msra.mxu0 %v2472
        %2602 = vmatprep.subr.bf16.mxu0 0
        %2603 = vmatpush1.bf16.msra.mxu0 %v2473
        %2604 = vmatprep.subr.bf16.mxu0 0
        %2605 = vmatpush1.bf16.msra.mxu0 %v2474
        %2606 = vmatprep.subr.bf16.mxu0 0
        %2607 = vmatpush1.bf16.msra.mxu0 %v2475
        %2608 = vmatprep.subr.bf16.mxu0 0
        %2609 = vmatpush1.bf16.msra.mxu0 %v2476
        %2610 = vmatprep.subr.bf16.mxu0 0
        %2611 = vmatpush1.bf16.msra.mxu0 %v2477
        %2612 = vmatprep.subr.bf16.mxu0 0
        %2613 = vmatpush1.bf16.msra.mxu0 %v2478
        %2614 = vmatprep.subr.bf16.mxu0 0
        %2615 = vmatpush1.bf16.msra.mxu0 %v2479
        %2616 = vmatprep.mubr.bf16.mxu0 %v2162
        %2617 = vmatmul.mubr.bf16.gmra.mrb[0].mxu0 %v2161
        %v2618 = vpop.f32.mrb[0].mxu0
        %v2619 = vadd.f32 %v2318, %v2618
        %v2620 = vpop.f32.mrb[0].mxu0
        %v2621 = vpop.f32.mrb[0].mxu0
        %v2622 = vadd.f32 %v2318, %v2621
        %v2623 = vpop.f32.mrb[0].mxu0
        %2624 = vmatprep.mubr.bf16.mxu0 %v2167
        %2625 = vmatmul.mubr.bf16.gmra.mrb[0].mxu0 %v2166
        %v2626 = vpop.f32.mrb[0].mxu0
        %v2627 = vadd.f32 %v2318, %v2626
        %v2628 = vpop.f32.mrb[0].mxu0
        %v2629 = vpop.f32.mrb[0].mxu0
        %v2630 = vadd.f32 %v2318, %v2629
        %v2631 = vpop.f32.mrb[0].mxu0
        %2632 = vmatprep.mubr.bf16.mxu0 %v2172
        %2633 = vmatmul.mubr.bf16.gmra.mrb[0].mxu0 %v2171
        %v2634 = vpop.f32.mrb[0].mxu0
        %v2635 = vadd.f32 %v2318, %v2634
        %v2636 = vpop.f32.mrb[0].mxu0
        %v2637 = vpop.f32.mrb[0].mxu0
        %v2638 = vadd.f32 %v2318, %v2637
        %v2639 = vpop.f32.mrb[0].mxu0
        %2640 = vmatprep.mubr.bf16.mxu0 %v2177
        %2641 = vmatmul.mubr.bf16.gmra.mrb[0].mxu0 %v2176
        %v2642 = vpop.f32.mrb[0].mxu0
        %v2643 = vadd.f32 %v2318, %v2642
        %v2644 = vpop.f32.mrb[0].mxu0
        %v2645 = vpop.f32.mrb[0].mxu0
        %v2646 = vadd.f32 %v2318, %v2645
        %v2647 = vpop.f32.mrb[0].mxu0
        %2648 = vmatprep.mubr.bf16.mxu0 %v2182
        %2649 = vmatmul.mubr.bf16.gmra.mrb[0].mxu0 %v2181
        %v2650 = vpop.f32.mrb[0].mxu0
        %v2651 = vadd.f32 %v2318, %v2650
        %v2652 = vpop.f32.mrb[0].mxu0
        %v2653 = vpop.f32.mrb[0].mxu0
        %v2654 = vadd.f32 %v2318, %v2653
        %v2655 = vpop.f32.mrb[0].mxu0
        %2656 = vmatprep.mubr.bf16.mxu0 %v2187
        %2657 = vmatmul.mubr.bf16.gmra.mrb[0].mxu0 %v2186
        %v2658 = vpop.f32.mrb[0].mxu0
        %v2659 = vadd.f32 %v2318, %v2658
        %v2660 = vpop.f32.mrb[0].mxu0
        %v2661 = vpop.f32.mrb[0].mxu0
        %v2662 = vadd.f32 %v2318, %v2661
        %v2663 = vpop.f32.mrb[0].mxu0
        %2664 = vmatprep.mubr.bf16.mxu0 %v2192
        %2665 = vmatmul.mubr.bf16.gmra.mrb[0].mxu0 %v2191
        %v2666 = vpop.f32.mrb[0].mxu0
        %v2667 = vadd.f32 %v2318, %v2666
        %v2668 = vpop.f32.mrb[0].mxu0
        %v2669 = vpop.f32.mrb[0].mxu0
        %v2670 = vadd.f32 %v2318, %v2669
        %v2671 = vpop.f32.mrb[0].mxu0
        %2672 = vmatprep.mubr.bf16.mxu0 %v2197
        %2673 = vmatmul.mubr.bf16.gmra.mrb[0].mxu0 %v2196
        %v2674 = vpop.f32.mrb[0].mxu0
        %v2675 = vadd.f32 %v2318, %v2674
        %v2676 = vpop.f32.mrb[0].mxu0
        %v2677 = vpop.f32.mrb[0].mxu0
        %v2678 = vadd.f32 %v2318, %v2677
        %v2679 = vpop.f32.mrb[0].mxu0
        %2680 = vmatprep.mubr.bf16.mxu0 %v2202
        %2681 = vmatmul.mubr.bf16.gmra.mrb[0].mxu0 %v2201
        %v2682 = vpop.f32.mrb[0].mxu0
        %v2683 = vadd.f32 %v2318, %v2682
        %v2684 = vpop.f32.mrb[0].mxu0
        %v2685 = vpop.f32.mrb[0].mxu0
        %v2686 = vadd.f32 %v2318, %v2685
        %v2687 = vpop.f32.mrb[0].mxu0
        %2688 = vmatprep.mubr.bf16.mxu0 %v2207
        %2689 = vmatmul.mubr.bf16.gmra.mrb[0].mxu0 %v2206
        %v2690 = vpop.f32.mrb[0].mxu0
        %v2691 = vadd.f32 %v2318, %v2690
        %v2692 = vpop.f32.mrb[0].mxu0
        %v2693 = vpop.f32.mrb[0].mxu0
        %v2694 = vadd.f32 %v2318, %v2693
        %v2695 = vpop.f32.mrb[0].mxu0
        %2696 = vmatprep.mubr.bf16.mxu0 %v2212
        %2697 = vmatmul.mubr.bf16.gmra.mrb[0].mxu0 %v2211
        %v2698 = vpop.f32.mrb[0].mxu0
        %v2699 = vadd.f32 %v2318, %v2698
        %v2700 = vpop.f32.mrb[0].mxu0
        %v2701 = vpop.f32.mrb[0].mxu0
        %v2702 = vadd.f32 %v2318, %v2701
        %v2703 = vpop.f32.mrb[0].mxu0
        %2704 = vmatprep.mubr.bf16.mxu0 %v2217
        %2705 = vmatmul.mubr.bf16.gmra.mrb[0].mxu0 %v2216
        %v2706 = vpop.f32.mrb[0].mxu0
        %v2707 = vadd.f32 %v2318, %v2706
        %v2708 = vpop.f32.mrb[0].mxu0
        %v2709 = vpop.f32.mrb[0].mxu0
        %v2710 = vadd.f32 %v2318, %v2709
        %v2711 = vpop.f32.mrb[0].mxu0
        %2712 = vmatprep.mubr.bf16.mxu0 %v2222
        %2713 = vmatmul.mubr.bf16.gmra.mrb[0].mxu0 %v2221
        %v2714 = vpop.f32.mrb[0].mxu0
        %v2715 = vadd.f32 %v2318, %v2714
        %v2716 = vpop.f32.mrb[0].mxu0
        %v2717 = vpop.f32.mrb[0].mxu0
        %v2718 = vadd.f32 %v2318, %v2717
        %v2719 = vpop.f32.mrb[0].mxu0
        %2720 = vmatprep.mubr.bf16.mxu0 %v2227
        %2721 = vmatmul.mubr.bf16.gmra.mrb[0].mxu0 %v2226
        %v2722 = vpop.f32.mrb[0].mxu0
        %v2723 = vadd.f32 %v2318, %v2722
        %v2724 = vpop.f32.mrb[0].mxu0
        %v2725 = vpop.f32.mrb[0].mxu0
        %v2726 = vadd.f32 %v2318, %v2725
        %v2727 = vpop.f32.mrb[0].mxu0
        %2728 = vmatprep.mubr.bf16.mxu0 %v2232
        %2729 = vmatmul.mubr.bf16.gmra.mrb[0].mxu0 %v2231
        %v2730 = vpop.f32.mrb[0].mxu0
        %v2731 = vadd.f32 %v2318, %v2730
        %v2732 = vpop.f32.mrb[0].mxu0
        %v2733 = vpop.f32.mrb[0].mxu0
        %v2734 = vadd.f32 %v2318, %v2733
        %v2735 = vpop.f32.mrb[0].mxu0
        %2736 = vmatprep.mubr.bf16.mxu0 %v2237
        %2737 = vmatmul.mubr.bf16.gmra.mrb[0].mxu0 %v2236
        %v2738 = vpop.f32.mrb[0].mxu0
        %v2739 = vadd.f32 %v2318, %v2738
        %v2740 = vpop.f32.mrb[0].mxu0
        %v2741 = vpop.f32.mrb[0].mxu0
        %v2742 = vadd.f32 %v2318, %v2741
        %v2743 = vpop.f32.mrb[0].mxu0
        %2744 = vdwg.mxu0
        %2745 = vmatprep.subr.bf16.mxu0 0
        %2746 = vmatpush1.bf16.msra.mxu0 %v2480
        %2747 = vmatprep.subr.bf16.mxu0 0
        %2748 = vmatpush1.bf16.msra.mxu0 %v2481
        %2749 = vmatprep.subr.bf16.mxu0 0
        %2750 = vmatpush1.bf16.msra.mxu0 %v2482
        %2751 = vmatprep.subr.bf16.mxu0 0
        %2752 = vmatpush1.bf16.msra.mxu0 %v2483
        %2753 = vmatprep.subr.bf16.mxu0 0
        %2754 = vmatpush1.bf16.msra.mxu0 %v2484
        %2755 = vmatprep.subr.bf16.mxu0 0
        %2756 = vmatpush1.bf16.msra.mxu0 %v2485
        %2757 = vmatprep.subr.bf16.mxu0 0
        %2758 = vmatpush1.bf16.msra.mxu0 %v2486
        %2759 = vmatprep.subr.bf16.mxu0 0
        %2760 = vmatpush1.bf16.msra.mxu0 %v2487
        %2761 = vmatprep.subr.bf16.mxu0 0
        %2762 = vmatpush1.bf16.msra.mxu0 %v2488
        %2763 = vmatprep.subr.bf16.mxu0 0
        %2764 = vmatpush1.bf16.msra.mxu0 %v2489
        %2765 = vmatprep.subr.bf16.mxu0 0
        %2766 = vmatpush1.bf16.msra.mxu0 %v2490
        %2767 = vmatprep.subr.bf16.mxu0 0
        %2768 = vmatpush1.bf16.msra.mxu0 %v2491
        %2769 = vmatprep.subr.bf16.mxu0 0
        %2770 = vmatpush1.bf16.msra.mxu0 %v2492
        %2771 = vmatprep.subr.bf16.mxu0 0
        %2772 = vmatpush1.bf16.msra.mxu0 %v2493
        %2773 = vmatprep.subr.bf16.mxu0 0
        %2774 = vmatpush1.bf16.msra.mxu0 %v2494
        %2775 = vmatprep.subr.bf16.mxu0 0
        %2776 = vmatpush1.bf16.msra.mxu0 %v2495
        %2777 = vmatprep.mubr.bf16.mxu0 %v2164
        %2778 = vmatmul.mubr.bf16.gmra.mrb[0].mxu0 %v2163
        %v2779 = vpop.f32.mrb[0].mxu0
        %v2780 = vadd.f32 %v2619, %v2779
        %v2781 = vpop.f32.mrb[0].mxu0
        %v2782 = vpop.f32.mrb[0].mxu0
        %v2783 = vadd.f32 %v2622, %v2782
        %v2784 = vpop.f32.mrb[0].mxu0
        %2785 = vmatprep.mubr.bf16.mxu0 %v2169
        %2786 = vmatmul.mubr.bf16.gmra.mrb[0].mxu0 %v2168
        %v2787 = vpop.f32.mrb[0].mxu0
        %v2788 = vadd.f32 %v2627, %v2787
        %v2789 = vpop.f32.mrb[0].mxu0
        %v2790 = vpop.f32.mrb[0].mxu0
        %v2791 = vadd.f32 %v2630, %v2790
        %v2792 = vpop.f32.mrb[0].mxu0
        %2793 = vmatprep.mubr.bf16.mxu0 %v2174
        %2794 = vmatmul.mubr.bf16.gmra.mrb[0].mxu0 %v2173
        %v2795 = vpop.f32.mrb[0].mxu0
        %v2796 = vadd.f32 %v2635, %v2795
        %v2797 = vpop.f32.mrb[0].mxu0
        %v2798 = vpop.f32.mrb[0].mxu0
        %v2799 = vadd.f32 %v2638, %v2798
        %v2800 = vpop.f32.mrb[0].mxu0
        %2801 = vmatprep.mubr.bf16.mxu0 %v2179
        %2802 = vmatmul.mubr.bf16.gmra.mrb[0].mxu0 %v2178
        %v2803 = vpop.f32.mrb[0].mxu0
        %v2804 = vadd.f32 %v2643, %v2803
        %v2805 = vpop.f32.mrb[0].mxu0
        %v2806 = vpop.f32.mrb[0].mxu0
        %v2807 = vadd.f32 %v2646, %v2806
        %v2808 = vpop.f32.mrb[0].mxu0
        %2809 = vmatprep.mubr.bf16.mxu0 %v2184
        %2810 = vmatmul.mubr.bf16.gmra.mrb[0].mxu0 %v2183
        %v2811 = vpop.f32.mrb[0].mxu0
        %v2812 = vadd.f32 %v2651, %v2811
        %v2813 = vpop.f32.mrb[0].mxu0
        %v2814 = vpop.f32.mrb[0].mxu0
        %v2815 = vadd.f32 %v2654, %v2814
        %v2816 = vpop.f32.mrb[0].mxu0
        %2817 = vmatprep.mubr.bf16.mxu0 %v2189
        %2818 = vmatmul.mubr.bf16.gmra.mrb[0].mxu0 %v2188
        %v2819 = vpop.f32.mrb[0].mxu0
        %v2820 = vadd.f32 %v2659, %v2819
        %v2821 = vpop.f32.mrb[0].mxu0
        %v2822 = vpop.f32.mrb[0].mxu0
        %v2823 = vadd.f32 %v2662, %v2822
        %v2824 = vpop.f32.mrb[0].mxu0
        %2825 = vmatprep.mubr.bf16.mxu0 %v2194
        %2826 = vmatmul.mubr.bf16.gmra.mrb[0].mxu0 %v2193
        %v2827 = vpop.f32.mrb[0].mxu0
        %v2828 = vadd.f32 %v2667, %v2827
        %v2829 = vpop.f32.mrb[0].mxu0
        %v2830 = vpop.f32.mrb[0].mxu0
        %v2831 = vadd.f32 %v2670, %v2830
        %v2832 = vpop.f32.mrb[0].mxu0
        %2833 = vmatprep.mubr.bf16.mxu0 %v2199
        %2834 = vmatmul.mubr.bf16.gmra.mrb[0].mxu0 %v2198
        %v2835 = vpop.f32.mrb[0].mxu0
        %v2836 = vadd.f32 %v2675, %v2835
        %v2837 = vpop.f32.mrb[0].mxu0
        %v2838 = vpop.f32.mrb[0].mxu0
        %v2839 = vadd.f32 %v2678, %v2838
        %v2840 = vpop.f32.mrb[0].mxu0
        %2841 = vmatprep.mubr.bf16.mxu0 %v2204
        %2842 = vmatmul.mubr.bf16.gmra.mrb[0].mxu0 %v2203
        %v2843 = vpop.f32.mrb[0].mxu0
        %v2844 = vadd.f32 %v2683, %v2843
        %v2845 = vpop.f32.mrb[0].mxu0
        %v2846 = vpop.f32.mrb[0].mxu0
        %v2847 = vadd.f32 %v2686, %v2846
        %v2848 = vpop.f32.mrb[0].mxu0
        %2849 = vmatprep.mubr.bf16.mxu0 %v2209
        %2850 = vmatmul.mubr.bf16.gmra.mrb[0].mxu0 %v2208
        %v2851 = vpop.f32.mrb[0].mxu0
        %v2852 = vadd.f32 %v2691, %v2851
        %v2853 = vpop.f32.mrb[0].mxu0
        %v2854 = vpop.f32.mrb[0].mxu0
        %v2855 = vadd.f32 %v2694, %v2854
        %v2856 = vpop.f32.mrb[0].mxu0
        %2857 = vmatprep.mubr.bf16.mxu0 %v2214
        %2858 = vmatmul.mubr.bf16.gmra.mrb[0].mxu0 %v2213
        %v2859 = vpop.f32.mrb[0].mxu0
        %v2860 = vadd.f32 %v2699, %v2859
        %v2861 = vpop.f32.mrb[0].mxu0
        %v2862 = vpop.f32.mrb[0].mxu0
        %v2863 = vadd.f32 %v2702, %v2862
        %v2864 = vpop.f32.mrb[0].mxu0
        %2865 = vmatprep.mubr.bf16.mxu0 %v2219
        %2866 = vmatmul.mubr.bf16.gmra.mrb[0].mxu0 %v2218
        %v2867 = vpop.f32.mrb[0].mxu0
        %v2868 = vadd.f32 %v2707, %v2867
        %v2869 = vpop.f32.mrb[0].mxu0
        %v2870 = vpop.f32.mrb[0].mxu0
        %v2871 = vadd.f32 %v2710, %v2870
        %v2872 = vpop.f32.mrb[0].mxu0
        %2873 = vmatprep.mubr.bf16.mxu0 %v2224
        %2874 = vmatmul.mubr.bf16.gmra.mrb[0].mxu0 %v2223
        %v2875 = vpop.f32.mrb[0].mxu0
        %v2876 = vadd.f32 %v2715, %v2875
        %v2877 = vpop.f32.mrb[0].mxu0
        %v2878 = vpop.f32.mrb[0].mxu0
        %v2879 = vadd.f32 %v2718, %v2878
        %v2880 = vpop.f32.mrb[0].mxu0
        %2881 = vmatprep.mubr.bf16.mxu0 %v2229
        %2882 = vmatmul.mubr.bf16.gmra.mrb[0].mxu0 %v2228
        %v2883 = vpop.f32.mrb[0].mxu0
        %v2884 = vadd.f32 %v2723, %v2883
        %v2885 = vpop.f32.mrb[0].mxu0
        %v2886 = vpop.f32.mrb[0].mxu0
        %v2887 = vadd.f32 %v2726, %v2886
        %v2888 = vpop.f32.mrb[0].mxu0
        %2889 = vmatprep.mubr.bf16.mxu0 %v2234
        %2890 = vmatmul.mubr.bf16.gmra.mrb[0].mxu0 %v2233
        %v2891 = vpop.f32.mrb[0].mxu0
        %v2892 = vadd.f32 %v2731, %v2891
        %v2893 = vpop.f32.mrb[0].mxu0
        %v2894 = vpop.f32.mrb[0].mxu0
        %v2895 = vadd.f32 %v2734, %v2894
        %v2896 = vpop.f32.mrb[0].mxu0
        %2897 = vmatprep.mubr.bf16.mxu0 %v2239
        %2898 = vmatmul.mubr.bf16.gmra.mrb[0].mxu0 %v2238
        %v2899 = vpop.f32.mrb[0].mxu0
        %v2900 = vadd.f32 %v2739, %v2899
        %v2901 = vpop.f32.mrb[0].mxu0
        %v2902 = vpop.f32.mrb[0].mxu0
        %v2903 = vadd.f32 %v2742, %v2902
        %v2904 = vpop.f32.mrb[0].mxu0
        %2905 = vdwg.mxu0
        %2906 = vmatprep.subr.bf16.mxu0 0
        %2907 = vmatpush1.bf16.msra.mxu0 %v2496
        %2908 = vmatprep.subr.bf16.mxu0 0
        %2909 = vmatpush1.bf16.msra.mxu0 %v2497
        %2910 = vmatprep.subr.bf16.mxu0 0
        %2911 = vmatpush1.bf16.msra.mxu0 %v2498
        %2912 = vmatprep.subr.bf16.mxu0 0
        %2913 = vmatpush1.bf16.msra.mxu0 %v2499
        %2914 = vmatprep.subr.bf16.mxu0 0
        %2915 = vmatpush1.bf16.msra.mxu0 0
        %2916 = vmatprep.subr.bf16.mxu0 0
        %2917 = vmatpush1.bf16.msra.mxu0 0
        %2918 = vmatprep.subr.bf16.mxu0 0
        %2919 = vmatpush1.bf16.msra.mxu0 0
        %2920 = vmatprep.subr.bf16.mxu0 0
        %2921 = vmatpush1.bf16.msra.mxu0 0
        %2922 = vmatprep.subr.bf16.mxu0 0
        %2923 = vmatpush1.bf16.msra.mxu0 0
        %2924 = vmatprep.subr.bf16.mxu0 0
        %2925 = vmatpush1.bf16.msra.mxu0 0
        %2926 = vmatprep.subr.bf16.mxu0 0
        %2927 = vmatpush1.bf16.msra.mxu0 0
        %2928 = vmatprep.subr.bf16.mxu0 0
        %2929 = vmatpush1.bf16.msra.mxu0 0
        %2930 = vmatprep.subr.bf16.mxu0 0
        %2931 = vmatpush1.bf16.msra.mxu0 0
        %2932 = vmatprep.subr.bf16.mxu0 0
        %2933 = vmatpush1.bf16.msra.mxu0 0
        %2934 = vmatprep.subr.bf16.mxu0 0
        %2935 = vmatpush1.bf16.msra.mxu0 0
        %2936 = vmatprep.subr.bf16.mxu0 0
        %2937 = vmatpush1.bf16.msra.mxu0 0
        %2938 = vmatprep.mubr.bf16.mxu0 0
        %2939 = vmatmul.mubr.bf16.gmra.mrb[0].mxu0 %v2537
        %v2940 = vpop.f32.mrb[0].mxu0
        %v2941 = vadd.f32 %v2780, %v2940
        %v2942 = vpop.f32.mrb[0].mxu0
        %v2943 = vpop.f32.mrb[0].mxu0
        %v2944 = vadd.f32 %v2783, %v2943
        %v2945 = vpop.f32.mrb[0].mxu0
        %2946 = vmatprep.mubr.bf16.mxu0 0
        %2947 = vmatmul.mubr.bf16.gmra.mrb[0].mxu0 %v2540
        %v2948 = vpop.f32.mrb[0].mxu0
        %v2949 = vadd.f32 %v2788, %v2948
        %v2950 = vpop.f32.mrb[0].mxu0
        %v2951 = vpop.f32.mrb[0].mxu0
        %v2952 = vadd.f32 %v2791, %v2951
        %v2953 = vpop.f32.mrb[0].mxu0
        %2954 = vmatprep.mubr.bf16.mxu0 0
        %2955 = vmatmul.mubr.bf16.gmra.mrb[0].mxu0 %v2543
        %v2956 = vpop.f32.mrb[0].mxu0
        %v2957 = vadd.f32 %v2796, %v2956
        %v2958 = vpop.f32.mrb[0].mxu0
        %v2959 = vpop.f32.mrb[0].mxu0
        %v2960 = vadd.f32 %v2799, %v2959
        %v2961 = vpop.f32.mrb[0].mxu0
        %2962 = vmatprep.mubr.bf16.mxu0 0
        %2963 = vmatmul.mubr.bf16.gmra.mrb[0].mxu0 %v2546
        %v2964 = vpop.f32.mrb[0].mxu0
        %v2965 = vadd.f32 %v2804, %v2964
        %v2966 = vpop.f32.mrb[0].mxu0
        %v2967 = vpop.f32.mrb[0].mxu0
        %v2968 = vadd.f32 %v2807, %v2967
        %v2969 = vpop.f32.mrb[0].mxu0
        %2970 = vmatprep.mubr.bf16.mxu0 0
        %2971 = vmatmul.mubr.bf16.gmra.mrb[0].mxu0 %v2549
        %v2972 = vpop.f32.mrb[0].mxu0
        %v2973 = vadd.f32 %v2812, %v2972
        %v2974 = vpop.f32.mrb[0].mxu0
        %v2975 = vpop.f32.mrb[0].mxu0
        %v2976 = vadd.f32 %v2815, %v2975
        %v2977 = vpop.f32.mrb[0].mxu0
        %2978 = vmatprep.mubr.bf16.mxu0 0
        %2979 = vmatmul.mubr.bf16.gmra.mrb[0].mxu0 %v2552
        %v2980 = vpop.f32.mrb[0].mxu0
        %v2981 = vadd.f32 %v2820, %v2980
        %v2982 = vpop.f32.mrb[0].mxu0
        %v2983 = vpop.f32.mrb[0].mxu0
        %v2984 = vadd.f32 %v2823, %v2983
        %v2985 = vpop.f32.mrb[0].mxu0
        %2986 = vmatprep.mubr.bf16.mxu0 0
        %2987 = vmatmul.mubr.bf16.gmra.mrb[0].mxu0 %v2555
        %v2988 = vpop.f32.mrb[0].mxu0
        %v2989 = vadd.f32 %v2828, %v2988
        %v2990 = vpop.f32.mrb[0].mxu0
        %v2991 = vpop.f32.mrb[0].mxu0
        %v2992 = vadd.f32 %v2831, %v2991
        %v2993 = vpop.f32.mrb[0].mxu0
        %2994 = vmatprep.mubr.bf16.mxu0 0
        %2995 = vmatmul.mubr.bf16.gmra.mrb[0].mxu0 %v2558
        %v2996 = vpop.f32.mrb[0].mxu0
        %v2997 = vadd.f32 %v2836, %v2996
        %v2998 = vpop.f32.mrb[0].mxu0
        %v2999 = vpop.f32.mrb[0].mxu0
        %v3000 = vadd.f32 %v2839, %v2999
        %v3001 = vpop.f32.mrb[0].mxu0
        %3002 = vmatprep.mubr.bf16.mxu0 0
        %3003 = vmatmul.mubr.bf16.gmra.mrb[0].mxu0 %v2561
        %v3004 = vpop.f32.mrb[0].mxu0
        %v3005 = vadd.f32 %v2844, %v3004
        %v3006 = vpop.f32.mrb[0].mxu0
        %v3007 = vpop.f32.mrb[0].mxu0
        %v3008 = vadd.f32 %v2847, %v3007
        %v3009 = vpop.f32.mrb[0].mxu0
        %3010 = vmatprep.mubr.bf16.mxu0 0
        %3011 = vmatmul.mubr.bf16.gmra.mrb[0].mxu0 %v2564
        %v3012 = vpop.f32.mrb[0].mxu0
        %v3013 = vadd.f32 %v2852, %v3012
        %v3014 = vpop.f32.mrb[0].mxu0
        %v3015 = vpop.f32.mrb[0].mxu0
        %v3016 = vadd.f32 %v2855, %v3015
        %v3017 = vpop.f32.mrb[0].mxu0
        %3018 = vmatprep.mubr.bf16.mxu0 0
        %3019 = vmatmul.mubr.bf16.gmra.mrb[0].mxu0 %v2567
        %v3020 = vpop.f32.mrb[0].mxu0
        %v3021 = vadd.f32 %v2860, %v3020
        %v3022 = vpop.f32.mrb[0].mxu0
        %v3023 = vpop.f32.mrb[0].mxu0
        %v3024 = vadd.f32 %v2863, %v3023
        %v3025 = vpop.f32.mrb[0].mxu0
        %3026 = vmatprep.mubr.bf16.mxu0 0
        %3027 = vmatmul.mubr.bf16.gmra.mrb[0].mxu0 %v2570
        %v3028 = vpop.f32.mrb[0].mxu0
        %v3029 = vadd.f32 %v2868, %v3028
        %v3030 = vpop.f32.mrb[0].mxu0
        %v3031 = vpop.f32.mrb[0].mxu0
        %v3032 = vadd.f32 %v2871, %v3031
        %v3033 = vpop.f32.mrb[0].mxu0
        %3034 = vmatprep.mubr.bf16.mxu0 0
        %3035 = vmatmul.mubr.bf16.gmra.mrb[0].mxu0 %v2573
        %v3036 = vpop.f32.mrb[0].mxu0
        %v3037 = vadd.f32 %v2876, %v3036
        %v3038 = vpop.f32.mrb[0].mxu0
        %v3039 = vpop.f32.mrb[0].mxu0
        %v3040 = vadd.f32 %v2879, %v3039
        %v3041 = vpop.f32.mrb[0].mxu0
        %3042 = vmatprep.mubr.bf16.mxu0 0
        %3043 = vmatmul.mubr.bf16.gmra.mrb[0].mxu0 %v2576
        %v3044 = vpop.f32.mrb[0].mxu0
        %v3045 = vadd.f32 %v2884, %v3044
        %v3046 = vpop.f32.mrb[0].mxu0
        %v3047 = vpop.f32.mrb[0].mxu0
        %v3048 = vadd.f32 %v2887, %v3047
        %v3049 = vpop.f32.mrb[0].mxu0
        %3050 = vmatprep.mubr.bf16.mxu0 0
        %3051 = vmatmul.mubr.bf16.gmra.mrb[0].mxu0 %v2579
        %v3052 = vpop.f32.mrb[0].mxu0
        %v3053 = vadd.f32 %v2892, %v3052
        %v3054 = vpop.f32.mrb[0].mxu0
        %v3055 = vpop.f32.mrb[0].mxu0
        %v3056 = vadd.f32 %v2895, %v3055
        %v3057 = vpop.f32.mrb[0].mxu0
        %3058 = vmatprep.mubr.bf16.mxu0 0
        %3059 = vmatmul.mubr.bf16.gmra.mrb[0].mxu0 %v2582
        %v3060 = vpop.f32.mrb[0].mxu0
        %v3061 = vadd.f32 %v2900, %v3060
        %v3062 = vpop.f32.mrb[0].mxu0
        %v3063 = vpop.f32.mrb[0].mxu0
        %v3064 = vadd.f32 %v2903, %v3063
        %v3065 = vpop.f32.mrb[0].mxu0
        %3066 = vdwg.mxu0
        %v3067 = vadd.f32 %v2941, %v217
        %v3068 = vadd.f32 %v2944, %v218
        %v3069 = vadd.f32 %v2949, %v219
        %v3070 = vadd.f32 %v2952, %v220
        %v3071 = vadd.f32 %v2957, %v221
        %v3072 = vadd.f32 %v2960, %v222
        %v3073 = vadd.f32 %v2965, %v223
        %v3074 = vadd.f32 %v2968, %v224
        %v3075 = vadd.f32 %v2973, %v225
        %v3076 = vadd.f32 %v2976, %v226
        %v3077 = vadd.f32 %v2981, %v227
        %v3078 = vadd.f32 %v2984, %v228
        %v3079 = vadd.f32 %v2989, %v229
        %v3080 = vadd.f32 %v2992, %v230
        %v3081 = vadd.f32 %v2997, %v231
        %v3082 = vadd.f32 %v3000, %v232
        %v3083 = vadd.f32 %v3005, %v233
        %v3084 = vadd.f32 %v3008, %v234
        %v3085 = vadd.f32 %v3013, %v235
        %v3086 = vadd.f32 %v3016, %v236
        %v3087 = vadd.f32 %v3021, %v237
        %v3088 = vadd.f32 %v3024, %v238
        %v3089 = vadd.f32 %v3029, %v239
        %v3090 = vadd.f32 %v3032, %v240
        %v3091 = vadd.f32 %v3037, %v241
        %v3092 = vadd.f32 %v3040, %v242
        %v3093 = vadd.f32 %v3045, %v243
        %v3094 = vadd.f32 %v3048, %v244
        %v3095 = vadd.f32 %v3053, %v245
        %v3096 = vadd.f32 %v3056, %v246
        %v3097 = vadd.f32 %v3061, %v247
        %v3098 = vadd.f32 %v3064, %v248
        %3099 = vst.msk [vmem:[%s215] sm:$0xff] %vm249, %v3067
        %3100 = vst.msk [vmem:[%s215 + $0x8] sm:$0xff] %vm249, %v3068
        %3101 = vst.msk [vmem:[%s215 + $0x10] sm:$0xff] %vm249, %v3069
        %3102 = vst.msk [vmem:[%s215 + $0x18] sm:$0xff] %vm249, %v3070
        %3103 = vst.msk [vmem:[%s215 + $0x20] sm:$0xff] %vm249, %v3071
        %3104 = vst.msk [vmem:[%s215 + $0x28] sm:$0xff] %vm249, %v3072
        %3105 = vst.msk [vmem:[%s215 + $0x30] sm:$0xff] %vm249, %v3073
        %3106 = vst.msk [vmem:[%s215 + $0x38] sm:$0xff] %vm249, %v3074
        %3107 = vst.msk [vmem:[%s215 + $0x40] sm:$0xff] %vm249, %v3075
        %3108 = vst.msk [vmem:[%s215 + $0x48] sm:$0xff] %vm249, %v3076
        %3109 = vst.msk [vmem:[%s215 + $0x50] sm:$0xff] %vm249, %v3077
        %3110 = vst.msk [vmem:[%s215 + $0x58] sm:$0xff] %vm249, %v3078
        %3111 = vst.msk [vmem:[%s215 + $0x60] sm:$0xff] %vm249, %v3079
        %3112 = vst.msk [vmem:[%s215 + $0x68] sm:$0xff] %vm249, %v3080
        %3113 = vst.msk [vmem:[%s215 + $0x70] sm:$0xff] %vm249, %v3081
        %3114 = vst.msk [vmem:[%s215 + $0x78] sm:$0xff] %vm249, %v3082
        %3115 = vst.msk [vmem:[%s215 + $0x80] sm:$0xff] %vm249, %v3083
        %3116 = vst.msk [vmem:[%s215 + $0x88] sm:$0xff] %vm249, %v3084
        %3117 = vst.msk [vmem:[%s215 + $0x90] sm:$0xff] %vm249, %v3085
        %3118 = vst.msk [vmem:[%s215 + $0x98] sm:$0xff] %vm249, %v3086
        %3119 = vst.msk [vmem:[%s215 + $0xa0] sm:$0xff] %vm249, %v3087
        %3120 = vst.msk [vmem:[%s215 + $0xa8] sm:$0xff] %vm249, %v3088
        %3121 = vst.msk [vmem:[%s215 + $0xb0] sm:$0xff] %vm249, %v3089
        %3122 = vst.msk [vmem:[%s215 + $0xb8] sm:$0xff] %vm249, %v3090
        %3123 = vst.msk [vmem:[%s215 + $0xc0] sm:$0xff] %vm249, %v3091
        %3124 = vst.msk [vmem:[%s215 + $0xc8] sm:$0xff] %vm249, %v3092
        %3125 = vst.msk [vmem:[%s215 + $0xd0] sm:$0xff] %vm249, %v3093
        %3126 = vst.msk [vmem:[%s215 + $0xd8] sm:$0xff] %vm249, %v3094
        %3127 = vst.msk [vmem:[%s215 + $0xe0] sm:$0xff] %vm249, %v3095
        %3128 = vst.msk [vmem:[%s215 + $0xe8] sm:$0xff] %vm249, %v3096
        %3129 = vst.msk [vmem:[%s215 + $0xf0] sm:$0xff] %vm249, %v3097
        %3130 = vst.msk [vmem:[%s215 + $0xf8] sm:$0xff] %vm249, %v3098
        %s3131 = sand.u32 %s118, 1
        %s3132 = scalar_lea.sflag [#allocation6], %s3131
        %s3133 = sand.u32 %s118, 1
        %s3134 = smul.addr %s3133, 256
        %s3135 = scalar_lea.vmem [#allocation7], %s3134
        // Predicated region
        $region41: #{tpu_custom_call.1} parent=35 // pred_check
          %p3136 = pneg %p128
        $region42: #{tpu_custom_call.1} parent=35 // pred_check_branch
          %3138 = sbr.rel (%p3136) target = $region44
        $region43: #{tpu_custom_call.1} parent=35 // pred_region
          %s3140 = ssub.s32 4096, 4096
          %3141 = vsyncadd %s3132, %s3140
          %s3142 = smul.addr %s21, 32
          %s3143 = smul.addr %s3142, 128
          %s3144 = scalar_lea.hbm %s4, %s3143
          %s3145 = sshll.u32 %s3135, 4
          %s3146 = int_to_ptr.vmem [resolvable:$true] %s3145
          %3151 = dma.vmem_to_hbm [thread:$0]  %s3146, 4096, %s3144, %s3132, 128, 128, 8
        $region44: #{tpu_custom_call.1} parent=35 // pred_fallthru
          _
      $region36: #{tpu_custom_call.1} parent=5 // pred_fallthru
        _
      %p3152 = scmp.le.s32.totalorder 2, %s16
      // Predicated region
      $region45: #{tpu_custom_call.1} parent=5 // pred_check
        %p3153 = pneg %p3152
      $region46: #{tpu_custom_call.1} parent=5 // pred_check_branch
        %3155 = sbr.rel (%p3153) target = $region48
      $region47: #{tpu_custom_call.1} parent=5 // pred_region
        %s3156 = ssub.s32 %s16, 2
        // Predicated region
        $region49: #{tpu_custom_call.1} parent=47 // pred_check
          %p3157 = pneg %p134
        $region50: #{tpu_custom_call.1} parent=47 // pred_check_branch
          %3159 = sbr.rel (%p3157) target = $region52
        $region51: #{tpu_custom_call.1} parent=47 // pred_region
          %s3160 = sand.u32 %s119, 1
          %s3161 = scalar_lea.sflag [#allocation6], %s3160
          %s3162 = sand.u32 %s119, 1
          %s3163 = smul.addr %s3162, 256
          %s3164 = scalar_lea.vmem [#allocation7], %s3163
          %3165 = dma.done %s3161, 4096
        $region52: #{tpu_custom_call.1} parent=47 // pred_fallthru
          _
      $region48: #{tpu_custom_call.1} parent=5 // pred_fallthru
        _
    $region6: #{tpu_custom_call.1} parent=1 // loop_footer
      %s20 = sadd.s32 1, %s16
    $region7: #{tpu_custom_call.1} parent=1 // loop_footer_branch
      %15 = sbr.rel target = $region3
    $region8: #{tpu_custom_call.1} parent=1 // loop_exit
      _
    %3166 = vsyncpa [#allocation5], 1
    %s3167 = scalar_lea.sflag [#allocation5], 1
    %3168 = vsyncpa %s3167, 1
    %3169 = vsyncpa [#allocation6], 1
    %s3170 = scalar_lea.sflag [#allocation6], 1
    %3171 = vsyncpa %s3170, 1

</llo_original>
